<compile_context>
chip_gen: v6e
topology: v6e:2x2x1
jax: 0.10.0
libtpu: 0.0.40
codegen_flags: <defaults>
</compile_context>

<pallas_src>
import functools
import math

import jax
import jax.numpy as jnp
from jax import lax
from jax.experimental import pallas as pl
from jax.experimental.pallas import tpu as pltpu


# ---------------------------------------------------------------------------
# shared math helpers (used by both the kernel and the pure-JAX reference)
# ---------------------------------------------------------------------------
def _gelu_tanh(x):
    c = math.sqrt(2.0 / math.pi)
    return 0.5 * x * (1.0 + jnp.tanh(c * (x + 0.044715 * x * x * x)))


def _softplus(x):
    return jnp.maximum(x, 0.0) + jnp.log(1.0 + jnp.exp(-jnp.abs(x)))


# ---------------------------------------------------------------------------
# Pallas kernel: one batch element per grid step
# ---------------------------------------------------------------------------
def m2d_kernel(
    x_ref,                                  # (1, H, W, d_model)
    w1_ref, b1_ref,                         # (d_model, d_inner), (1, d_inner)
    w2_ref, b2_ref,                         # (d_inner, 2*d_inner+2*d_state), (1, same)
    atp_ref, alp_ref,                       # (d_state//2, 2*d_inner) packed -exp(A_log).T
    d_ref,                                  # (1, d_inner)
    wout_ref, bout_ref,                     # (d_inner, n_out), (1, n_out) zero-padded
    out_ref,                                # (1, H, W, n_out)
    dAT_s, dAL_s, bx_s, cp_s,               # (L, d_state//2, 2*d_inner) f32 scratch
    y_s,                                    # (L, d_inner) f32 scratch
    *, Hh, Ww, d_inner, d_state,
):
    L = Hh * Ww
    s2 = d_state // 2
    d2 = 2 * d_inner
    d_model = x_ref.shape[-1]
    xf = x_ref[0].reshape(L, d_model)                   # (L, d_model)

    # ---- in_proj + GELU ---------------------------------------------------
    xi = _gelu_tanh(jnp.dot(xf, w1_ref[...],
                            preferred_element_type=jnp.float32) + b1_ref[...])

    # ---- fused x_proj (+ folded low-rank dt_proj): one lane-dense matmul ---
    proj = jnp.dot(xi, w2_ref[...],
                   preferred_element_type=jnp.float32) + b2_ref[...]
    # one 2*d_inner-wide softplus (lane-aligned slice), split in-register
    dlt = _softplus(proj[:, :d2])                       # (L, 2*d_inner)
    deltaT = dlt[:, :d_inner]                           # (L, d_inner)
    deltaL = dlt[:, d_inner:]
    bc = proj[:, d2:]                                   # (L, 2*d_state), vreg-aligned
    Bm = bc[:, :d_state]                                # (L, d_state)
    Cm = bc[:, d_state:]                                # (L, d_state)

    # ---- discretise into packed (s', k) layout:
    #      X_packed[s', k] = X[s' + s2*(k // d_inner), k % d_inner]
    dT2 = jnp.concatenate([deltaT, deltaT], axis=-1)    # (L, 2*d_inner)
    dL2 = jnp.concatenate([deltaL, deltaL], axis=-1)
    dAT_s[...] = jnp.exp(dT2[:, None, :] * atp_ref[...][None, :, :])
    dAL_s[...] = jnp.exp(dL2[:, None, :] * alp_ref[...][None, :, :])
    u = (deltaT + deltaL) * xi                          # (L, d_inner): BXT+BXL factor
    bx_s[...] = jnp.concatenate(
        [u[:, None, :] * Bm[:, :s2][:, :, None],
         u[:, None, :] * Bm[:, s2:][:, :, None]], axis=-1)
    cp_s[...] = jnp.concatenate(
        [jnp.broadcast_to(Cm[:, :s2][:, :, None], (L, s2, d_inner)),
         jnp.broadcast_to(Cm[:, s2:][:, :, None], (L, s2, d_inner))], axis=-1)

    # ---- 2-D wavefront scan with fused C-contraction ------------------------
    #   h[i,j] = dAT[i,j]*h[i-1,j] + dAL[i,j]*h[i,j-1] + bx[i,j]
    #   y[i,j] = sum_s h[i,j,s,:] * C[i,j,s]
    # Previous row carried in vregs (fori_loop carry); the top contribution is
    # precomputed per row so the serial chain is 1 mul + 1 add per cell.
    def row_body(i, hrow_prev):                          # hrow_prev: (Ww, s2, d2)
        row_base = pl.multiple_of(i * Ww, Ww)
        dAT_row = dAT_s[pl.ds(row_base, Ww)]             # (Ww, s2, d2)
        dAL_row = dAL_s[pl.ds(row_base, Ww)]
        bx_row = bx_s[pl.ds(row_base, Ww)]
        t_row = dAT_row * hrow_prev + bx_row             # vectorised, off the chain

        h_left = jnp.zeros((s2, d2), jnp.float32)
        hs = []
        for j in range(Ww):                              # static unroll over columns
            h = dAL_row[j] * h_left + t_row[j]
            hs.append(h)
            h_left = h
        hs_row = jnp.stack(hs, axis=0)                   # (Ww, s2, d2)

        # fused C-contraction for the whole row
        part = jnp.sum(hs_row * cp_s[pl.ds(row_base, Ww)], axis=1)   # (Ww, d2)
        y_s[pl.ds(row_base, Ww)] = (
            part + pltpu.roll(part, d_inner, axis=1))[:, :d_inner]
        return hs_row

    lax.fori_loop(0, Hh, row_body,
                  jnp.zeros((Ww, s2, d2), jnp.float32))

    # ---- D skip + GELU + out_proj (lane-dense, zero-padded columns) ---------
    y = _gelu_tanh(y_s[...] + xi * d_ref[...])
    out = jnp.dot(y, wout_ref[...],
                  preferred_element_type=jnp.float32) + bout_ref[...]
    out_ref[...] = out.reshape(1, Hh, Ww, out_ref.shape[-1])


# ---------------------------------------------------------------------------
# wrapper: parameter folding / packing / plumbing + pallas_call
# ---------------------------------------------------------------------------
def m2d_forward(x, p, dt_rank, d_state):
    Bb, Hh, Ww, d_model = x.shape
    d_inner = p["D"].shape[0]
    assert d_state % 2 == 0, "lane packing assumes even d_state"
    L = Hh * Ww
    s2 = d_state // 2
    d2 = 2 * d_inner
    hp = jax.lax.Precision.HIGHEST

    Wx, bxv = p["Wx"], p["bx"]
    Wx_dtT, bx_dtT = Wx[:dt_rank], bxv[:dt_rank]
    Wx_dtL, bx_dtL = Wx[dt_rank:2 * dt_rank], bxv[dt_rank:2 * dt_rank]
    Wx_B, bx_B = (Wx[2 * dt_rank:2 * dt_rank + d_state],
                  bxv[2 * dt_rank:2 * dt_rank + d_state])
    Wx_C, bx_C = (Wx[2 * dt_rank + d_state:],
                  bxv[2 * dt_rank + d_state:])

    # Fold dt_proj through the low-rank x_proj slices (exact identity):
    #   softplus((xi @ WxdtT.T + bxdtT) @ WdtT.T + bdtT)
    #     = softplus(xi @ (WxdtT.T @ WdtT.T) + (bxdtT @ WdtT.T + bdtT))
    WT_fold = jnp.dot(Wx_dtT.T, p["WdtT"].T, precision=hp)   # (d_inner, d_inner)
    bT_fold = jnp.dot(bx_dtT, p["WdtT"].T, precision=hp) + p["bdtT"]
    WL_fold = jnp.dot(Wx_dtL.T, p["WdtL"].T, precision=hp)
    bL_fold = jnp.dot(bx_dtL, p["WdtL"].T, precision=hp) + p["bdtL"]

    w2 = jnp.concatenate([WT_fold, WL_fold, Wx_B.T, Wx_C.T], axis=1)
    b2 = jnp.concatenate([bT_fold, bL_fold, bx_B, bx_C])[None, :]

    w1 = p["Win"].T
    b1 = p["bin"][None, :]
    at = -jnp.exp(p["AT_log"]).T                             # (d_state, d_inner)
    al = -jnp.exp(p["AL_log"]).T
    # pre-pack A into the (d_state//2, 2*d_inner) lane-dense layout
    atp = jnp.concatenate([at[:s2], at[s2:]], axis=1)        # (s2, 2*d_inner)
    alp = jnp.concatenate([al[:s2], al[s2:]], axis=1)
    dvec = p["D"][None, :]

    # lane-dense output: pad out_proj columns to a multiple of 128
    n_out = -(-d_model // 128) * 128
    wout = p["Wout"].T                                       # (d_inner, d_model)
    bout = p["bout"]
    if n_out != d_model:
        wout = jnp.pad(wout, ((0, 0), (0, n_out - d_model)))
        bout = jnp.pad(bout, (0, n_out - d_model))
    bout = bout[None, :]

    params_in = (w1, b1, w2, b2, atp, alp, dvec, wout, bout)  # all 2-D

    kernel = functools.partial(m2d_kernel, Hh=Hh, Ww=Ww,
                               d_inner=d_inner, d_state=d_state)

    in_specs = [pl.BlockSpec((1, Hh, Ww, d_model), lambda b: (b, 0, 0, 0))]
    in_specs += [pl.BlockSpec(a.shape, lambda b: (0, 0)) for a in params_in]

    scratch_shapes = [
        pltpu.VMEM((L, s2, d2), jnp.float32),      # dAT (packed)
        pltpu.VMEM((L, s2, d2), jnp.float32),      # dAL (packed)
        pltpu.VMEM((L, s2, d2), jnp.float32),      # bx = BXT+BXL (packed)
        pltpu.VMEM((L, s2, d2), jnp.float32),      # C (packed, lane-broadcast)
        pltpu.VMEM((L, d_inner), jnp.float32),     # y
    ]

    # VMEM budget: scratch counted once, a same-sized allowance for in-kernel
    # temporaries, double-buffered x/out tiles, params (worst-case 2x), slack.
    itemsize = 4
    scratch_bytes = itemsize * (4 * L * s2 * d2 + L * d_inner)
    tmp_bytes = scratch_bytes
    io_bytes = itemsize * 2 * (Hh * Ww * d_model + Hh * Ww * n_out)
    param_bytes = itemsize * 2 * sum(int(a.size) for a in params_in)
    try:
        kind = jax.devices()[0].device_kind.lower()
    except Exception:  # pragma: no cover
        kind = ""
    # v5e/v6e have 128 MiB physical VMEM; keep a conservative cap elsewhere (v7x: 64 MiB).
    cap = (100 << 20) if ("v5" in kind or "v6" in kind) else (56 << 20)
    vmem_limit = min(cap, max(32 << 20, scratch_bytes + tmp_bytes + io_bytes
                              + param_bytes + (8 << 20)))

    grid_spec = pltpu.PrefetchScalarGridSpec(
        num_scalar_prefetch=0,
        grid=(Bb,),
        in_specs=in_specs,
        out_specs=pl.BlockSpec((1, Hh, Ww, n_out), lambda b: (b, 0, 0, 0)),
        scratch_shapes=scratch_shapes,
    )

    out_pad = pl.pallas_call(
        kernel,
        out_shape=jax.ShapeDtypeStruct((Bb, Hh, Ww, n_out), jnp.float32),
        grid_spec=grid_spec,
        compiler_params=pltpu.CompilerParams(
            dimension_semantics=("parallel",),
            vmem_limit_bytes=vmem_limit),
    )(x, *params_in)

    if n_out != d_model:
        out_pad = out_pad[..., :d_model]
    return out_pad


# ---------------------------------------------------------------------------
# deterministic parameter init (mirrors M2DBlock.__init__ shapes / structure)
# ---------------------------------------------------------------------------
def init_params(key, d_model, d_state, expand, dt_rank,
                dt_min=0.001, dt_max=0.1, dt_scale=1.0, dt_init_floor=1e-4):
    d_inner = expand * d_model
    ks = jax.random.split(key, 10)

    def unif(k, shape, bound):
        return jax.random.uniform(k, shape, jnp.float32, -bound, bound)

    p = {}
    b_in = 1.0 / math.sqrt(d_model)
    p["Win"] = unif(ks[0], (d_inner, d_model), b_in)
    p["bin"] = unif(ks[1], (d_inner,), b_in)

    b_x = 1.0 / math.sqrt(d_inner)
    p["Wx"] = unif(ks[2], (2 * dt_rank + 2 * d_state, d_inner), b_x)
    p["bx"] = unif(ks[3], (2 * dt_rank + 2 * d_state,), b_x)

    dt_init_std = dt_rank ** (-0.5) * dt_scale
    p["WdtT"] = unif(ks[4], (d_inner, dt_rank), dt_init_std)
    p["WdtL"] = unif(ks[5], (d_inner, dt_rank), dt_init_std)

    dt = jnp.exp(jax.random.uniform(ks[6], (d_inner,), jnp.float32)
                 * (math.log(dt_max) - math.log(dt_min)) + math.log(dt_min))
    dt = jnp.maximum(dt, dt_init_floor)
    inv_dt = dt + jnp.log(-jnp.expm1(-dt))
    p["bdtT"] = inv_dt
    p["bdtL"] = inv_dt

    p["AT_log"] = jnp.log(jnp.tile(jnp.arange(1, d_state + 1, dtype=jnp.float32),
                                   (d_inner, 1)))
    p["AL_log"] = p["AT_log"]
    p["D"] = jnp.ones((d_inner,), jnp.float32)

    b_out = 1.0 / math.sqrt(d_inner)
    p["Wout"] = unif(ks[7], (d_model, d_inner), b_out)
    p["bout"] = unif(ks[8], (d_model,), b_out)
    return p


# ---------------------------------------------------------------------------
# pure-JAX reference (mirrors the PyTorch module: separate x_proj / dt_proj)
# ---------------------------------------------------------------------------
def ref_forward(x, p, dt_rank, d_state):
    d_inner = p["D"].shape[0]
    Bb, Hh, Ww, _ = x.shape

    xi = _gelu_tanh(x @ p["Win"].T + p["bin"])
    dbc = xi @ p["Wx"].T + p["bx"]
    dT_r = dbc[..., :dt_rank]
    dL_r = dbc[..., dt_rank:2 * dt_rank]
    Bm = dbc[..., 2 * dt_rank:2 * dt_rank + d_state]
    Cm = dbc[..., 2 * dt_rank + d_state:]
    deltaT = _softplus(dT_r @ p["WdtT"].T + p["bdtT"])
    deltaL = _softplus(dL_r @ p["WdtL"].T + p["bdtL"])

    AT = -jnp.exp(p["AT_log"])
    AL = -jnp.exp(p["AL_log"])
    dAT = jnp.exp(deltaT[..., None] * AT)                 # (B,H,W,d_inner,d_state)
    dAL = jnp.exp(deltaL[..., None] * AL)
    BX = (deltaT + deltaL)[..., None] * Bm[..., None, :] * xi[..., None]

    zero = jnp.zeros((Bb, d_inner, d_state), jnp.float32)
    rows = []
    for i in range(Hh):
        row = []
        for j in range(Ww):
            h_top = rows[i - 1][j] if i > 0 else zero
            h_left = row[j - 1] if j > 0 else zero
            h = dAT[:, i, j] * h_top + dAL[:, i, j] * h_left + BX[:, i, j]
            row.append(h)
        rows.append(row)
    hs = jnp.stack([jnp.stack(r, axis=1) for r in rows], axis=1)

    y = jnp.einsum("bhwds,bhws->bhwd", hs, Cm)
    y = y + xi * p["D"]
    return _gelu_tanh(y) @ p["Wout"].T + p["bout"]


# ---------------------------------------------------------------------------
if __name__ == "__main__":
    B, H, W = 2, 8, 8
    d_model, d_state, expand = 32, 16, 2
    dt_rank = math.ceil(d_model / 16)

    key = jax.random.PRNGKey(0)
    kx, kp = jax.random.split(key)
    x = jax.random.normal(kx, (B, H, W, d_model), jnp.float32)
    params = init_params(kp, d_model, d_state, expand, dt_rank)

    out = jax.block_until_ready(m2d_forward(x, params, dt_rank, d_state))

    assert out.shape == (B, H, W, d_model)
    assert bool(jnp.all(jnp.isfinite(out)))

    # Reference at full f32 matmul precision; the kernel uses default
    # (bf16-pass) MXU precision with f32 accumulation, and output magnitudes
    # can be large, so compare with a relative-error metric.
    with jax.default_matmul_precision("float32"):
        ref = ref_forward(x, params, dt_rank, d_state)
    rel_err = float(jnp.linalg.norm(out - ref) / (jnp.linalg.norm(ref) + 1e-30))
    assert rel_err < 2e-2, f"relative L2 error {rel_err}"

    print("KERNEL_OK")
</pallas_src>

<mosaic_0001>
module attributes {stable_mosaic.version = 11 : i64} {
  func.func @m2d_kernel(%arg0: i32, %arg1: memref<1x8x8x32xf32, #tpu.memory_space<vmem>>, %arg2: memref<32x64xf32, #tpu.memory_space<vmem>>, %arg3: memref<1x64xf32, #tpu.memory_space<vmem>>, %arg4: memref<64x160xf32, #tpu.memory_space<vmem>>, %arg5: memref<1x160xf32, #tpu.memory_space<vmem>>, %arg6: memref<8x128xf32, #tpu.memory_space<vmem>>, %arg7: memref<8x128xf32, #tpu.memory_space<vmem>>, %arg8: memref<1x64xf32, #tpu.memory_space<vmem>>, %arg9: memref<64x128xf32, #tpu.memory_space<vmem>>, %arg10: memref<1x128xf32, #tpu.memory_space<vmem>>, %arg11: memref<1x8x8x128xf32, #tpu.memory_space<vmem>>, %arg12: memref<64x8x128xf32, #tpu.memory_space<vmem>>, %arg13: memref<64x8x128xf32, #tpu.memory_space<vmem>>, %arg14: memref<64x8x128xf32, #tpu.memory_space<vmem>>, %arg15: memref<64x8x128xf32, #tpu.memory_space<vmem>>, %arg16: memref<64x64xf32, #tpu.memory_space<vmem>>) attributes {dimension_semantics = [#tpu.dimension_semantics<parallel>], iteration_bounds = array<i64: 2>, scalar_prefetch = 0 : i64, scratch_operands = 5 : i64, tpu.core_type = #tpu.core_type<tc>, window_params = [{transform_indices = @transform_0, window_bounds = array<i64: 1, 8, 8, 32>}, {pipeline_mode = #tpu.pipeline_mode<synchronous>, transform_indices = @transform_1, window_bounds = array<i64: 32, 64>}, {pipeline_mode = #tpu.pipeline_mode<synchronous>, transform_indices = @transform_2, window_bounds = array<i64: 1, 64>}, {pipeline_mode = #tpu.pipeline_mode<synchronous>, transform_indices = @transform_3, window_bounds = array<i64: 64, 160>}, {pipeline_mode = #tpu.pipeline_mode<synchronous>, transform_indices = @transform_4, window_bounds = array<i64: 1, 160>}, {pipeline_mode = #tpu.pipeline_mode<synchronous>, transform_indices = @transform_5, window_bounds = array<i64: 8, 128>}, {pipeline_mode = #tpu.pipeline_mode<synchronous>, transform_indices = @transform_6, window_bounds = array<i64: 8, 128>}, {pipeline_mode = #tpu.pipeline_mode<synchronous>, transform_indices = @transform_7, window_bounds = array<i64: 1, 64>}, {pipeline_mode = #tpu.pipeline_mode<synchronous>, transform_indices = @transform_8, window_bounds = array<i64: 64, 128>}, {pipeline_mode = #tpu.pipeline_mode<synchronous>, transform_indices = @transform_9, window_bounds = array<i64: 1, 128>}, {transform_indices = @transform_10, window_bounds = array<i64: 1, 8, 8, 128>}]} {
    %c0 = arith.constant 0 : index
    %c0_0 = arith.constant 0 : index
    %c0_1 = arith.constant 0 : index
    %c0_2 = arith.constant 0 : index
    %0 = vector.load %arg1[%c0, %c0_0, %c0_1, %c0_2] : memref<1x8x8x32xf32, #tpu.memory_space<vmem>>, vector<1x8x8x32xf32>
    %1 = vector.shape_cast %0 : vector<1x8x8x32xf32> to vector<8x8x32xf32>
    %2 = vector.shape_cast %1 : vector<8x8x32xf32> to vector<64x32xf32>
    %c0_3 = arith.constant 0 : index
    %c0_4 = arith.constant 0 : index
    %3 = vector.load %arg2[%c0_3, %c0_4] : memref<32x64xf32, #tpu.memory_space<vmem>>, vector<32x64xf32>
    %cst = arith.constant dense<0.000000e+00> : vector<64x64xf32>
    %4 = tpu.matmul %2, %3, %cst {dimension_numbers = #tpu.dot_dimension_numbers<[1], [0], [0], [1], [0, 0, 1, 1], [], []>} : vector<64x32xf32>, vector<32x64xf32>, vector<64x64xf32> -> vector<64x64xf32>
    %c0_5 = arith.constant 0 : index
    %c0_6 = arith.constant 0 : index
    %5 = vector.load %arg3[%c0_5, %c0_6] : memref<1x64xf32, #tpu.memory_space<vmem>>, vector<1x64xf32>
    %6 = vector.broadcast %5 : vector<1x64xf32> to vector<64x64xf32>
    %7 = arith.addf %4, %6 : vector<64x64xf32>
    %cst_7 = arith.constant 5.000000e-01 : f32
    %8 = vector.broadcast %cst_7 : f32 to vector<64x64xf32>
    %9 = arith.mulf %8, %7 : vector<64x64xf32>
    %cst_8 = arith.constant 4.471500e-02 : f32
    %10 = vector.broadcast %cst_8 : f32 to vector<64x64xf32>
    %11 = arith.mulf %10, %7 : vector<64x64xf32>
    %12 = arith.mulf %11, %7 : vector<64x64xf32>
    %13 = arith.mulf %12, %7 : vector<64x64xf32>
    %14 = arith.addf %7, %13 : vector<64x64xf32>
    %cst_9 = arith.constant 0.797884583 : f32
    %15 = vector.broadcast %cst_9 : f32 to vector<64x64xf32>
    %16 = arith.mulf %15, %14 : vector<64x64xf32>
    %17 = math.tanh %16 : vector<64x64xf32>
    %cst_10 = arith.constant 1.000000e+00 : f32
    %18 = vector.broadcast %cst_10 : f32 to vector<64x64xf32>
    %19 = arith.addf %18, %17 : vector<64x64xf32>
    %20 = arith.mulf %9, %19 : vector<64x64xf32>
    %c0_11 = arith.constant 0 : index
    %c0_12 = arith.constant 0 : index
    %21 = vector.load %arg4[%c0_11, %c0_12] : memref<64x160xf32, #tpu.memory_space<vmem>>, vector<64x160xf32>
    %cst_13 = arith.constant dense<0.000000e+00> : vector<64x160xf32>
    %22 = tpu.matmul %20, %21, %cst_13 {dimension_numbers = #tpu.dot_dimension_numbers<[1], [0], [0], [1], [0, 0, 1, 1], [], []>} : vector<64x64xf32>, vector<64x160xf32>, vector<64x160xf32> -> vector<64x160xf32>
    %c0_14 = arith.constant 0 : index
    %c0_15 = arith.constant 0 : index
    %23 = vector.load %arg5[%c0_14, %c0_15] : memref<1x160xf32, #tpu.memory_space<vmem>>, vector<1x160xf32>
    %24 = vector.broadcast %23 : vector<1x160xf32> to vector<64x160xf32>
    %25 = arith.addf %22, %24 : vector<64x160xf32>
    %26 = vector.extract_strided_slice %25 {offsets = [0, 0], sizes = [64, 128], strides = [1, 1]} : vector<64x160xf32> to vector<64x128xf32>
    %cst_16 = arith.constant 0.000000e+00 : f32
    %27 = vector.broadcast %cst_16 : f32 to vector<64x128xf32>
    %28 = arith.maximumf %26, %27 : vector<64x128xf32>
    %29 = math.absf %26 : vector<64x128xf32>
    %cst_17 = arith.constant 0.000000e+00 : f32
    %30 = vector.broadcast %cst_17 : f32 to vector<64x128xf32>
    %31 = arith.subf %30, %29 : vector<64x128xf32>
    %32 = math.exp %31 : vector<64x128xf32>
    %cst_18 = arith.constant 1.000000e+00 : f32
    %33 = vector.broadcast %cst_18 : f32 to vector<64x128xf32>
    %34 = arith.addf %33, %32 : vector<64x128xf32>
    %35 = math.log %34 : vector<64x128xf32>
    %36 = arith.addf %28, %35 : vector<64x128xf32>
    %37 = vector.extract_strided_slice %36 {offsets = [0, 0], sizes = [64, 64], strides = [1, 1]} : vector<64x128xf32> to vector<64x64xf32>
    %38 = vector.extract_strided_slice %36 {offsets = [0, 64], sizes = [64, 64], strides = [1, 1]} : vector<64x128xf32> to vector<64x64xf32>
    %39 = vector.extract_strided_slice %25 {offsets = [0, 128], sizes = [64, 32], strides = [1, 1]} : vector<64x160xf32> to vector<64x32xf32>
    %40 = vector.extract_strided_slice %39 {offsets = [0, 0], sizes = [64, 16], strides = [1, 1]} : vector<64x32xf32> to vector<64x16xf32>
    %41 = vector.extract_strided_slice %39 {offsets = [0, 16], sizes = [64, 16], strides = [1, 1]} : vector<64x32xf32> to vector<64x16xf32>
    %42 = tpu.concatenate %37, %37 in 1 : vector<64x64xf32>, vector<64x64xf32> -> vector<64x128xf32>
    %43 = tpu.concatenate %38, %38 in 1 : vector<64x64xf32>, vector<64x64xf32> -> vector<64x128xf32>
    %44 = vector.shape_cast %42 : vector<64x128xf32> to vector<64x1x128xf32>
    %c0_19 = arith.constant 0 : index
    %c0_20 = arith.constant 0 : index
    %45 = vector.load %arg6[%c0_19, %c0_20] : memref<8x128xf32, #tpu.memory_space<vmem>>, vector<8x128xf32>
    %46 = vector.shape_cast %45 : vector<8x128xf32> to vector<1x8x128xf32>
    %47 = vector.broadcast %44 : vector<64x1x128xf32> to vector<64x8x128xf32>
    %48 = vector.broadcast %46 : vector<1x8x128xf32> to vector<64x8x128xf32>
    %49 = arith.mulf %47, %48 : vector<64x8x128xf32>
    %50 = math.exp %49 : vector<64x8x128xf32>
    %c0_21 = arith.constant 0 : index
    %c0_22 = arith.constant 0 : index
    %c0_23 = arith.constant 0 : index
    %51 = vector.load %arg12[%c0_21, %c0_22, %c0_23] : memref<64x8x128xf32, #tpu.memory_space<vmem>>, vector<64x8x128xf32>
    tpu.vector_store %arg12[%c0_21, %c0_22, %c0_23], %50 {strides = array<i32>} : memref<64x8x128xf32, #tpu.memory_space<vmem>>, vector<64x8x128xf32>,
    %52 = vector.shape_cast %43 : vector<64x128xf32> to vector<64x1x128xf32>
    %c0_24 = arith.constant 0 : index
    %c0_25 = arith.constant 0 : index
    %53 = vector.load %arg7[%c0_24, %c0_25] : memref<8x128xf32, #tpu.memory_space<vmem>>, vector<8x128xf32>
    %54 = vector.shape_cast %53 : vector<8x128xf32> to vector<1x8x128xf32>
    %55 = vector.broadcast %52 : vector<64x1x128xf32> to vector<64x8x128xf32>
    %56 = vector.broadcast %54 : vector<1x8x128xf32> to vector<64x8x128xf32>
    %57 = arith.mulf %55, %56 : vector<64x8x128xf32>
    %58 = math.exp %57 : vector<64x8x128xf32>
    %c0_26 = arith.constant 0 : index
    %c0_27 = arith.constant 0 : index
    %c0_28 = arith.constant 0 : index
    %59 = vector.load %arg13[%c0_26, %c0_27, %c0_28] : memref<64x8x128xf32, #tpu.memory_space<vmem>>, vector<64x8x128xf32>
    tpu.vector_store %arg13[%c0_26, %c0_27, %c0_28], %58 {strides = array<i32>} : memref<64x8x128xf32, #tpu.memory_space<vmem>>, vector<64x8x128xf32>,
    %60 = arith.addf %37, %38 : vector<64x64xf32>
    %61 = arith.mulf %60, %20 : vector<64x64xf32>
    %62 = vector.shape_cast %61 : vector<64x64xf32> to vector<64x1x64xf32>
    %63 = vector.extract_strided_slice %40 {offsets = [0, 0], sizes = [64, 8], strides = [1, 1]} : vector<64x16xf32> to vector<64x8xf32>
    %64 = vector.shape_cast %63 : vector<64x8xf32> to vector<64x8x1xf32>
    %65 = vector.broadcast %62 : vector<64x1x64xf32> to vector<64x8x64xf32>
    %66 = vector.broadcast %64 : vector<64x8x1xf32> to vector<64x8x64xf32>
    %67 = arith.mulf %65, %66 : vector<64x8x64xf32>
    %68 = vector.shape_cast %61 : vector<64x64xf32> to vector<64x1x64xf32>
    %69 = vector.extract_strided_slice %40 {offsets = [0, 8], sizes = [64, 8], strides = [1, 1]} : vector<64x16xf32> to vector<64x8xf32>
    %70 = vector.shape_cast %69 : vector<64x8xf32> to vector<64x8x1xf32>
    %71 = vector.broadcast %68 : vector<64x1x64xf32> to vector<64x8x64xf32>
    %72 = vector.broadcast %70 : vector<64x8x1xf32> to vector<64x8x64xf32>
    %73 = arith.mulf %71, %72 : vector<64x8x64xf32>
    %74 = tpu.concatenate %67, %73 in 2 : vector<64x8x64xf32>, vector<64x8x64xf32> -> vector<64x8x128xf32>
    %c0_29 = arith.constant 0 : index
    %c0_30 = arith.constant 0 : index
    %c0_31 = arith.constant 0 : index
    %75 = vector.load %arg14[%c0_29, %c0_30, %c0_31] : memref<64x8x128xf32, #tpu.memory_space<vmem>>, vector<64x8x128xf32>
    tpu.vector_store %arg14[%c0_29, %c0_30, %c0_31], %74 {strides = array<i32>} : memref<64x8x128xf32, #tpu.memory_space<vmem>>, vector<64x8x128xf32>,
    %76 = vector.extract_strided_slice %41 {offsets = [0, 0], sizes = [64, 8], strides = [1, 1]} : vector<64x16xf32> to vector<64x8xf32>
    %77 = vector.shape_cast %76 : vector<64x8xf32> to vector<64x8x1xf32>
    %78 = vector.shape_cast %77 : vector<64x8x1xf32> to vector<64x8x1xf32>
    %79 = vector.broadcast %78 : vector<64x8x1xf32> to vector<64x8x64xf32>
    %80 = vector.extract_strided_slice %41 {offsets = [0, 8], sizes = [64, 8], strides = [1, 1]} : vector<64x16xf32> to vector<64x8xf32>
    %81 = vector.shape_cast %80 : vector<64x8xf32> to vector<64x8x1xf32>
    %82 = vector.shape_cast %81 : vector<64x8x1xf32> to vector<64x8x1xf32>
    %83 = vector.broadcast %82 : vector<64x8x1xf32> to vector<64x8x64xf32>
    %84 = tpu.concatenate %79, %83 in 2 : vector<64x8x64xf32>, vector<64x8x64xf32> -> vector<64x8x128xf32>
    %c0_32 = arith.constant 0 : index
    %c0_33 = arith.constant 0 : index
    %c0_34 = arith.constant 0 : index
    %85 = vector.load %arg15[%c0_32, %c0_33, %c0_34] : memref<64x8x128xf32, #tpu.memory_space<vmem>>, vector<64x8x128xf32>
    tpu.vector_store %arg15[%c0_32, %c0_33, %c0_34], %84 {strides = array<i32>} : memref<64x8x128xf32, #tpu.memory_space<vmem>>, vector<64x8x128xf32>,
    %cst_35 = arith.constant 0.000000e+00 : f32
    %86 = vector.broadcast %cst_35 : f32 to vector<8x8x128xf32>
    %c0_i32 = arith.constant 0 : i32
    %c8_i32 = arith.constant 8 : i32
    %87 = arith.addi %c0_i32, %c8_i32 : i32
    %c1_i32 = arith.constant 1 : i32
    %88 = scf.for %arg17 = %c0_i32 to %87 step %c1_i32 iter_args(%arg18 = %86) -> (vector<8x8x128xf32>)  : i32 {
      %c8_i32_54 = arith.constant 8 : i32
      %114 = arith.muli %arg17, %c8_i32_54 : i32
      %115 = tpu.assume_multiple %114, 8 : i32
      %116 = arith.index_cast %115 : i32 to index
      %c0_55 = arith.constant 0 : index
      %c0_56 = arith.constant 0 : index
      %117 = vector.load %arg12[%116, %c0_55, %c0_56] : memref<64x8x128xf32, #tpu.memory_space<vmem>>, vector<8x8x128xf32>
      %118 = arith.index_cast %115 : i32 to index
      %c0_57 = arith.constant 0 : index
      %c0_58 = arith.constant 0 : index
      %119 = vector.load %arg13[%118, %c0_57, %c0_58] : memref<64x8x128xf32, #tpu.memory_space<vmem>>, vector<8x8x128xf32>
      %120 = arith.index_cast %115 : i32 to index
      %c0_59 = arith.constant 0 : index
      %c0_60 = arith.constant 0 : index
      %121 = vector.load %arg14[%120, %c0_59, %c0_60] : memref<64x8x128xf32, #tpu.memory_space<vmem>>, vector<8x8x128xf32>
      %122 = arith.mulf %117, %arg18 : vector<8x8x128xf32>
      %123 = arith.addf %122, %121 : vector<8x8x128xf32>
      %cst_61 = arith.constant 0.000000e+00 : f32
      %124 = vector.broadcast %cst_61 : f32 to vector<8x128xf32>
      %125 = vector.extract_strided_slice %119 {offsets = [0, 0, 0], sizes = [1, 8, 128], strides = [1, 1, 1]} : vector<8x8x128xf32> to vector<1x8x128xf32>
      %126 = vector.shape_cast %125 : vector<1x8x128xf32> to vector<8x128xf32>
      %127 = arith.mulf %126, %124 : vector<8x128xf32>
      %128 = vector.extract_strided_slice %123 {offsets = [0, 0, 0], sizes = [1, 8, 128], strides = [1, 1, 1]} : vector<8x8x128xf32> to vector<1x8x128xf32>
      %129 = vector.shape_cast %128 : vector<1x8x128xf32> to vector<8x128xf32>
      %130 = arith.addf %127, %129 : vector<8x128xf32>
      %131 = vector.extract_strided_slice %119 {offsets = [1, 0, 0], sizes = [1, 8, 128], strides = [1, 1, 1]} : vector<8x8x128xf32> to vector<1x8x128xf32>
      %132 = vector.shape_cast %131 : vector<1x8x128xf32> to vector<8x128xf32>
      %133 = arith.mulf %132, %130 : vector<8x128xf32>
      %134 = vector.extract_strided_slice %123 {offsets = [1, 0, 0], sizes = [1, 8, 128], strides = [1, 1, 1]} : vector<8x8x128xf32> to vector<1x8x128xf32>
      %135 = vector.shape_cast %134 : vector<1x8x128xf32> to vector<8x128xf32>
      %136 = arith.addf %133, %135 : vector<8x128xf32>
      %137 = vector.extract_strided_slice %119 {offsets = [2, 0, 0], sizes = [1, 8, 128], strides = [1, 1, 1]} : vector<8x8x128xf32> to vector<1x8x128xf32>
      %138 = vector.shape_cast %137 : vector<1x8x128xf32> to vector<8x128xf32>
      %139 = arith.mulf %138, %136 : vector<8x128xf32>
      %140 = vector.extract_strided_slice %123 {offsets = [2, 0, 0], sizes = [1, 8, 128], strides = [1, 1, 1]} : vector<8x8x128xf32> to vector<1x8x128xf32>
      %141 = vector.shape_cast %140 : vector<1x8x128xf32> to vector<8x128xf32>
      %142 = arith.addf %139, %141 : vector<8x128xf32>
      %143 = vector.extract_strided_slice %119 {offsets = [3, 0, 0], sizes = [1, 8, 128], strides = [1, 1, 1]} : vector<8x8x128xf32> to vector<1x8x128xf32>
      %144 = vector.shape_cast %143 : vector<1x8x128xf32> to vector<8x128xf32>
      %145 = arith.mulf %144, %142 : vector<8x128xf32>
      %146 = vector.extract_strided_slice %123 {offsets = [3, 0, 0], sizes = [1, 8, 128], strides = [1, 1, 1]} : vector<8x8x128xf32> to vector<1x8x128xf32>
      %147 = vector.shape_cast %146 : vector<1x8x128xf32> to vector<8x128xf32>
      %148 = arith.addf %145, %147 : vector<8x128xf32>
      %149 = vector.extract_strided_slice %119 {offsets = [4, 0, 0], sizes = [1, 8, 128], strides = [1, 1, 1]} : vector<8x8x128xf32> to vector<1x8x128xf32>
      %150 = vector.shape_cast %149 : vector<1x8x128xf32> to vector<8x128xf32>
      %151 = arith.mulf %150, %148 : vector<8x128xf32>
      %152 = vector.extract_strided_slice %123 {offsets = [4, 0, 0], sizes = [1, 8, 128], strides = [1, 1, 1]} : vector<8x8x128xf32> to vector<1x8x128xf32>
      %153 = vector.shape_cast %152 : vector<1x8x128xf32> to vector<8x128xf32>
      %154 = arith.addf %151, %153 : vector<8x128xf32>
      %155 = vector.extract_strided_slice %119 {offsets = [5, 0, 0], sizes = [1, 8, 128], strides = [1, 1, 1]} : vector<8x8x128xf32> to vector<1x8x128xf32>
      %156 = vector.shape_cast %155 : vector<1x8x128xf32> to vector<8x128xf32>
      %157 = arith.mulf %156, %154 : vector<8x128xf32>
      %158 = vector.extract_strided_slice %123 {offsets = [5, 0, 0], sizes = [1, 8, 128], strides = [1, 1, 1]} : vector<8x8x128xf32> to vector<1x8x128xf32>
      %159 = vector.shape_cast %158 : vector<1x8x128xf32> to vector<8x128xf32>
      %160 = arith.addf %157, %159 : vector<8x128xf32>
      %161 = vector.extract_strided_slice %119 {offsets = [6, 0, 0], sizes = [1, 8, 128], strides = [1, 1, 1]} : vector<8x8x128xf32> to vector<1x8x128xf32>
      %162 = vector.shape_cast %161 : vector<1x8x128xf32> to vector<8x128xf32>
      %163 = arith.mulf %162, %160 : vector<8x128xf32>
      %164 = vector.extract_strided_slice %123 {offsets = [6, 0, 0], sizes = [1, 8, 128], strides = [1, 1, 1]} : vector<8x8x128xf32> to vector<1x8x128xf32>
      %165 = vector.shape_cast %164 : vector<1x8x128xf32> to vector<8x128xf32>
      %166 = arith.addf %163, %165 : vector<8x128xf32>
      %167 = vector.extract_strided_slice %119 {offsets = [7, 0, 0], sizes = [1, 8, 128], strides = [1, 1, 1]} : vector<8x8x128xf32> to vector<1x8x128xf32>
      %168 = vector.shape_cast %167 : vector<1x8x128xf32> to vector<8x128xf32>
      %169 = arith.mulf %168, %166 : vector<8x128xf32>
      %170 = vector.extract_strided_slice %123 {offsets = [7, 0, 0], sizes = [1, 8, 128], strides = [1, 1, 1]} : vector<8x8x128xf32> to vector<1x8x128xf32>
      %171 = vector.shape_cast %170 : vector<1x8x128xf32> to vector<8x128xf32>
      %172 = arith.addf %169, %171 : vector<8x128xf32>
      %173 = vector.shape_cast %130 : vector<8x128xf32> to vector<1x8x128xf32>
      %174 = vector.shape_cast %136 : vector<8x128xf32> to vector<1x8x128xf32>
      %175 = vector.shape_cast %142 : vector<8x128xf32> to vector<1x8x128xf32>
      %176 = vector.shape_cast %148 : vector<8x128xf32> to vector<1x8x128xf32>
      %177 = vector.shape_cast %154 : vector<8x128xf32> to vector<1x8x128xf32>
      %178 = vector.shape_cast %160 : vector<8x128xf32> to vector<1x8x128xf32>
      %179 = vector.shape_cast %166 : vector<8x128xf32> to vector<1x8x128xf32>
      %180 = vector.shape_cast %172 : vector<8x128xf32> to vector<1x8x128xf32>
      %181 = tpu.concatenate %173, %174, %175, %176, %177, %178, %179, %180 in 0 : vector<1x8x128xf32>, vector<1x8x128xf32>, vector<1x8x128xf32>, vector<1x8x128xf32>, vector<1x8x128xf32>, vector<1x8x128xf32>, vector<1x8x128xf32>, vector<1x8x128xf32> -> vector<8x8x128xf32>
      %182 = arith.index_cast %115 : i32 to index
      %c0_62 = arith.constant 0 : index
      %c0_63 = arith.constant 0 : index
      %183 = vector.load %arg15[%182, %c0_62, %c0_63] : memref<64x8x128xf32, #tpu.memory_space<vmem>>, vector<8x8x128xf32>
      %184 = arith.mulf %181, %183 : vector<8x8x128xf32>
      %cst_64 = arith.constant dense<0.000000e+00> : vector<8x128xf32>
      %185 = vector.multi_reduction <add>, %184, %cst_64 [1] : vector<8x8x128xf32> to vector<8x128xf32>
      %c64_i32 = arith.constant 64 : i32
      %186 = tpu.dynamic_rotate %185 by %c64_i32 dim 1 : vector<8x128xf32>, i32 -> vector<8x128xf32>
      %187 = arith.addf %185, %186 : vector<8x128xf32>
      %188 = vector.extract_strided_slice %187 {offsets = [0, 0], sizes = [8, 64], strides = [1, 1]} : vector<8x128xf32> to vector<8x64xf32>
      %189 = arith.index_cast %115 : i32 to index
      %c0_65 = arith.constant 0 : index
      %190 = vector.load %arg16[%189, %c0_65] : memref<64x64xf32, #tpu.memory_space<vmem>>, vector<8x64xf32>
      tpu.vector_store %arg16[%189, %c0_65], %188 {strides = array<i32>} : memref<64x64xf32, #tpu.memory_space<vmem>>, vector<8x64xf32>,
      scf.yield %181 : vector<8x8x128xf32>
    }
    %c8_i32_36 = arith.constant 8 : i32
    %c0_37 = arith.constant 0 : index
    %c0_38 = arith.constant 0 : index
    %89 = vector.load %arg16[%c0_37, %c0_38] : memref<64x64xf32, #tpu.memory_space<vmem>>, vector<64x64xf32>
    %c0_39 = arith.constant 0 : index
    %c0_40 = arith.constant 0 : index
    %90 = vector.load %arg8[%c0_39, %c0_40] : memref<1x64xf32, #tpu.memory_space<vmem>>, vector<1x64xf32>
    %91 = vector.broadcast %90 : vector<1x64xf32> to vector<64x64xf32>
    %92 = arith.mulf %20, %91 : vector<64x64xf32>
    %93 = arith.addf %89, %92 : vector<64x64xf32>
    %cst_41 = arith.constant 5.000000e-01 : f32
    %94 = vector.broadcast %cst_41 : f32 to vector<64x64xf32>
    %95 = arith.mulf %94, %93 : vector<64x64xf32>
    %cst_42 = arith.constant 4.471500e-02 : f32
    %96 = vector.broadcast %cst_42 : f32 to vector<64x64xf32>
    %97 = arith.mulf %96, %93 : vector<64x64xf32>
    %98 = arith.mulf %97, %93 : vector<64x64xf32>
    %99 = arith.mulf %98, %93 : vector<64x64xf32>
    %100 = arith.addf %93, %99 : vector<64x64xf32>
    %cst_43 = arith.constant 0.797884583 : f32
    %101 = vector.broadcast %cst_43 : f32 to vector<64x64xf32>
    %102 = arith.mulf %101, %100 : vector<64x64xf32>
    %103 = math.tanh %102 : vector<64x64xf32>
    %cst_44 = arith.constant 1.000000e+00 : f32
    %104 = vector.broadcast %cst_44 : f32 to vector<64x64xf32>
    %105 = arith.addf %104, %103 : vector<64x64xf32>
    %106 = arith.mulf %95, %105 : vector<64x64xf32>
    %c0_45 = arith.constant 0 : index
    %c0_46 = arith.constant 0 : index
    %107 = vector.load %arg9[%c0_45, %c0_46] : memref<64x128xf32, #tpu.memory_space<vmem>>, vector<64x128xf32>
    %cst_47 = arith.constant dense<0.000000e+00> : vector<64x128xf32>
    %108 = tpu.matmul %106, %107, %cst_47 {dimension_numbers = #tpu.dot_dimension_numbers<[1], [0], [0], [1], [0, 0, 1, 1], [], []>} : vector<64x64xf32>, vector<64x128xf32>, vector<64x128xf32> -> vector<64x128xf32>
    %c0_48 = arith.constant 0 : index
    %c0_49 = arith.constant 0 : index
    %109 = vector.load %arg10[%c0_48, %c0_49] : memref<1x128xf32, #tpu.memory_space<vmem>>, vector<1x128xf32>
    %110 = vector.broadcast %109 : vector<1x128xf32> to vector<64x128xf32>
    %111 = arith.addf %108, %110 : vector<64x128xf32>
    %112 = vector.shape_cast %111 : vector<64x128xf32> to vector<1x8x8x128xf32>
    %c0_50 = arith.constant 0 : index
    %c0_51 = arith.constant 0 : index
    %c0_52 = arith.constant 0 : index
    %c0_53 = arith.constant 0 : index
    %113 = vector.load %arg11[%c0_50, %c0_51, %c0_52, %c0_53] : memref<1x8x8x128xf32, #tpu.memory_space<vmem>>, vector<1x8x8x128xf32>
    tpu.vector_store %arg11[%c0_50, %c0_51, %c0_52, %c0_53], %112 {strides = array<i32>} : memref<1x8x8x128xf32, #tpu.memory_space<vmem>>, vector<1x8x8x128xf32>,
    return
  }
  func.func @transform_0(%arg0: i32) -> (i32, i32, i32, i32) {
    %c0_i32 = arith.constant 0 : i32
    %c0_i32_0 = arith.constant 0 : i32
    %c0_i32_1 = arith.constant 0 : i32
    %c0_i32_2 = arith.constant 0 : i32
    return %arg0, %c0_i32, %c0_i32_0, %c0_i32_1 : i32, i32, i32, i32
  }
  func.func @transform_1(%arg0: i32) -> (i32, i32) {
    %c0_i32 = arith.constant 0 : i32
    %c0_i32_0 = arith.constant 0 : i32
    %c0_i32_1 = arith.constant 0 : i32
    return %c0_i32, %c0_i32_0 : i32, i32
  }
  func.func @transform_2(%arg0: i32) -> (i32, i32) {
    %c0_i32 = arith.constant 0 : i32
    %c0_i32_0 = arith.constant 0 : i32
    %c0_i32_1 = arith.constant 0 : i32
    return %c0_i32, %c0_i32_0 : i32, i32
  }
  func.func @transform_3(%arg0: i32) -> (i32, i32) {
    %c0_i32 = arith.constant 0 : i32
    %c0_i32_0 = arith.constant 0 : i32
    %c0_i32_1 = arith.constant 0 : i32
    return %c0_i32, %c0_i32_0 : i32, i32
  }
  func.func @transform_4(%arg0: i32) -> (i32, i32) {
    %c0_i32 = arith.constant 0 : i32
    %c0_i32_0 = arith.constant 0 : i32
    %c0_i32_1 = arith.constant 0 : i32
    return %c0_i32, %c0_i32_0 : i32, i32
  }
  func.func @transform_5(%arg0: i32) -> (i32, i32) {
    %c0_i32 = arith.constant 0 : i32
    %c0_i32_0 = arith.constant 0 : i32
    %c0_i32_1 = arith.constant 0 : i32
    return %c0_i32, %c0_i32_0 : i32, i32
  }
  func.func @transform_6(%arg0: i32) -> (i32, i32) {
    %c0_i32 = arith.constant 0 : i32
    %c0_i32_0 = arith.constant 0 : i32
    %c0_i32_1 = arith.constant 0 : i32
    return %c0_i32, %c0_i32_0 : i32, i32
  }
  func.func @transform_7(%arg0: i32) -> (i32, i32) {
    %c0_i32 = arith.constant 0 : i32
    %c0_i32_0 = arith.constant 0 : i32
    %c0_i32_1 = arith.constant 0 : i32
    return %c0_i32, %c0_i32_0 : i32, i32
  }
  func.func @transform_8(%arg0: i32) -> (i32, i32) {
    %c0_i32 = arith.constant 0 : i32
    %c0_i32_0 = arith.constant 0 : i32
    %c0_i32_1 = arith.constant 0 : i32
    return %c0_i32, %c0_i32_0 : i32, i32
  }
  func.func @transform_9(%arg0: i32) -> (i32, i32) {
    %c0_i32 = arith.constant 0 : i32
    %c0_i32_0 = arith.constant 0 : i32
    %c0_i32_1 = arith.constant 0 : i32
    return %c0_i32, %c0_i32_0 : i32, i32
  }
  func.func @transform_10(%arg0: i32) -> (i32, i32, i32, i32) {
    %c0_i32 = arith.constant 0 : i32
    %c0_i32_0 = arith.constant 0 : i32
    %c0_i32_1 = arith.constant 0 : i32
    %c0_i32_2 = arith.constant 0 : i32
    return %arg0, %c0_i32, %c0_i32_0, %c0_i32_1 : i32, i32, i32, i32
  }
}

</mosaic_0001>

<llo_original>
// kernel: tpu_custom_call.1
$region0: #{tpu_custom_call.1}
  #allocation0 [shape = 'u32[]', space=smem, size = 0x4, offset = 0x4, fixed_abs, tag = 'smem constant byte address 0x4 - core index']
  #allocation1 [shape = 'u32[144,128]{1,0:T(1,128)}', space=vmem, size = 0x12000, scoped, tag = 'internal scratch']
  #allocation2 [shape = 'f32[64,8,128]{2,1,0:T(8,128)}', space=vmem, size = 0x40000, scoped, tag = 'scratch operand']
  #allocation3 [shape = 'f32[64,8,128]{2,1,0:T(8,128)}', space=vmem, size = 0x40000, scoped, tag = 'scratch operand']
  #allocation4 [shape = 'f32[64,8,128]{2,1,0:T(8,128)}', space=vmem, size = 0x40000, scoped, tag = 'scratch operand']
  #allocation5 [shape = 'f32[64,8,128]{2,1,0:T(8,128)}', space=vmem, size = 0x40000, scoped, tag = 'scratch operand']
  #allocation6 [shape = 'f32[64,64]{1,0:T(8,128)}', space=vmem, size = 0x8000, scoped, tag = 'scratch operand']
  %s0 = inlined_call_operand.hbm [shape: f32[2,8,8,32], index: 0, kind: input, shape index: {}]
  %s1 = inlined_call_operand.hbm [shape: f32[32,64], index: 1, kind: input, shape index: {}]
  %s2 = inlined_call_operand.vmem [shape: f32[1,64], index: 2, kind: input, shape index: {}]
  %s3 = inlined_call_operand.hbm [shape: f32[64,160], index: 3, kind: input, shape index: {}]
  %s4 = inlined_call_operand.hbm [shape: f32[1,160], index: 4, kind: input, shape index: {}]
  %s5 = inlined_call_operand.vmem [shape: f32[8,128], index: 5, kind: input, shape index: {}]
  %s6 = inlined_call_operand.hbm [shape: f32[8,128], index: 6, kind: input, shape index: {}]
  %s7 = inlined_call_operand.vmem [shape: f32[1,64], index: 7, kind: input, shape index: {}]
  %s8 = inlined_call_operand.hbm [shape: f32[64,128], index: 8, kind: input, shape index: {}]
  %s9 = inlined_call_operand.vmem [shape: f32[1,128], index: 9, kind: input, shape index: {}]
  %s10 = inlined_call_operand.hbm [shape: f32[2,8,8,128], index: 10, kind: output, shape index: {}]
  %s11 = sld [smem:[#allocation0]]
  $region104: #{tpu_custom_call.1} parent=0
    _
  %s13 = ssub.s32 1, %s11
  %s14 = scalar_select 0, %s13, %s11
  $region1: #{tpu_custom_call.1} parent=0
    #allocation7 [shape = 'u8[65536]{0}', space=vmem, size = 0x10000, scoped, tag = 'input window, operand 0']
    #allocation8 [shape = 's32[2]{0}', space=sflag, size = 0x8, scoped, tag = 'scoped memory for tpu_custom_call.1']
    #allocation9 [shape = 's32[2]{0}', space=sflag, size = 0x8, scoped, tag = 'scoped memory for tpu_custom_call.1']
    #allocation10 [shape = 'u8[16384]{0}', space=vmem, size = 0x4000, scoped, tag = 'input window, operand 1, single buffered']
    #allocation11 [shape = 's32[1]{0}', space=sflag, size = 0x4, scoped, tag = 'scoped memory for tpu_custom_call.1']
    #allocation12 [shape = 'u8[65536]{0}', space=vmem, size = 0x10000, scoped, tag = 'input window, operand 3, single buffered']
    #allocation13 [shape = 'u8[1024]{0}', space=vmem, size = 0x400, scoped, tag = 'input window, operand 4, single buffered']
    #allocation14 [shape = 's32[1]{0}', space=sflag, size = 0x4, scoped, tag = 'scoped memory for tpu_custom_call.1']
    #allocation15 [shape = 'u8[4096]{0}', space=vmem, size = 0x1000, scoped, tag = 'input window, operand 6, single buffered']
    #allocation16 [shape = 'u8[32768]{0}', space=vmem, size = 0x8000, scoped, tag = 'input window, operand 8, single buffered']
    #allocation17 [shape = 's32[1]{0}', space=sflag, size = 0x4, scoped, tag = 'scoped memory for tpu_custom_call.1']
    #allocation18 [shape = 'u8[65536]{0}', space=vmem, size = 0x10000, scoped, tag = 'output window, operand 0']
    %15 = vsyncpa [#allocation8], 0
    %s16 = scalar_lea.sflag [#allocation8], 1
    %17 = vsyncpa %s16, 0
    %18 = vsyncpa [#allocation11], 0
    %19 = vsyncpa [#allocation14], 0
    %20 = vsyncpa [#allocation17], 0
    %21 = vsyncpa [#allocation9], 0
    %s22 = scalar_lea.sflag [#allocation9], 1
    %23 = vsyncpa %s22, 0
    loop: start=0, step=1, limit=4
    $region2: #{tpu_custom_call.1} parent=1 // loop_pre_header
      _
    $region3: #{tpu_custom_call.1} parent=1 // loop_header
      %s25 = sphi 0, %s29
      %p26 = scmp.ge.s32.totalorder %s25, 4
      %s35 = sphi 0, %s37
      %s38 = sphi 0, %s35
      %s39 = sphi 0, %s38
      %s55 = sphi 0, %s39
      %s59 = sphi 0, %s59
      %s61 = sphi 0, %s59
      %s62 = sphi 0, %s61
      %s76 = sphi 0, %s62
      %s80 = sphi 0, %s80
      %s82 = sphi 0, %s80
      %s83 = sphi 0, %s82
      %s97 = sphi 0, %s83
      %s101 = sphi 0, %s101
      %s103 = sphi 0, %s101
      %s104 = sphi 0, %s103
      %s118 = sphi 0, %s104
      %s122 = sphi 0, %s122
      %s124 = sphi 0, %s122
      %s125 = sphi 0, %s124
      %s139 = sphi 0, %s125
      %s143 = sphi 0, %s143
      %s145 = sphi 0, %s143
      %s146 = sphi 0, %s145
      %s160 = sphi 0, %s146
      %s164 = sphi 0, %s164
      %s166 = sphi 0, %s164
      %s167 = sphi 0, %s166
      %s181 = sphi 0, %s167
      %s185 = sphi 0, %s185
      %s187 = sphi 0, %s185
      %s188 = sphi 0, %s187
      %s202 = sphi 0, %s188
      %s206 = sphi 0, %s206
      %s208 = sphi 0, %s206
      %s209 = sphi 0, %s208
      %s223 = sphi 0, %s209
      %s227 = sphi 0, %s227
      %s229 = sphi 0, %s227
      %s230 = sphi 0, %s229
      %s244 = sphi 0, %s230
      %s250 = sphi 0, %s252
      %s253 = sphi 0, %s250
      %s254 = sphi 0, %s253
      %s270 = sphi 0, %s254
    $region4: #{tpu_custom_call.1} parent=1 // loop_header_branch
      %28 = sbr.rel (%p26) target = $region8
    $region5: #{tpu_custom_call.1} parent=1 // loop_body
      %s30 = ssub.s32 %s25, 1
      %s31 = ssub.s32 %s25, 2
      %s32 = sadd.s32 %s25, 1
      %s33 = ssub.s32 %s25, %s32
      %p34 = scmp.eq.s32.totalorder %s33, 0
      %s36 = sadd.s32 %s35, 1
      %s37 = scalar_select %p34, %s35, %s36
      %p40 = pneg %p34
      %p41 = scmp.eq.s32.totalorder %s25, 1
      %p42 = por %p40, %p41
      %p43 = scmp.ne.s32.totalorder %s35, %s38
      %p44 = scmp.eq.s32.totalorder %s25, 0
      %p45 = por %p43, %p44
      %p46 = scmp.ne.s32.totalorder %s35, %s38
      %p47 = scmp.eq.s32.totalorder %s30, 1
      %p48 = por %p46, %p47
      %p49 = scmp.ne.s32.totalorder %s38, %s39
      %p50 = scmp.eq.s32.totalorder %s30, 0
      %p51 = por %p49, %p50
      %p52 = scmp.ne.s32.totalorder %s38, %s39
      %p53 = scmp.eq.s32.totalorder %s31, 1
      %p54 = por %p52, %p53
      %p56 = scmp.ne.s32.totalorder %s39, %s55
      %p57 = scmp.eq.s32.totalorder %s31, 0
      %p58 = por %p56, %p57
      %s60 = sadd.s32 %s59, 1
      %p63 = scmp.eq.s32.totalorder %s25, 1
      %p64 = scmp.ne.s32.totalorder %s59, %s61
      %p65 = scmp.eq.s32.totalorder %s25, 0
      %p66 = por %p64, %p65
      %p67 = scmp.ne.s32.totalorder %s59, %s61
      %p68 = scmp.eq.s32.totalorder %s30, 1
      %p69 = por %p67, %p68
      %p70 = scmp.ne.s32.totalorder %s61, %s62
      %p71 = scmp.eq.s32.totalorder %s30, 0
      %p72 = por %p70, %p71
      %p73 = scmp.ne.s32.totalorder %s61, %s62
      %p74 = scmp.eq.s32.totalorder %s31, 1
      %p75 = por %p73, %p74
      %p77 = scmp.ne.s32.totalorder %s62, %s76
      %p78 = scmp.eq.s32.totalorder %s31, 0
      %p79 = por %p77, %p78
      %s81 = sadd.s32 %s80, 1
      %p84 = scmp.eq.s32.totalorder %s25, 1
      %p85 = scmp.ne.s32.totalorder %s80, %s82
      %p86 = scmp.eq.s32.totalorder %s25, 0
      %p87 = por %p85, %p86
      %p88 = scmp.ne.s32.totalorder %s80, %s82
      %p89 = scmp.eq.s32.totalorder %s30, 1
      %p90 = por %p88, %p89
      %p91 = scmp.ne.s32.totalorder %s82, %s83
      %p92 = scmp.eq.s32.totalorder %s30, 0
      %p93 = por %p91, %p92
      %p94 = scmp.ne.s32.totalorder %s82, %s83
      %p95 = scmp.eq.s32.totalorder %s31, 1
      %p96 = por %p94, %p95
      %p98 = scmp.ne.s32.totalorder %s83, %s97
      %p99 = scmp.eq.s32.totalorder %s31, 0
      %p100 = por %p98, %p99
      %s102 = sadd.s32 %s101, 1
      %p105 = scmp.eq.s32.totalorder %s25, 1
      %p106 = scmp.ne.s32.totalorder %s101, %s103
      %p107 = scmp.eq.s32.totalorder %s25, 0
      %p108 = por %p106, %p107
      %p109 = scmp.ne.s32.totalorder %s101, %s103
      %p110 = scmp.eq.s32.totalorder %s30, 1
      %p111 = por %p109, %p110
      %p112 = scmp.ne.s32.totalorder %s103, %s104
      %p113 = scmp.eq.s32.totalorder %s30, 0
      %p114 = por %p112, %p113
      %p115 = scmp.ne.s32.totalorder %s103, %s104
      %p116 = scmp.eq.s32.totalorder %s31, 1
      %p117 = por %p115, %p116
      %p119 = scmp.ne.s32.totalorder %s104, %s118
      %p120 = scmp.eq.s32.totalorder %s31, 0
      %p121 = por %p119, %p120
      %s123 = sadd.s32 %s122, 1
      %p126 = scmp.eq.s32.totalorder %s25, 1
      %p127 = scmp.ne.s32.totalorder %s122, %s124
      %p128 = scmp.eq.s32.totalorder %s25, 0
      %p129 = por %p127, %p128
      %p130 = scmp.ne.s32.totalorder %s122, %s124
      %p131 = scmp.eq.s32.totalorder %s30, 1
      %p132 = por %p130, %p131
      %p133 = scmp.ne.s32.totalorder %s124, %s125
      %p134 = scmp.eq.s32.totalorder %s30, 0
      %p135 = por %p133, %p134
      %p136 = scmp.ne.s32.totalorder %s124, %s125
      %p137 = scmp.eq.s32.totalorder %s31, 1
      %p138 = por %p136, %p137
      %p140 = scmp.ne.s32.totalorder %s125, %s139
      %p141 = scmp.eq.s32.totalorder %s31, 0
      %p142 = por %p140, %p141
      %s144 = sadd.s32 %s143, 1
      %p147 = scmp.eq.s32.totalorder %s25, 1
      %p148 = scmp.ne.s32.totalorder %s143, %s145
      %p149 = scmp.eq.s32.totalorder %s25, 0
      %p150 = por %p148, %p149
      %p151 = scmp.ne.s32.totalorder %s143, %s145
      %p152 = scmp.eq.s32.totalorder %s30, 1
      %p153 = por %p151, %p152
      %p154 = scmp.ne.s32.totalorder %s145, %s146
      %p155 = scmp.eq.s32.totalorder %s30, 0
      %p156 = por %p154, %p155
      %p157 = scmp.ne.s32.totalorder %s145, %s146
      %p158 = scmp.eq.s32.totalorder %s31, 1
      %p159 = por %p157, %p158
      %p161 = scmp.ne.s32.totalorder %s146, %s160
      %p162 = scmp.eq.s32.totalorder %s31, 0
      %p163 = por %p161, %p162
      %s165 = sadd.s32 %s164, 1
      %p168 = scmp.eq.s32.totalorder %s25, 1
      %p169 = scmp.ne.s32.totalorder %s164, %s166
      %p170 = scmp.eq.s32.totalorder %s25, 0
      %p171 = por %p169, %p170
      %p172 = scmp.ne.s32.totalorder %s164, %s166
      %p173 = scmp.eq.s32.totalorder %s30, 1
      %p174 = por %p172, %p173
      %p175 = scmp.ne.s32.totalorder %s166, %s167
      %p176 = scmp.eq.s32.totalorder %s30, 0
      %p177 = por %p175, %p176
      %p178 = scmp.ne.s32.totalorder %s166, %s167
      %p179 = scmp.eq.s32.totalorder %s31, 1
      %p180 = por %p178, %p179
      %p182 = scmp.ne.s32.totalorder %s167, %s181
      %p183 = scmp.eq.s32.totalorder %s31, 0
      %p184 = por %p182, %p183
      %s186 = sadd.s32 %s185, 1
      %p189 = scmp.eq.s32.totalorder %s25, 1
      %p190 = scmp.ne.s32.totalorder %s185, %s187
      %p191 = scmp.eq.s32.totalorder %s25, 0
      %p192 = por %p190, %p191
      %p193 = scmp.ne.s32.totalorder %s185, %s187
      %p194 = scmp.eq.s32.totalorder %s30, 1
      %p195 = por %p193, %p194
      %p196 = scmp.ne.s32.totalorder %s187, %s188
      %p197 = scmp.eq.s32.totalorder %s30, 0
      %p198 = por %p196, %p197
      %p199 = scmp.ne.s32.totalorder %s187, %s188
      %p200 = scmp.eq.s32.totalorder %s31, 1
      %p201 = por %p199, %p200
      %p203 = scmp.ne.s32.totalorder %s188, %s202
      %p204 = scmp.eq.s32.totalorder %s31, 0
      %p205 = por %p203, %p204
      %s207 = sadd.s32 %s206, 1
      %p210 = scmp.eq.s32.totalorder %s25, 1
      %p211 = scmp.ne.s32.totalorder %s206, %s208
      %p212 = scmp.eq.s32.totalorder %s25, 0
      %p213 = por %p211, %p212
      %p214 = scmp.ne.s32.totalorder %s206, %s208
      %p215 = scmp.eq.s32.totalorder %s30, 1
      %p216 = por %p214, %p215
      %p217 = scmp.ne.s32.totalorder %s208, %s209
      %p218 = scmp.eq.s32.totalorder %s30, 0
      %p219 = por %p217, %p218
      %p220 = scmp.ne.s32.totalorder %s208, %s209
      %p221 = scmp.eq.s32.totalorder %s31, 1
      %p222 = por %p220, %p221
      %p224 = scmp.ne.s32.totalorder %s209, %s223
      %p225 = scmp.eq.s32.totalorder %s31, 0
      %p226 = por %p224, %p225
      %s228 = sadd.s32 %s227, 1
      %p231 = scmp.eq.s32.totalorder %s25, 1
      %p232 = scmp.ne.s32.totalorder %s227, %s229
      %p233 = scmp.eq.s32.totalorder %s25, 0
      %p234 = por %p232, %p233
      %p235 = scmp.ne.s32.totalorder %s227, %s229
      %p236 = scmp.eq.s32.totalorder %s30, 1
      %p237 = por %p235, %p236
      %p238 = scmp.ne.s32.totalorder %s229, %s230
      %p239 = scmp.eq.s32.totalorder %s30, 0
      %p240 = por %p238, %p239
      %p241 = scmp.ne.s32.totalorder %s229, %s230
      %p242 = scmp.eq.s32.totalorder %s31, 1
      %p243 = por %p241, %p242
      %p245 = scmp.ne.s32.totalorder %s230, %s244
      %p246 = scmp.eq.s32.totalorder %s31, 0
      %p247 = por %p245, %p246
      %s248 = ssub.s32 %s25, %s32
      %p249 = scmp.eq.s32.totalorder %s248, 0
      %s251 = sadd.s32 %s250, 1
      %s252 = scalar_select %p249, %s250, %s251
      %p255 = pneg %p249
      %p256 = scmp.eq.s32.totalorder %s25, 1
      %p257 = por %p255, %p256
      %p258 = scmp.ne.s32.totalorder %s250, %s253
      %p259 = scmp.eq.s32.totalorder %s25, 0
      %p260 = por %p258, %p259
      %p261 = scmp.ne.s32.totalorder %s250, %s253
      %p262 = scmp.eq.s32.totalorder %s30, 1
      %p263 = por %p261, %p262
      %p264 = scmp.ne.s32.totalorder %s253, %s254
      %p265 = scmp.eq.s32.totalorder %s30, 0
      %p266 = por %p264, %p265
      %p267 = scmp.ne.s32.totalorder %s253, %s254
      %p268 = scmp.eq.s32.totalorder %s31, 1
      %p269 = por %p267, %p268
      %p271 = scmp.ne.s32.totalorder %s254, %s270
      %p272 = scmp.eq.s32.totalorder %s31, 0
      %p273 = por %p271, %p272
      %p274 = scmp.le.s32.totalorder 1, %s25
      %p275 = scmp.lt.s32.totalorder %s25, 3
      %p276 = pnand %p274, %p275
      %p277 = pneg %p276
      // Predicated region
      $region9: #{tpu_custom_call.1} parent=5 // pred_check
        _
      $region10: #{tpu_custom_call.1} parent=5 // pred_check_branch
        %279 = sbr.rel (%p276) target = $region12
      $region11: #{tpu_custom_call.1} parent=5 // pred_region
        %s280 = ssub.s32 %s25, 1
        // Predicated region
        $region13: #{tpu_custom_call.1} parent=11 // pred_check
          %p281 = pneg %p72
        $region14: #{tpu_custom_call.1} parent=11 // pred_check_branch
          %283 = sbr.rel (%p281) target = $region16
        $region15: #{tpu_custom_call.1} parent=11 // pred_region
          %s285 = ssub.s32 512, 512
          %286 = vsyncadd [#allocation11], %s285
          %s287 = sshll.u32 [#allocation10], 4
          %s288 = int_to_ptr.vmem [resolvable:$true] %s287
          %293 = dma.hbm_to_vmem [thread:$0]  %s1, 512, %s288, [#allocation11], 128, 128, 8
        $region16: #{tpu_custom_call.1} parent=11 // pred_fallthru
          _
        // Predicated region
        $region17: #{tpu_custom_call.1} parent=11 // pred_check
          %p294 = pneg %p93
        $region18: #{tpu_custom_call.1} parent=11 // pred_check_branch
          %296 = sbr.rel (%p294) target = $region20
        $region19: #{tpu_custom_call.1} parent=11 // pred_region
          _
        $region20: #{tpu_custom_call.1} parent=11 // pred_fallthru
          _
        // Predicated region
        $region21: #{tpu_custom_call.1} parent=11 // pred_check
          %p297 = pneg %p114
        $region22: #{tpu_custom_call.1} parent=11 // pred_check_branch
          %299 = sbr.rel (%p297) target = $region24
        $region23: #{tpu_custom_call.1} parent=11 // pred_region
          %s301 = ssub.s32 2048, 2048
          %302 = vsyncadd [#allocation11], %s301
          %s303 = sshll.u32 [#allocation12], 4
          %s304 = int_to_ptr.vmem [resolvable:$true] %s303
          %309 = dma.hbm_to_vmem [thread:$0]  %s3, 2048, %s304, [#allocation11], 256, 256, 16
        $region24: #{tpu_custom_call.1} parent=11 // pred_fallthru
          _
        // Predicated region
        $region25: #{tpu_custom_call.1} parent=11 // pred_check
          %p310 = pneg %p135
        $region26: #{tpu_custom_call.1} parent=11 // pred_check_branch
          %312 = sbr.rel (%p310) target = $region28
        $region27: #{tpu_custom_call.1} parent=11 // pred_region
          %s314 = ssub.s32 32, 32
          %315 = vsyncadd [#allocation14], %s314
          %s317 = sshll.u32 [#allocation13], 4
          %s318 = int_to_ptr.vmem [resolvable:$true] %s317
          %320 = dma.hbm_to_vmem [thread:$0]  %s4, 32, %s318, [#allocation14]
        $region28: #{tpu_custom_call.1} parent=11 // pred_fallthru
          _
        // Predicated region
        $region29: #{tpu_custom_call.1} parent=11 // pred_check
          %p321 = pneg %p156
        $region30: #{tpu_custom_call.1} parent=11 // pred_check_branch
          %323 = sbr.rel (%p321) target = $region32
        $region31: #{tpu_custom_call.1} parent=11 // pred_region
          _
        $region32: #{tpu_custom_call.1} parent=11 // pred_fallthru
          _
        // Predicated region
        $region33: #{tpu_custom_call.1} parent=11 // pred_check
          %p324 = pneg %p177
        $region34: #{tpu_custom_call.1} parent=11 // pred_check_branch
          %326 = sbr.rel (%p324) target = $region36
        $region35: #{tpu_custom_call.1} parent=11 // pred_region
          %s328 = ssub.s32 128, 128
          %329 = vsyncadd [#allocation14], %s328
          %s331 = sshll.u32 [#allocation15], 4
          %s332 = int_to_ptr.vmem [resolvable:$true] %s331
          %334 = dma.hbm_to_vmem [thread:$0]  %s6, 128, %s332, [#allocation14]
        $region36: #{tpu_custom_call.1} parent=11 // pred_fallthru
          _
        // Predicated region
        $region37: #{tpu_custom_call.1} parent=11 // pred_check
          %p335 = pneg %p198
        $region38: #{tpu_custom_call.1} parent=11 // pred_check_branch
          %337 = sbr.rel (%p335) target = $region40
        $region39: #{tpu_custom_call.1} parent=11 // pred_region
          _
        $region40: #{tpu_custom_call.1} parent=11 // pred_fallthru
          _
        // Predicated region
        $region41: #{tpu_custom_call.1} parent=11 // pred_check
          %p338 = pneg %p219
        $region42: #{tpu_custom_call.1} parent=11 // pred_check_branch
          %340 = sbr.rel (%p338) target = $region44
        $region43: #{tpu_custom_call.1} parent=11 // pred_region
          %s342 = ssub.s32 1024, 1024
          %343 = vsyncadd [#allocation17], %s342
          %s344 = sshll.u32 [#allocation16], 4
          %s345 = int_to_ptr.vmem [resolvable:$true] %s344
          %350 = dma.hbm_to_vmem [thread:$0]  %s8, 1024, %s345, [#allocation17], 128, 128, 8
        $region44: #{tpu_custom_call.1} parent=11 // pred_fallthru
          _
        // Predicated region
        $region45: #{tpu_custom_call.1} parent=11 // pred_check
          %p351 = pneg %p240
        $region46: #{tpu_custom_call.1} parent=11 // pred_check_branch
          %353 = sbr.rel (%p351) target = $region48
        $region47: #{tpu_custom_call.1} parent=11 // pred_region
          _
        $region48: #{tpu_custom_call.1} parent=11 // pred_fallthru
          _
      $region12: #{tpu_custom_call.1} parent=5 // pred_fallthru
        _
      %p354 = scmp.lt.s32.totalorder %s25, 2
      // Predicated region
      $region49: #{tpu_custom_call.1} parent=5 // pred_check
        %p355 = pneg %p354
      $region50: #{tpu_custom_call.1} parent=5 // pred_check_branch
        %357 = sbr.rel (%p355) target = $region52
      $region51: #{tpu_custom_call.1} parent=5 // pred_region
        // Predicated region
        $region53: #{tpu_custom_call.1} parent=51 // pred_check
          %p358 = pneg %p45
        $region54: #{tpu_custom_call.1} parent=51 // pred_check_branch
          %360 = sbr.rel (%p358) target = $region56
        $region55: #{tpu_custom_call.1} parent=51 // pred_region
          %s361 = sand.u32 %s35, 1
          %s362 = scalar_lea.sflag [#allocation8], %s361
          %s363 = sand.u32 %s35, 1
          %s364 = smul.addr %s363, 64
          %s365 = scalar_lea.vmem [#allocation7], %s364
          %s367 = ssub.s32 1024, 1024
          %368 = vsyncadd %s362, %s367
          %s369 = smul.addr %s25, 8
          %s370 = smul.addr %s369, 128
          %s371 = scalar_lea.hbm %s0, %s370
          %s372 = sshll.u32 %s365, 4
          %s373 = int_to_ptr.vmem [resolvable:$true] %s372
          %378 = dma.hbm_to_vmem [thread:$0]  %s371, 1024, %s373, %s362, 128, 128, 8
        $region56: #{tpu_custom_call.1} parent=51 // pred_fallthru
          _
      $region52: #{tpu_custom_call.1} parent=5 // pred_fallthru
        _
      %p379 = scmp.le.s32.totalorder 1, %s25
      %p380 = scmp.lt.s32.totalorder %s25, 3
      %p381 = pnand %p379, %p380
      %p382 = pneg %p381
      // Predicated region
      $region57: #{tpu_custom_call.1} parent=5 // pred_check
        _
      $region58: #{tpu_custom_call.1} parent=5 // pred_check_branch
        %384 = sbr.rel (%p381) target = $region60
      $region59: #{tpu_custom_call.1} parent=5 // pred_region
        %s385 = ssub.s32 %s25, 1
        %s386 = sand.u32 %s38, 1
        %s387 = scalar_lea.sflag [#allocation8], %s386
        %s388 = sand.u32 %s38, 1
        %s389 = smul.addr %s388, 64
        %s390 = scalar_lea.vmem [#allocation7], %s389
        // Predicated region
        $region61: #{tpu_custom_call.1} parent=59 // pred_check
          %p391 = pneg %p51
        $region62: #{tpu_custom_call.1} parent=59 // pred_check_branch
          %393 = sbr.rel (%p391) target = $region64
        $region63: #{tpu_custom_call.1} parent=59 // pred_region
          %394 = dma.done %s387, 1024
        $region64: #{tpu_custom_call.1} parent=59 // pred_fallthru
          _
        // Predicated region
        $region65: #{tpu_custom_call.1} parent=59 // pred_check
          %p395 = pneg %p72
        $region66: #{tpu_custom_call.1} parent=59 // pred_check_branch
          %397 = sbr.rel (%p395) target = $region68
        $region67: #{tpu_custom_call.1} parent=59 // pred_region
          %398 = dma.done [#allocation11], 512
        $region68: #{tpu_custom_call.1} parent=59 // pred_fallthru
          _
        // Predicated region
        $region69: #{tpu_custom_call.1} parent=59 // pred_check
          %p399 = pneg %p114
        $region70: #{tpu_custom_call.1} parent=59 // pred_check_branch
          %401 = sbr.rel (%p399) target = $region72
        $region71: #{tpu_custom_call.1} parent=59 // pred_region
          %402 = dma.done [#allocation11], 2048
        $region72: #{tpu_custom_call.1} parent=59 // pred_fallthru
          _
        // Predicated region
        $region73: #{tpu_custom_call.1} parent=59 // pred_check
          %p403 = pneg %p135
        $region74: #{tpu_custom_call.1} parent=59 // pred_check_branch
          %405 = sbr.rel (%p403) target = $region76
        $region75: #{tpu_custom_call.1} parent=59 // pred_region
          %406 = dma.done [#allocation14], 32
        $region76: #{tpu_custom_call.1} parent=59 // pred_fallthru
          _
        // Predicated region
        $region77: #{tpu_custom_call.1} parent=59 // pred_check
          %p407 = pneg %p177
        $region78: #{tpu_custom_call.1} parent=59 // pred_check_branch
          %409 = sbr.rel (%p407) target = $region80
        $region79: #{tpu_custom_call.1} parent=59 // pred_region
          %410 = dma.done [#allocation14], 128
        $region80: #{tpu_custom_call.1} parent=59 // pred_fallthru
          _
        // Predicated region
        $region81: #{tpu_custom_call.1} parent=59 // pred_check
          %p411 = pneg %p219
        $region82: #{tpu_custom_call.1} parent=59 // pred_check_branch
          %413 = sbr.rel (%p411) target = $region84
        $region83: #{tpu_custom_call.1} parent=59 // pred_region
          %414 = dma.done [#allocation17], 1024
        $region84: #{tpu_custom_call.1} parent=59 // pred_fallthru
          _
        %s415 = sand.u32 %s38, 1
        %s416 = scalar_lea.sflag [#allocation8], %s415
        %s417 = sand.u32 %s38, 1
        %s418 = smul.addr %s417, 64
        %s419 = scalar_lea.vmem [#allocation7], %s418
        %p420 = pneg %p51
        %p421 = pneg %p48
        %p422 = pneg %p72
        %p423 = pneg %p69
        %p424 = pneg %p93
        %p425 = pneg %p90
        %p426 = pneg %p114
        %p427 = pneg %p111
        %p428 = pneg %p135
        %p429 = pneg %p132
        %p430 = pneg %p156
        %p431 = pneg %p153
        %p432 = pneg %p177
        %p433 = pneg %p174
        %p434 = pneg %p198
        %p435 = pneg %p195
        %p436 = pneg %p219
        %p437 = pneg %p216
        %p438 = pneg %p240
        %p439 = pneg %p237
        %p440 = pneg %p266
        %p441 = pneg %p263
        %s442 = sand.u32 %s253, 1
        %s443 = scalar_lea.sflag [#allocation9], %s442
        %s444 = sand.u32 %s253, 1
        %s445 = smul.addr %s444, 64
        %s446 = scalar_lea.vmem [#allocation18], %s445
        %v447 = vld [vmem:[%s390] sm:$0xff]
        %v448 = vld [vmem:[%s390 + $0x8] sm:$0xff]
        %v449 = vld [vmem:[%s390 + $0x10] sm:$0xff]
        %v450 = vld [vmem:[%s390 + $0x18] sm:$0xff]
        %v451 = vld [vmem:[%s390 + $0x20] sm:$0xff]
        %v452 = vld [vmem:[%s390 + $0x28] sm:$0xff]
        %v453 = vld [vmem:[%s390 + $0x30] sm:$0xff]
        %v454 = vld [vmem:[%s390 + $0x38] sm:$0xff]
        %v455 = vld [vmem:[#allocation10] sm:$0xff]
        %v456 = vld [vmem:[#allocation10 + $0x8] sm:$0xff]
        %v457 = vld [vmem:[#allocation10 + $0x10] sm:$0xff]
        %v458 = vld [vmem:[#allocation10 + $0x18] sm:$0xff]
        %v459 = vld [vmem:[%s2] sm:$0x1]
        %v461 = vlaneseq
        %v462 = vshrl.u32 %v461, 7
        %v463 = vsub.s32 0, %v462
        %v464 = vrot.slane %v459, %v463
        %vm466 = vcmask 261120
        %v468 = vsel %vm466, %v447, 0
        %v471 = vsel %vm466, %v448, 0
        %v474 = vsel %vm466, %v449, 0
        %v477 = vsel %vm466, %v450, 0
        %v480 = vsel %vm466, %v451, 0
        %v483 = vsel %vm466, %v452, 0
        %v486 = vsel %vm466, %v453, 0
        %v489 = vsel %vm466, %v454, 0
        %491 = vmatprep.subr.mxu0 0.0
        %492 = vmatpush1.msra.mxu0 0.0
        %493 = vmatprep.subr.mxu0 0.0
        %494 = vmatpush1.msra.mxu0 0.0
        %495 = vmatprep.subr.mxu0 0.0
        %496 = vmatpush1.msra.mxu0 0.0
        %497 = vmatprep.subr.mxu0 0.0
        %498 = vmatpush1.msra.mxu0 0.0
        %499 = vmatprep.subr.mxu0 0.0
        %500 = vmatpush1.msra.mxu0 0.0
        %501 = vmatprep.subr.mxu0 0.0
        %502 = vmatpush1.msra.mxu0 0.0
        %503 = vmatprep.subr.mxu0 0.0
        %504 = vmatpush1.msra.mxu0 0.0
        %505 = vmatprep.subr.mxu0 0.0
        %506 = vmatpush1.msra.mxu0 0.0
        %507 = vmatprep.subr.mxu0 0.0
        %508 = vmatpush1.msra.mxu0 0.0
        %509 = vmatprep.subr.mxu0 0.0
        %510 = vmatpush1.msra.mxu0 0.0
        %511 = vmatprep.subr.mxu0 0.0
        %512 = vmatpush1.msra.mxu0 0.0
        %513 = vmatprep.subr.mxu0 0.0
        %514 = vmatpush1.msra.mxu0 0.0
        %515 = vmatprep.subr.mxu0 0.0
        %516 = vmatpush1.msra.mxu0 %v458
        %517 = vmatprep.subr.mxu0 0.0
        %518 = vmatpush1.msra.mxu0 %v457
        %519 = vmatprep.subr.mxu0 0.0
        %520 = vmatpush1.msra.mxu0 %v456
        %521 = vmatprep.subr.mxu0 0.0
        %522 = vmatpush1.msra.mxu0 %v455
        %523 = vmatprep.subr.mxu0 0.0
        %524 = vmatpush2.msra.mxu0 0.0
        %525 = vmatprep.subr.mxu0 0.0
        %526 = vmatpush2.msra.mxu0 0.0
        %527 = vmatprep.subr.mxu0 0.0
        %528 = vmatpush2.msra.mxu0 0.0
        %529 = vmatprep.subr.mxu0 0.0
        %530 = vmatpush2.msra.mxu0 0.0
        %531 = vmatprep.subr.mxu0 0.0
        %532 = vmatpush2.msra.mxu0 0.0
        %533 = vmatprep.subr.mxu0 0.0
        %534 = vmatpush2.msra.mxu0 0.0
        %535 = vmatprep.subr.mxu0 0.0
        %536 = vmatpush2.msra.mxu0 0.0
        %537 = vmatprep.subr.mxu0 0.0
        %538 = vmatpush2.msra.mxu0 0.0
        %539 = vmatprep.subr.mxu0 0.0
        %540 = vmatpush2.msra.mxu0 0.0
        %541 = vmatprep.subr.mxu0 0.0
        %542 = vmatpush2.msra.mxu0 0.0
        %543 = vmatprep.subr.mxu0 0.0
        %544 = vmatpush2.msra.mxu0 0.0
        %545 = vmatprep.subr.mxu0 0.0
        %546 = vmatpush2.msra.mxu0 0.0
        %547 = vmatprep.subr.mxu0 0.0
        %548 = vmatpush2.msra.mxu0 0.0
        %549 = vmatprep.subr.mxu0 0.0
        %550 = vmatpush2.msra.mxu0 0.0
        %551 = vmatprep.subr.mxu0 0.0
        %552 = vmatpush2.msra.mxu0 0.0
        %553 = vmatprep.subr.mxu0 0.0
        %554 = vmatpush2.msra.mxu0 0.0
        %555 = vmatprep.mubr.f32.mxu0 0.0
        %556 = vmatmul.mubr.f32.gmra.mxu0 %v468
        %v557 = vpop.f32.mrf.mxu0
        %v558 = vadd.f32 %v464, %v557
        %v559 = vpop.f32.mrf.mxu0
        %560 = vmatprep.mubr.f32.mxu0 0.0
        %561 = vmatmul.mubr.f32.gmra.mxu0 %v471
        %v562 = vpop.f32.mrf.mxu0
        %v563 = vadd.f32 %v464, %v562
        %v564 = vpop.f32.mrf.mxu0
        %565 = vmatprep.mubr.f32.mxu0 0.0
        %566 = vmatmul.mubr.f32.gmra.mxu0 %v474
        %v567 = vpop.f32.mrf.mxu0
        %v568 = vadd.f32 %v464, %v567
        %v569 = vpop.f32.mrf.mxu0
        %570 = vmatprep.mubr.f32.mxu0 0.0
        %571 = vmatmul.mubr.f32.gmra.mxu0 %v477
        %v572 = vpop.f32.mrf.mxu0
        %v573 = vadd.f32 %v464, %v572
        %v574 = vpop.f32.mrf.mxu0
        %575 = vmatprep.mubr.f32.mxu0 0.0
        %576 = vmatmul.mubr.f32.gmra.mxu0 %v480
        %v577 = vpop.f32.mrf.mxu0
        %v578 = vadd.f32 %v464, %v577
        %v579 = vpop.f32.mrf.mxu0
        %580 = vmatprep.mubr.f32.mxu0 0.0
        %581 = vmatmul.mubr.f32.gmra.mxu0 %v483
        %v582 = vpop.f32.mrf.mxu0
        %v583 = vadd.f32 %v464, %v582
        %v584 = vpop.f32.mrf.mxu0
        %585 = vmatprep.mubr.f32.mxu0 0.0
        %586 = vmatmul.mubr.f32.gmra.mxu0 %v486
        %v587 = vpop.f32.mrf.mxu0
        %v588 = vadd.f32 %v464, %v587
        %v589 = vpop.f32.mrf.mxu0
        %590 = vmatprep.mubr.f32.mxu0 0.0
        %591 = vmatmul.mubr.f32.gmra.mxu0 %v489
        %v592 = vpop.f32.mrf.mxu0
        %v593 = vadd.f32 %v464, %v592
        %v594 = vpop.f32.mrf.mxu0
        %595 = vdwg.mxu0
        %v596 = vmul.f32 %v558, 0.5
        %v597 = vmul.f32 %v563, 0.5
        %v598 = vmul.f32 %v568, 0.5
        %v599 = vmul.f32 %v573, 0.5
        %v600 = vmul.f32 %v578, 0.5
        %v601 = vmul.f32 %v583, 0.5
        %v602 = vmul.f32 %v588, 0.5
        %v603 = vmul.f32 %v593, 0.5
        %v604 = vmul.f32 %v558, 0.044715
        %v605 = vmul.f32 %v563, 0.044715
        %v606 = vmul.f32 %v568, 0.044715
        %v607 = vmul.f32 %v573, 0.044715
        %v608 = vmul.f32 %v578, 0.044715
        %v609 = vmul.f32 %v583, 0.044715
        %v610 = vmul.f32 %v588, 0.044715
        %v611 = vmul.f32 %v593, 0.044715
        %v612 = vmul.f32 %v604, %v558
        %v613 = vmul.f32 %v605, %v563
        %v614 = vmul.f32 %v606, %v568
        %v615 = vmul.f32 %v607, %v573
        %v616 = vmul.f32 %v608, %v578
        %v617 = vmul.f32 %v609, %v583
        %v618 = vmul.f32 %v610, %v588
        %v619 = vmul.f32 %v611, %v593
        %v620 = vmul.f32 %v612, %v558
        %v621 = vmul.f32 %v613, %v563
        %v622 = vmul.f32 %v614, %v568
        %v623 = vmul.f32 %v615, %v573
        %v624 = vmul.f32 %v616, %v578
        %v625 = vmul.f32 %v617, %v583
        %v626 = vmul.f32 %v618, %v588
        %v627 = vmul.f32 %v619, %v593
        %v628 = vadd.f32 %v558, %v620
        %v629 = vadd.f32 %v563, %v621
        %v630 = vadd.f32 %v568, %v622
        %v631 = vadd.f32 %v573, %v623
        %v632 = vadd.f32 %v578, %v624
        %v633 = vadd.f32 %v583, %v625
        %v634 = vadd.f32 %v588, %v626
        %v635 = vadd.f32 %v593, %v627
        %v636 = vmul.f32 %v628, 0.7978846
        %v637 = vmul.f32 %v629, 0.7978846
        %v638 = vmul.f32 %v630, 0.7978846
        %v639 = vmul.f32 %v631, 0.7978846
        %v640 = vmul.f32 %v632, 0.7978846
        %v641 = vmul.f32 %v633, 0.7978846
        %v642 = vmul.f32 %v634, 0.7978846
        %v643 = vmul.f32 %v635, 0.7978846
        %v644 = vtanh.pop %v636
        %v645 = vtanh.pop %v637
        %v646 = vtanh.pop %v638
        %v647 = vtanh.pop %v639
        %v648 = vtanh.pop %v640
        %v649 = vtanh.pop %v641
        %v650 = vtanh.pop %v642
        %v651 = vtanh.pop %v643
        %v652 = vadd.f32 %v644, 1.0
        %v653 = vadd.f32 %v645, 1.0
        %v654 = vadd.f32 %v646, 1.0
        %v655 = vadd.f32 %v647, 1.0
        %v656 = vadd.f32 %v648, 1.0
        %v657 = vadd.f32 %v649, 1.0
        %v658 = vadd.f32 %v650, 1.0
        %v659 = vadd.f32 %v651, 1.0
        %v660 = vmul.f32 %v596, %v652
        %v661 = vmul.f32 %v597, %v653
        %v662 = vmul.f32 %v598, %v654
        %v663 = vmul.f32 %v599, %v655
        %v664 = vmul.f32 %v600, %v656
        %v665 = vmul.f32 %v601, %v657
        %v666 = vmul.f32 %v602, %v658
        %v667 = vmul.f32 %v603, %v659
        %v668 = vld [vmem:[#allocation12] sm:$0xff]
        %v669 = vld [vmem:[#allocation12 + $0x8] sm:$0xff]
        %v670 = vld [vmem:[#allocation12 + $0x10] sm:$0xff]
        %v671 = vld [vmem:[#allocation12 + $0x18] sm:$0xff]
        %v672 = vld [vmem:[#allocation12 + $0x20] sm:$0xff]
        %v673 = vld [vmem:[#allocation12 + $0x28] sm:$0xff]
        %v674 = vld [vmem:[#allocation12 + $0x30] sm:$0xff]
        %v675 = vld [vmem:[#allocation12 + $0x38] sm:$0xff]
        %v676 = vld [vmem:[#allocation12 + $0x40] sm:$0xff]
        %v677 = vld [vmem:[#allocation12 + $0x48] sm:$0xff]
        %v678 = vld [vmem:[#allocation12 + $0x50] sm:$0xff]
        %v679 = vld [vmem:[#allocation12 + $0x58] sm:$0xff]
        %v680 = vld [vmem:[#allocation12 + $0x60] sm:$0xff]
        %v681 = vld [vmem:[#allocation12 + $0x68] sm:$0xff]
        %v682 = vld [vmem:[#allocation12 + $0x70] sm:$0xff]
        %v683 = vld [vmem:[#allocation12 + $0x78] sm:$0xff]
        %v684 = vld [vmem:[#allocation13] sm:$0x3]
        %v686 = vlaneseq
        %v687 = vshrl.u32 %v686, 7
        %v688 = vsub.s32 0, %v687
        %v689 = vrot.slane %v684, %v688
        %v690 = vlaneseq
        %v691 = vshrl.u32 %v690, 7
        %v692 = vsub.s32 1, %v691
        %v693 = vrot.slane %v684, %v692
        %vm696 = vcmask 523264
        %v698 = vsel %vm696, %v660, 0
        %v701 = vsel %vm696, %v661, 0
        %v704 = vsel %vm696, %v662, 0
        %v707 = vsel %vm696, %v663, 0
        %v710 = vsel %vm696, %v664, 0
        %v713 = vsel %vm696, %v665, 0
        %v716 = vsel %vm696, %v666, 0
        %v719 = vsel %vm696, %v667, 0
        %721 = vmatprep.subr.mxu0 0.0
        %722 = vmatpush1.msra.mxu0 0.0
        %723 = vmatprep.subr.mxu0 0.0
        %724 = vmatpush1.msra.mxu0 0.0
        %725 = vmatprep.subr.mxu0 0.0
        %726 = vmatpush1.msra.mxu0 0.0
        %727 = vmatprep.subr.mxu0 0.0
        %728 = vmatpush1.msra.mxu0 0.0
        %729 = vmatprep.subr.mxu0 0.0
        %730 = vmatpush1.msra.mxu0 0.0
        %731 = vmatprep.subr.mxu0 0.0
        %732 = vmatpush1.msra.mxu0 0.0
        %733 = vmatprep.subr.mxu0 0.0
        %734 = vmatpush1.msra.mxu0 0.0
        %735 = vmatprep.subr.mxu0 0.0
        %736 = vmatpush1.msra.mxu0 0.0
        %737 = vmatprep.subr.mxu0 %v683
        %738 = vmatpush1.msra.mxu0 %v682
        %739 = vmatprep.subr.mxu0 %v681
        %740 = vmatpush1.msra.mxu0 %v680
        %741 = vmatprep.subr.mxu0 %v679
        %742 = vmatpush1.msra.mxu0 %v678
        %743 = vmatprep.subr.mxu0 %v677
        %744 = vmatpush1.msra.mxu0 %v676
        %745 = vmatprep.subr.mxu0 %v675
        %746 = vmatpush1.msra.mxu0 %v674
        %747 = vmatprep.subr.mxu0 %v673
        %748 = vmatpush1.msra.mxu0 %v672
        %749 = vmatprep.subr.mxu0 %v671
        %750 = vmatpush1.msra.mxu0 %v670
        %751 = vmatprep.subr.mxu0 %v669
        %752 = vmatpush1.msra.mxu0 %v668
        %753 = vmatprep.subr.mxu0 0.0
        %754 = vmatpush2.msra.mxu0 0.0
        %755 = vmatprep.subr.mxu0 0.0
        %756 = vmatpush2.msra.mxu0 0.0
        %757 = vmatprep.subr.mxu0 0.0
        %758 = vmatpush2.msra.mxu0 0.0
        %759 = vmatprep.subr.mxu0 0.0
        %760 = vmatpush2.msra.mxu0 0.0
        %761 = vmatprep.subr.mxu0 0.0
        %762 = vmatpush2.msra.mxu0 0.0
        %763 = vmatprep.subr.mxu0 0.0
        %764 = vmatpush2.msra.mxu0 0.0
        %765 = vmatprep.subr.mxu0 0.0
        %766 = vmatpush2.msra.mxu0 0.0
        %767 = vmatprep.subr.mxu0 0.0
        %768 = vmatpush2.msra.mxu0 0.0
        %769 = vmatprep.subr.mxu0 0.0
        %770 = vmatpush2.msra.mxu0 0.0
        %771 = vmatprep.subr.mxu0 0.0
        %772 = vmatpush2.msra.mxu0 0.0
        %773 = vmatprep.subr.mxu0 0.0
        %774 = vmatpush2.msra.mxu0 0.0
        %775 = vmatprep.subr.mxu0 0.0
        %776 = vmatpush2.msra.mxu0 0.0
        %777 = vmatprep.subr.mxu0 0.0
        %778 = vmatpush2.msra.mxu0 0.0
        %779 = vmatprep.subr.mxu0 0.0
        %780 = vmatpush2.msra.mxu0 0.0
        %781 = vmatprep.subr.mxu0 0.0
        %782 = vmatpush2.msra.mxu0 0.0
        %783 = vmatprep.subr.mxu0 0.0
        %784 = vmatpush2.msra.mxu0 0.0
        %785 = vmatprep.mubr.f32.mxu0 0.0
        %786 = vmatmul.mubr.f32.gmra.mxu0 %v698
        %v787 = vpop.f32.mrf.mxu0
        %v788 = vadd.f32 %v689, %v787
        %v789 = vpop.f32.mrf.mxu0
        %v790 = vadd.f32 %v693, %v789
        %791 = vmatprep.mubr.f32.mxu0 0.0
        %792 = vmatmul.mubr.f32.gmra.mxu0 %v701
        %v793 = vpop.f32.mrf.mxu0
        %v794 = vadd.f32 %v689, %v793
        %v795 = vpop.f32.mrf.mxu0
        %v796 = vadd.f32 %v693, %v795
        %797 = vmatprep.mubr.f32.mxu0 0.0
        %798 = vmatmul.mubr.f32.gmra.mxu0 %v704
        %v799 = vpop.f32.mrf.mxu0
        %v800 = vadd.f32 %v689, %v799
        %v801 = vpop.f32.mrf.mxu0
        %v802 = vadd.f32 %v693, %v801
        %803 = vmatprep.mubr.f32.mxu0 0.0
        %804 = vmatmul.mubr.f32.gmra.mxu0 %v707
        %v805 = vpop.f32.mrf.mxu0
        %v806 = vadd.f32 %v689, %v805
        %v807 = vpop.f32.mrf.mxu0
        %v808 = vadd.f32 %v693, %v807
        %809 = vmatprep.mubr.f32.mxu0 0.0
        %810 = vmatmul.mubr.f32.gmra.mxu0 %v710
        %v811 = vpop.f32.mrf.mxu0
        %v812 = vadd.f32 %v689, %v811
        %v813 = vpop.f32.mrf.mxu0
        %v814 = vadd.f32 %v693, %v813
        %815 = vmatprep.mubr.f32.mxu0 0.0
        %816 = vmatmul.mubr.f32.gmra.mxu0 %v713
        %v817 = vpop.f32.mrf.mxu0
        %v818 = vadd.f32 %v689, %v817
        %v819 = vpop.f32.mrf.mxu0
        %v820 = vadd.f32 %v693, %v819
        %821 = vmatprep.mubr.f32.mxu0 0.0
        %822 = vmatmul.mubr.f32.gmra.mxu0 %v716
        %v823 = vpop.f32.mrf.mxu0
        %v824 = vadd.f32 %v689, %v823
        %v825 = vpop.f32.mrf.mxu0
        %v826 = vadd.f32 %v693, %v825
        %827 = vmatprep.mubr.f32.mxu0 0.0
        %828 = vmatmul.mubr.f32.gmra.mxu0 %v719
        %v829 = vpop.f32.mrf.mxu0
        %v830 = vadd.f32 %v689, %v829
        %v831 = vpop.f32.mrf.mxu0
        %v832 = vadd.f32 %v693, %v831
        %833 = vdwg.mxu0
        %v834 = vmax.f32 %v788, 0.0
        %v835 = vmax.f32 %v794, 0.0
        %v836 = vmax.f32 %v800, 0.0
        %v837 = vmax.f32 %v806, 0.0
        %v838 = vmax.f32 %v812, 0.0
        %v839 = vmax.f32 %v818, 0.0
        %v840 = vmax.f32 %v824, 0.0
        %v841 = vmax.f32 %v830, 0.0
        %v842 = vand.u32 2147483647, %v788
        %v843 = vand.u32 2147483647, %v794
        %v844 = vand.u32 2147483647, %v800
        %v845 = vand.u32 2147483647, %v806
        %v846 = vand.u32 2147483647, %v812
        %v847 = vand.u32 2147483647, %v818
        %v848 = vand.u32 2147483647, %v824
        %v849 = vand.u32 2147483647, %v830
        %v850 = vsub.f32 0.0, %v842
        %v851 = vsub.f32 0.0, %v843
        %v852 = vsub.f32 0.0, %v844
        %v853 = vsub.f32 0.0, %v845
        %v854 = vsub.f32 0.0, %v846
        %v855 = vsub.f32 0.0, %v847
        %v856 = vsub.f32 0.0, %v848
        %v857 = vsub.f32 0.0, %v849
        %v858 = vmul.f32 %v850, 1.442695
        %v859 = vpow.pop %v858
        %v860 = vmul.f32 %v851, 1.442695
        %v861 = vpow.pop %v860
        %v862 = vmul.f32 %v852, 1.442695
        %v863 = vpow.pop %v862
        %v864 = vmul.f32 %v853, 1.442695
        %v865 = vpow.pop %v864
        %v866 = vmul.f32 %v854, 1.442695
        %v867 = vpow.pop %v866
        %v868 = vmul.f32 %v855, 1.442695
        %v869 = vpow.pop %v868
        %v870 = vmul.f32 %v856, 1.442695
        %v871 = vpow.pop %v870
        %v872 = vmul.f32 %v857, 1.442695
        %v873 = vpow.pop %v872
        %v874 = vadd.f32 %v859, 1.0
        %v875 = vadd.f32 %v861, 1.0
        %v876 = vadd.f32 %v863, 1.0
        %v877 = vadd.f32 %v865, 1.0
        %v878 = vadd.f32 %v867, 1.0
        %v879 = vadd.f32 %v869, 1.0
        %v880 = vadd.f32 %v871, 1.0
        %v881 = vadd.f32 %v873, 1.0
        %v882 = vlog2.pop %v874
        %v883 = vmul.f32 %v882, 0.6931472
        %v884 = vlog2.pop %v875
        %v885 = vmul.f32 %v884, 0.6931472
        %v886 = vlog2.pop %v876
        %v887 = vmul.f32 %v886, 0.6931472
        %v888 = vlog2.pop %v877
        %v889 = vmul.f32 %v888, 0.6931472
        %v890 = vlog2.pop %v878
        %v891 = vmul.f32 %v890, 0.6931472
        %v892 = vlog2.pop %v879
        %v893 = vmul.f32 %v892, 0.6931472
        %v894 = vlog2.pop %v880
        %v895 = vmul.f32 %v894, 0.6931472
        %v896 = vlog2.pop %v881
        %v897 = vmul.f32 %v896, 0.6931472
        %v898 = vadd.f32 %v834, %v883
        %v899 = vadd.f32 %v835, %v885
        %v900 = vadd.f32 %v836, %v887
        %v901 = vadd.f32 %v837, %v889
        %v902 = vadd.f32 %v838, %v891
        %v903 = vadd.f32 %v839, %v893
        %v904 = vadd.f32 %v840, %v895
        %v905 = vadd.f32 %v841, %v897
        %914 = vrot.lane.b32.xlu0 %v898, 64
        %v915 = vpop.permute.xlu0 %914
        %916 = vrot.lane.b32.xlu0 %v899, 64
        %v917 = vpop.permute.xlu0 %916
        %918 = vrot.lane.b32.xlu0 %v900, 64
        %v919 = vpop.permute.xlu0 %918
        %920 = vrot.lane.b32.xlu0 %v901, 64
        %v921 = vpop.permute.xlu0 %920
        %922 = vrot.lane.b32.xlu0 %v902, 64
        %v923 = vpop.permute.xlu0 %922
        %924 = vrot.lane.b32.xlu0 %v903, 64
        %v925 = vpop.permute.xlu0 %924
        %926 = vrot.lane.b32.xlu0 %v904, 64
        %v927 = vpop.permute.xlu0 %926
        %928 = vrot.lane.b32.xlu0 %v905, 64
        %v929 = vpop.permute.xlu0 %928
        %v938 = vsel %vm696, %v898, %v915
        %v939 = vsel %vm696, %v899, %v917
        %v940 = vsel %vm696, %v900, %v919
        %v941 = vsel %vm696, %v901, %v921
        %v942 = vsel %vm696, %v902, %v923
        %v943 = vsel %vm696, %v903, %v925
        %v944 = vsel %vm696, %v904, %v927
        %v945 = vsel %vm696, %v905, %v929
        %v946 = vsel %vm696, %v915, %v898
        %v947 = vsel %vm696, %v917, %v899
        %v948 = vsel %vm696, %v919, %v900
        %v949 = vsel %vm696, %v921, %v901
        %v950 = vsel %vm696, %v923, %v902
        %v951 = vsel %vm696, %v925, %v903
        %v952 = vsel %vm696, %v927, %v904
        %v953 = vsel %vm696, %v929, %v905
        %v962 = vcombine.high %v938, %v938
        %v964 = vunpack.c.l.s4 1966171168
        %v965 = vunpack.c.0.s8 %v964
        %v966 = vlaneseq
        %v967 = vshrl.u32 %v966, 7
        %v968 = vsub.s32 %v965, %v967
        %v969 = vrot.slane %v938, %v968
        %v971 = vunpack.c.l.s4 1966171168
        %v972 = vunpack.c.0.s8 %v971
        %v973 = vlaneseq
        %v974 = vshrl.u32 %v973, 7
        %v975 = vsub.s32 %v972, %v974
        %v976 = vrot.slane %v962, %v975
        %v977 = vcombine.high %v969, %v969
        %v978 = vcombine.high %v976, %v976
        %v980 = vunpack.c.l.s4 1966171168
        %v981 = vunpack.c.0.s8 %v980
        %v982 = vlaneseq
        %v983 = vshrl.u32 %v982, 7
        %v984 = vsub.s32 %v981, %v983
        %v985 = vrot.slane %v969, %v984
        %v987 = vunpack.c.l.s4 1966171168
        %v988 = vunpack.c.0.s8 %v987
        %v989 = vlaneseq
        %v990 = vshrl.u32 %v989, 7
        %v991 = vsub.s32 %v988, %v990
        %v992 = vrot.slane %v976, %v991
        %v994 = vunpack.c.l.s4 1966171168
        %v995 = vunpack.c.0.s8 %v994
        %v996 = vlaneseq
        %v997 = vshrl.u32 %v996, 7
        %v998 = vsub.s32 %v995, %v997
        %v999 = vrot.slane %v977, %v998
        %v1001 = vunpack.c.l.s4 1966171168
        %v1002 = vunpack.c.0.s8 %v1001
        %v1003 = vlaneseq
        %v1004 = vshrl.u32 %v1003, 7
        %v1005 = vsub.s32 %v1002, %v1004
        %v1006 = vrot.slane %v978, %v1005
        %v1007 = vcombine.high %v985, %v985
        %v1008 = vcombine.high %v992, %v992
        %v1009 = vcombine.high %v999, %v999
        %v1010 = vcombine.high %v1006, %v1006
        %v1011 = vcombine.high %v939, %v939
        %v1013 = vunpack.c.l.s4 1966171168
        %v1014 = vunpack.c.0.s8 %v1013
        %v1015 = vlaneseq
        %v1016 = vshrl.u32 %v1015, 7
        %v1017 = vsub.s32 %v1014, %v1016
        %v1018 = vrot.slane %v939, %v1017
        %v1020 = vunpack.c.l.s4 1966171168
        %v1021 = vunpack.c.0.s8 %v1020
        %v1022 = vlaneseq
        %v1023 = vshrl.u32 %v1022, 7
        %v1024 = vsub.s32 %v1021, %v1023
        %v1025 = vrot.slane %v1011, %v1024
        %v1026 = vcombine.high %v1018, %v1018
        %v1027 = vcombine.high %v1025, %v1025
        %v1029 = vunpack.c.l.s4 1966171168
        %v1030 = vunpack.c.0.s8 %v1029
        %v1031 = vlaneseq
        %v1032 = vshrl.u32 %v1031, 7
        %v1033 = vsub.s32 %v1030, %v1032
        %v1034 = vrot.slane %v1018, %v1033
        %v1036 = vunpack.c.l.s4 1966171168
        %v1037 = vunpack.c.0.s8 %v1036
        %v1038 = vlaneseq
        %v1039 = vshrl.u32 %v1038, 7
        %v1040 = vsub.s32 %v1037, %v1039
        %v1041 = vrot.slane %v1025, %v1040
        %v1043 = vunpack.c.l.s4 1966171168
        %v1044 = vunpack.c.0.s8 %v1043
        %v1045 = vlaneseq
        %v1046 = vshrl.u32 %v1045, 7
        %v1047 = vsub.s32 %v1044, %v1046
        %v1048 = vrot.slane %v1026, %v1047
        %v1050 = vunpack.c.l.s4 1966171168
        %v1051 = vunpack.c.0.s8 %v1050
        %v1052 = vlaneseq
        %v1053 = vshrl.u32 %v1052, 7
        %v1054 = vsub.s32 %v1051, %v1053
        %v1055 = vrot.slane %v1027, %v1054
        %v1056 = vcombine.high %v1034, %v1034
        %v1057 = vcombine.high %v1041, %v1041
        %v1058 = vcombine.high %v1048, %v1048
        %v1059 = vcombine.high %v1055, %v1055
        %v1060 = vcombine.high %v940, %v940
        %v1062 = vunpack.c.l.s4 1966171168
        %v1063 = vunpack.c.0.s8 %v1062
        %v1064 = vlaneseq
        %v1065 = vshrl.u32 %v1064, 7
        %v1066 = vsub.s32 %v1063, %v1065
        %v1067 = vrot.slane %v940, %v1066
        %v1069 = vunpack.c.l.s4 1966171168
        %v1070 = vunpack.c.0.s8 %v1069
        %v1071 = vlaneseq
        %v1072 = vshrl.u32 %v1071, 7
        %v1073 = vsub.s32 %v1070, %v1072
        %v1074 = vrot.slane %v1060, %v1073
        %v1075 = vcombine.high %v1067, %v1067
        %v1076 = vcombine.high %v1074, %v1074
        %v1078 = vunpack.c.l.s4 1966171168
        %v1079 = vunpack.c.0.s8 %v1078
        %v1080 = vlaneseq
        %v1081 = vshrl.u32 %v1080, 7
        %v1082 = vsub.s32 %v1079, %v1081
        %v1083 = vrot.slane %v1067, %v1082
        %v1085 = vunpack.c.l.s4 1966171168
        %v1086 = vunpack.c.0.s8 %v1085
        %v1087 = vlaneseq
        %v1088 = vshrl.u32 %v1087, 7
        %v1089 = vsub.s32 %v1086, %v1088
        %v1090 = vrot.slane %v1074, %v1089
        %v1092 = vunpack.c.l.s4 1966171168
        %v1093 = vunpack.c.0.s8 %v1092
        %v1094 = vlaneseq
        %v1095 = vshrl.u32 %v1094, 7
        %v1096 = vsub.s32 %v1093, %v1095
        %v1097 = vrot.slane %v1075, %v1096
        %v1099 = vunpack.c.l.s4 1966171168
        %v1100 = vunpack.c.0.s8 %v1099
        %v1101 = vlaneseq
        %v1102 = vshrl.u32 %v1101, 7
        %v1103 = vsub.s32 %v1100, %v1102
        %v1104 = vrot.slane %v1076, %v1103
        %v1105 = vcombine.high %v1083, %v1083
        %v1106 = vcombine.high %v1090, %v1090
        %v1107 = vcombine.high %v1097, %v1097
        %v1108 = vcombine.high %v1104, %v1104
        %v1109 = vcombine.high %v941, %v941
        %v1111 = vunpack.c.l.s4 1966171168
        %v1112 = vunpack.c.0.s8 %v1111
        %v1113 = vlaneseq
        %v1114 = vshrl.u32 %v1113, 7
        %v1115 = vsub.s32 %v1112, %v1114
        %v1116 = vrot.slane %v941, %v1115
        %v1118 = vunpack.c.l.s4 1966171168
        %v1119 = vunpack.c.0.s8 %v1118
        %v1120 = vlaneseq
        %v1121 = vshrl.u32 %v1120, 7
        %v1122 = vsub.s32 %v1119, %v1121
        %v1123 = vrot.slane %v1109, %v1122
        %v1124 = vcombine.high %v1116, %v1116
        %v1125 = vcombine.high %v1123, %v1123
        %v1127 = vunpack.c.l.s4 1966171168
        %v1128 = vunpack.c.0.s8 %v1127
        %v1129 = vlaneseq
        %v1130 = vshrl.u32 %v1129, 7
        %v1131 = vsub.s32 %v1128, %v1130
        %v1132 = vrot.slane %v1116, %v1131
        %v1134 = vunpack.c.l.s4 1966171168
        %v1135 = vunpack.c.0.s8 %v1134
        %v1136 = vlaneseq
        %v1137 = vshrl.u32 %v1136, 7
        %v1138 = vsub.s32 %v1135, %v1137
        %v1139 = vrot.slane %v1123, %v1138
        %v1141 = vunpack.c.l.s4 1966171168
        %v1142 = vunpack.c.0.s8 %v1141
        %v1143 = vlaneseq
        %v1144 = vshrl.u32 %v1143, 7
        %v1145 = vsub.s32 %v1142, %v1144
        %v1146 = vrot.slane %v1124, %v1145
        %v1148 = vunpack.c.l.s4 1966171168
        %v1149 = vunpack.c.0.s8 %v1148
        %v1150 = vlaneseq
        %v1151 = vshrl.u32 %v1150, 7
        %v1152 = vsub.s32 %v1149, %v1151
        %v1153 = vrot.slane %v1125, %v1152
        %v1154 = vcombine.high %v1132, %v1132
        %v1155 = vcombine.high %v1139, %v1139
        %v1156 = vcombine.high %v1146, %v1146
        %v1157 = vcombine.high %v1153, %v1153
        %v1158 = vcombine.high %v942, %v942
        %v1160 = vunpack.c.l.s4 1966171168
        %v1161 = vunpack.c.0.s8 %v1160
        %v1162 = vlaneseq
        %v1163 = vshrl.u32 %v1162, 7
        %v1164 = vsub.s32 %v1161, %v1163
        %v1165 = vrot.slane %v942, %v1164
        %v1167 = vunpack.c.l.s4 1966171168
        %v1168 = vunpack.c.0.s8 %v1167
        %v1169 = vlaneseq
        %v1170 = vshrl.u32 %v1169, 7
        %v1171 = vsub.s32 %v1168, %v1170
        %v1172 = vrot.slane %v1158, %v1171
        %v1173 = vcombine.high %v1165, %v1165
        %v1174 = vcombine.high %v1172, %v1172
        %v1176 = vunpack.c.l.s4 1966171168
        %v1177 = vunpack.c.0.s8 %v1176
        %v1178 = vlaneseq
        %v1179 = vshrl.u32 %v1178, 7
        %v1180 = vsub.s32 %v1177, %v1179
        %v1181 = vrot.slane %v1165, %v1180
        %v1183 = vunpack.c.l.s4 1966171168
        %v1184 = vunpack.c.0.s8 %v1183
        %v1185 = vlaneseq
        %v1186 = vshrl.u32 %v1185, 7
        %v1187 = vsub.s32 %v1184, %v1186
        %v1188 = vrot.slane %v1172, %v1187
        %v1190 = vunpack.c.l.s4 1966171168
        %v1191 = vunpack.c.0.s8 %v1190
        %v1192 = vlaneseq
        %v1193 = vshrl.u32 %v1192, 7
        %v1194 = vsub.s32 %v1191, %v1193
        %v1195 = vrot.slane %v1173, %v1194
        %v1197 = vunpack.c.l.s4 1966171168
        %v1198 = vunpack.c.0.s8 %v1197
        %v1199 = vlaneseq
        %v1200 = vshrl.u32 %v1199, 7
        %v1201 = vsub.s32 %v1198, %v1200
        %v1202 = vrot.slane %v1174, %v1201
        %v1203 = vcombine.high %v1181, %v1181
        %v1204 = vcombine.high %v1188, %v1188
        %v1205 = vcombine.high %v1195, %v1195
        %v1206 = vcombine.high %v1202, %v1202
        %v1207 = vcombine.high %v943, %v943
        %v1209 = vunpack.c.l.s4 1966171168
        %v1210 = vunpack.c.0.s8 %v1209
        %v1211 = vlaneseq
        %v1212 = vshrl.u32 %v1211, 7
        %v1213 = vsub.s32 %v1210, %v1212
        %v1214 = vrot.slane %v943, %v1213
        %v1216 = vunpack.c.l.s4 1966171168
        %v1217 = vunpack.c.0.s8 %v1216
        %v1218 = vlaneseq
        %v1219 = vshrl.u32 %v1218, 7
        %v1220 = vsub.s32 %v1217, %v1219
        %v1221 = vrot.slane %v1207, %v1220
        %v1222 = vcombine.high %v1214, %v1214
        %v1223 = vcombine.high %v1221, %v1221
        %v1225 = vunpack.c.l.s4 1966171168
        %v1226 = vunpack.c.0.s8 %v1225
        %v1227 = vlaneseq
        %v1228 = vshrl.u32 %v1227, 7
        %v1229 = vsub.s32 %v1226, %v1228
        %v1230 = vrot.slane %v1214, %v1229
        %v1232 = vunpack.c.l.s4 1966171168
        %v1233 = vunpack.c.0.s8 %v1232
        %v1234 = vlaneseq
        %v1235 = vshrl.u32 %v1234, 7
        %v1236 = vsub.s32 %v1233, %v1235
        %v1237 = vrot.slane %v1221, %v1236
        %v1239 = vunpack.c.l.s4 1966171168
        %v1240 = vunpack.c.0.s8 %v1239
        %v1241 = vlaneseq
        %v1242 = vshrl.u32 %v1241, 7
        %v1243 = vsub.s32 %v1240, %v1242
        %v1244 = vrot.slane %v1222, %v1243
        %v1246 = vunpack.c.l.s4 1966171168
        %v1247 = vunpack.c.0.s8 %v1246
        %v1248 = vlaneseq
        %v1249 = vshrl.u32 %v1248, 7
        %v1250 = vsub.s32 %v1247, %v1249
        %v1251 = vrot.slane %v1223, %v1250
        %v1252 = vcombine.high %v1230, %v1230
        %v1253 = vcombine.high %v1237, %v1237
        %v1254 = vcombine.high %v1244, %v1244
        %v1255 = vcombine.high %v1251, %v1251
        %v1256 = vcombine.high %v944, %v944
        %v1258 = vunpack.c.l.s4 1966171168
        %v1259 = vunpack.c.0.s8 %v1258
        %v1260 = vlaneseq
        %v1261 = vshrl.u32 %v1260, 7
        %v1262 = vsub.s32 %v1259, %v1261
        %v1263 = vrot.slane %v944, %v1262
        %v1265 = vunpack.c.l.s4 1966171168
        %v1266 = vunpack.c.0.s8 %v1265
        %v1267 = vlaneseq
        %v1268 = vshrl.u32 %v1267, 7
        %v1269 = vsub.s32 %v1266, %v1268
        %v1270 = vrot.slane %v1256, %v1269
        %v1271 = vcombine.high %v1263, %v1263
        %v1272 = vcombine.high %v1270, %v1270
        %v1274 = vunpack.c.l.s4 1966171168
        %v1275 = vunpack.c.0.s8 %v1274
        %v1276 = vlaneseq
        %v1277 = vshrl.u32 %v1276, 7
        %v1278 = vsub.s32 %v1275, %v1277
        %v1279 = vrot.slane %v1263, %v1278
        %v1281 = vunpack.c.l.s4 1966171168
        %v1282 = vunpack.c.0.s8 %v1281
        %v1283 = vlaneseq
        %v1284 = vshrl.u32 %v1283, 7
        %v1285 = vsub.s32 %v1282, %v1284
        %v1286 = vrot.slane %v1270, %v1285
        %v1288 = vunpack.c.l.s4 1966171168
        %v1289 = vunpack.c.0.s8 %v1288
        %v1290 = vlaneseq
        %v1291 = vshrl.u32 %v1290, 7
        %v1292 = vsub.s32 %v1289, %v1291
        %v1293 = vrot.slane %v1271, %v1292
        %v1295 = vunpack.c.l.s4 1966171168
        %v1296 = vunpack.c.0.s8 %v1295
        %v1297 = vlaneseq
        %v1298 = vshrl.u32 %v1297, 7
        %v1299 = vsub.s32 %v1296, %v1298
        %v1300 = vrot.slane %v1272, %v1299
        %v1301 = vcombine.high %v1279, %v1279
        %v1302 = vcombine.high %v1286, %v1286
        %v1303 = vcombine.high %v1293, %v1293
        %v1304 = vcombine.high %v1300, %v1300
        %v1305 = vcombine.high %v945, %v945
        %v1307 = vunpack.c.l.s4 1966171168
        %v1308 = vunpack.c.0.s8 %v1307
        %v1309 = vlaneseq
        %v1310 = vshrl.u32 %v1309, 7
        %v1311 = vsub.s32 %v1308, %v1310
        %v1312 = vrot.slane %v945, %v1311
        %v1314 = vunpack.c.l.s4 1966171168
        %v1315 = vunpack.c.0.s8 %v1314
        %v1316 = vlaneseq
        %v1317 = vshrl.u32 %v1316, 7
        %v1318 = vsub.s32 %v1315, %v1317
        %v1319 = vrot.slane %v1305, %v1318
        %v1320 = vcombine.high %v1312, %v1312
        %v1321 = vcombine.high %v1319, %v1319
        %v1323 = vunpack.c.l.s4 1966171168
        %v1324 = vunpack.c.0.s8 %v1323
        %v1325 = vlaneseq
        %v1326 = vshrl.u32 %v1325, 7
        %v1327 = vsub.s32 %v1324, %v1326
        %v1328 = vrot.slane %v1312, %v1327
        %v1330 = vunpack.c.l.s4 1966171168
        %v1331 = vunpack.c.0.s8 %v1330
        %v1332 = vlaneseq
        %v1333 = vshrl.u32 %v1332, 7
        %v1334 = vsub.s32 %v1331, %v1333
        %v1335 = vrot.slane %v1319, %v1334
        %v1337 = vunpack.c.l.s4 1966171168
        %v1338 = vunpack.c.0.s8 %v1337
        %v1339 = vlaneseq
        %v1340 = vshrl.u32 %v1339, 7
        %v1341 = vsub.s32 %v1338, %v1340
        %v1342 = vrot.slane %v1320, %v1341
        %v1344 = vunpack.c.l.s4 1966171168
        %v1345 = vunpack.c.0.s8 %v1344
        %v1346 = vlaneseq
        %v1347 = vshrl.u32 %v1346, 7
        %v1348 = vsub.s32 %v1345, %v1347
        %v1349 = vrot.slane %v1321, %v1348
        %v1350 = vcombine.high %v1328, %v1328
        %v1351 = vcombine.high %v1335, %v1335
        %v1352 = vcombine.high %v1342, %v1342
        %v1353 = vcombine.high %v1349, %v1349
        %v1354 = vld [vmem:[%s5] sm:$0xff]
        %v1355 = vlaneseq
        %v1356 = vshrl.u32 %v1355, 7
        %v1357 = vsub.s32 0, %v1356
        %v1358 = vrot.slane %v985, %v1357
        %v1359 = vlaneseq
        %v1360 = vshrl.u32 %v1359, 7
        %v1361 = vsub.s32 0, %v1360
        %v1362 = vrot.slane %v999, %v1361
        %v1363 = vlaneseq
        %v1364 = vshrl.u32 %v1363, 7
        %v1365 = vsub.s32 0, %v1364
        %v1366 = vrot.slane %v1007, %v1365
        %v1367 = vlaneseq
        %v1368 = vshrl.u32 %v1367, 7
        %v1369 = vsub.s32 0, %v1368
        %v1370 = vrot.slane %v1009, %v1369
        %v1371 = vlaneseq
        %v1372 = vshrl.u32 %v1371, 7
        %v1373 = vsub.s32 0, %v1372
        %v1374 = vrot.slane %v992, %v1373
        %v1375 = vlaneseq
        %v1376 = vshrl.u32 %v1375, 7
        %v1377 = vsub.s32 0, %v1376
        %v1378 = vrot.slane %v1006, %v1377
        %v1379 = vlaneseq
        %v1380 = vshrl.u32 %v1379, 7
        %v1381 = vsub.s32 0, %v1380
        %v1382 = vrot.slane %v1008, %v1381
        %v1383 = vlaneseq
        %v1384 = vshrl.u32 %v1383, 7
        %v1385 = vsub.s32 0, %v1384
        %v1386 = vrot.slane %v1010, %v1385
        %v1387 = vlaneseq
        %v1388 = vshrl.u32 %v1387, 7
        %v1389 = vsub.s32 0, %v1388
        %v1390 = vrot.slane %v1034, %v1389
        %v1391 = vlaneseq
        %v1392 = vshrl.u32 %v1391, 7
        %v1393 = vsub.s32 0, %v1392
        %v1394 = vrot.slane %v1048, %v1393
        %v1395 = vlaneseq
        %v1396 = vshrl.u32 %v1395, 7
        %v1397 = vsub.s32 0, %v1396
        %v1398 = vrot.slane %v1056, %v1397
        %v1399 = vlaneseq
        %v1400 = vshrl.u32 %v1399, 7
        %v1401 = vsub.s32 0, %v1400
        %v1402 = vrot.slane %v1058, %v1401
        %v1403 = vlaneseq
        %v1404 = vshrl.u32 %v1403, 7
        %v1405 = vsub.s32 0, %v1404
        %v1406 = vrot.slane %v1041, %v1405
        %v1407 = vlaneseq
        %v1408 = vshrl.u32 %v1407, 7
        %v1409 = vsub.s32 0, %v1408
        %v1410 = vrot.slane %v1055, %v1409
        %v1411 = vlaneseq
        %v1412 = vshrl.u32 %v1411, 7
        %v1413 = vsub.s32 0, %v1412
        %v1414 = vrot.slane %v1057, %v1413
        %v1415 = vlaneseq
        %v1416 = vshrl.u32 %v1415, 7
        %v1417 = vsub.s32 0, %v1416
        %v1418 = vrot.slane %v1059, %v1417
        %v1419 = vlaneseq
        %v1420 = vshrl.u32 %v1419, 7
        %v1421 = vsub.s32 0, %v1420
        %v1422 = vrot.slane %v1083, %v1421
        %v1423 = vlaneseq
        %v1424 = vshrl.u32 %v1423, 7
        %v1425 = vsub.s32 0, %v1424
        %v1426 = vrot.slane %v1097, %v1425
        %v1427 = vlaneseq
        %v1428 = vshrl.u32 %v1427, 7
        %v1429 = vsub.s32 0, %v1428
        %v1430 = vrot.slane %v1105, %v1429
        %v1431 = vlaneseq
        %v1432 = vshrl.u32 %v1431, 7
        %v1433 = vsub.s32 0, %v1432
        %v1434 = vrot.slane %v1107, %v1433
        %v1435 = vlaneseq
        %v1436 = vshrl.u32 %v1435, 7
        %v1437 = vsub.s32 0, %v1436
        %v1438 = vrot.slane %v1090, %v1437
        %v1439 = vlaneseq
        %v1440 = vshrl.u32 %v1439, 7
        %v1441 = vsub.s32 0, %v1440
        %v1442 = vrot.slane %v1104, %v1441
        %v1443 = vlaneseq
        %v1444 = vshrl.u32 %v1443, 7
        %v1445 = vsub.s32 0, %v1444
        %v1446 = vrot.slane %v1106, %v1445
        %v1447 = vlaneseq
        %v1448 = vshrl.u32 %v1447, 7
        %v1449 = vsub.s32 0, %v1448
        %v1450 = vrot.slane %v1108, %v1449
        %v1451 = vlaneseq
        %v1452 = vshrl.u32 %v1451, 7
        %v1453 = vsub.s32 0, %v1452
        %v1454 = vrot.slane %v1132, %v1453
        %v1455 = vlaneseq
        %v1456 = vshrl.u32 %v1455, 7
        %v1457 = vsub.s32 0, %v1456
        %v1458 = vrot.slane %v1146, %v1457
        %v1459 = vlaneseq
        %v1460 = vshrl.u32 %v1459, 7
        %v1461 = vsub.s32 0, %v1460
        %v1462 = vrot.slane %v1154, %v1461
        %v1463 = vlaneseq
        %v1464 = vshrl.u32 %v1463, 7
        %v1465 = vsub.s32 0, %v1464
        %v1466 = vrot.slane %v1156, %v1465
        %v1467 = vlaneseq
        %v1468 = vshrl.u32 %v1467, 7
        %v1469 = vsub.s32 0, %v1468
        %v1470 = vrot.slane %v1139, %v1469
        %v1471 = vlaneseq
        %v1472 = vshrl.u32 %v1471, 7
        %v1473 = vsub.s32 0, %v1472
        %v1474 = vrot.slane %v1153, %v1473
        %v1475 = vlaneseq
        %v1476 = vshrl.u32 %v1475, 7
        %v1477 = vsub.s32 0, %v1476
        %v1478 = vrot.slane %v1155, %v1477
        %v1479 = vlaneseq
        %v1480 = vshrl.u32 %v1479, 7
        %v1481 = vsub.s32 0, %v1480
        %v1482 = vrot.slane %v1157, %v1481
        %v1483 = vlaneseq
        %v1484 = vshrl.u32 %v1483, 7
        %v1485 = vsub.s32 0, %v1484
        %v1486 = vrot.slane %v1181, %v1485
        %v1487 = vlaneseq
        %v1488 = vshrl.u32 %v1487, 7
        %v1489 = vsub.s32 0, %v1488
        %v1490 = vrot.slane %v1195, %v1489
        %v1491 = vlaneseq
        %v1492 = vshrl.u32 %v1491, 7
        %v1493 = vsub.s32 0, %v1492
        %v1494 = vrot.slane %v1203, %v1493
        %v1495 = vlaneseq
        %v1496 = vshrl.u32 %v1495, 7
        %v1497 = vsub.s32 0, %v1496
        %v1498 = vrot.slane %v1205, %v1497
        %v1499 = vlaneseq
        %v1500 = vshrl.u32 %v1499, 7
        %v1501 = vsub.s32 0, %v1500
        %v1502 = vrot.slane %v1188, %v1501
        %v1503 = vlaneseq
        %v1504 = vshrl.u32 %v1503, 7
        %v1505 = vsub.s32 0, %v1504
        %v1506 = vrot.slane %v1202, %v1505
        %v1507 = vlaneseq
        %v1508 = vshrl.u32 %v1507, 7
        %v1509 = vsub.s32 0, %v1508
        %v1510 = vrot.slane %v1204, %v1509
        %v1511 = vlaneseq
        %v1512 = vshrl.u32 %v1511, 7
        %v1513 = vsub.s32 0, %v1512
        %v1514 = vrot.slane %v1206, %v1513
        %v1515 = vlaneseq
        %v1516 = vshrl.u32 %v1515, 7
        %v1517 = vsub.s32 0, %v1516
        %v1518 = vrot.slane %v1230, %v1517
        %v1519 = vlaneseq
        %v1520 = vshrl.u32 %v1519, 7
        %v1521 = vsub.s32 0, %v1520
        %v1522 = vrot.slane %v1244, %v1521
        %v1523 = vlaneseq
        %v1524 = vshrl.u32 %v1523, 7
        %v1525 = vsub.s32 0, %v1524
        %v1526 = vrot.slane %v1252, %v1525
        %v1527 = vlaneseq
        %v1528 = vshrl.u32 %v1527, 7
        %v1529 = vsub.s32 0, %v1528
        %v1530 = vrot.slane %v1254, %v1529
        %v1531 = vlaneseq
        %v1532 = vshrl.u32 %v1531, 7
        %v1533 = vsub.s32 0, %v1532
        %v1534 = vrot.slane %v1237, %v1533
        %v1535 = vlaneseq
        %v1536 = vshrl.u32 %v1535, 7
        %v1537 = vsub.s32 0, %v1536
        %v1538 = vrot.slane %v1251, %v1537
        %v1539 = vlaneseq
        %v1540 = vshrl.u32 %v1539, 7
        %v1541 = vsub.s32 0, %v1540
        %v1542 = vrot.slane %v1253, %v1541
        %v1543 = vlaneseq
        %v1544 = vshrl.u32 %v1543, 7
        %v1545 = vsub.s32 0, %v1544
        %v1546 = vrot.slane %v1255, %v1545
        %v1547 = vlaneseq
        %v1548 = vshrl.u32 %v1547, 7
        %v1549 = vsub.s32 0, %v1548
        %v1550 = vrot.slane %v1279, %v1549
        %v1551 = vlaneseq
        %v1552 = vshrl.u32 %v1551, 7
        %v1553 = vsub.s32 0, %v1552
        %v1554 = vrot.slane %v1293, %v1553
        %v1555 = vlaneseq
        %v1556 = vshrl.u32 %v1555, 7
        %v1557 = vsub.s32 0, %v1556
        %v1558 = vrot.slane %v1301, %v1557
        %v1559 = vlaneseq
        %v1560 = vshrl.u32 %v1559, 7
        %v1561 = vsub.s32 0, %v1560
        %v1562 = vrot.slane %v1303, %v1561
        %v1563 = vlaneseq
        %v1564 = vshrl.u32 %v1563, 7
        %v1565 = vsub.s32 0, %v1564
        %v1566 = vrot.slane %v1286, %v1565
        %v1567 = vlaneseq
        %v1568 = vshrl.u32 %v1567, 7
        %v1569 = vsub.s32 0, %v1568
        %v1570 = vrot.slane %v1300, %v1569
        %v1571 = vlaneseq
        %v1572 = vshrl.u32 %v1571, 7
        %v1573 = vsub.s32 0, %v1572
        %v1574 = vrot.slane %v1302, %v1573
        %v1575 = vlaneseq
        %v1576 = vshrl.u32 %v1575, 7
        %v1577 = vsub.s32 0, %v1576
        %v1578 = vrot.slane %v1304, %v1577
        %v1579 = vlaneseq
        %v1580 = vshrl.u32 %v1579, 7
        %v1581 = vsub.s32 0, %v1580
        %v1582 = vrot.slane %v1328, %v1581
        %v1583 = vlaneseq
        %v1584 = vshrl.u32 %v1583, 7
        %v1585 = vsub.s32 0, %v1584
        %v1586 = vrot.slane %v1342, %v1585
        %v1587 = vlaneseq
        %v1588 = vshrl.u32 %v1587, 7
        %v1589 = vsub.s32 0, %v1588
        %v1590 = vrot.slane %v1350, %v1589
        %v1591 = vlaneseq
        %v1592 = vshrl.u32 %v1591, 7
        %v1593 = vsub.s32 0, %v1592
        %v1594 = vrot.slane %v1352, %v1593
        %v1595 = vlaneseq
        %v1596 = vshrl.u32 %v1595, 7
        %v1597 = vsub.s32 0, %v1596
        %v1598 = vrot.slane %v1335, %v1597
        %v1599 = vlaneseq
        %v1600 = vshrl.u32 %v1599, 7
        %v1601 = vsub.s32 0, %v1600
        %v1602 = vrot.slane %v1349, %v1601
        %v1603 = vlaneseq
        %v1604 = vshrl.u32 %v1603, 7
        %v1605 = vsub.s32 0, %v1604
        %v1606 = vrot.slane %v1351, %v1605
        %v1607 = vlaneseq
        %v1608 = vshrl.u32 %v1607, 7
        %v1609 = vsub.s32 0, %v1608
        %v1610 = vrot.slane %v1353, %v1609
        %v1675 = vmul.f32 %v1358, %v1354
        %v1676 = vmul.f32 %v1362, %v1354
        %v1677 = vmul.f32 %v1366, %v1354
        %v1678 = vmul.f32 %v1370, %v1354
        %v1679 = vmul.f32 %v1374, %v1354
        %v1680 = vmul.f32 %v1378, %v1354
        %v1681 = vmul.f32 %v1382, %v1354
        %v1682 = vmul.f32 %v1386, %v1354
        %v1683 = vmul.f32 %v1390, %v1354
        %v1684 = vmul.f32 %v1394, %v1354
        %v1685 = vmul.f32 %v1398, %v1354
        %v1686 = vmul.f32 %v1402, %v1354
        %v1687 = vmul.f32 %v1406, %v1354
        %v1688 = vmul.f32 %v1410, %v1354
        %v1689 = vmul.f32 %v1414, %v1354
        %v1690 = vmul.f32 %v1418, %v1354
        %v1691 = vmul.f32 %v1422, %v1354
        %v1692 = vmul.f32 %v1426, %v1354
        %v1693 = vmul.f32 %v1430, %v1354
        %v1694 = vmul.f32 %v1434, %v1354
        %v1695 = vmul.f32 %v1438, %v1354
        %v1696 = vmul.f32 %v1442, %v1354
        %v1697 = vmul.f32 %v1446, %v1354
        %v1698 = vmul.f32 %v1450, %v1354
        %v1699 = vmul.f32 %v1454, %v1354
        %v1700 = vmul.f32 %v1458, %v1354
        %v1701 = vmul.f32 %v1462, %v1354
        %v1702 = vmul.f32 %v1466, %v1354
        %v1703 = vmul.f32 %v1470, %v1354
        %v1704 = vmul.f32 %v1474, %v1354
        %v1705 = vmul.f32 %v1478, %v1354
        %v1706 = vmul.f32 %v1482, %v1354
        %v1707 = vmul.f32 %v1486, %v1354
        %v1708 = vmul.f32 %v1490, %v1354
        %v1709 = vmul.f32 %v1494, %v1354
        %v1710 = vmul.f32 %v1498, %v1354
        %v1711 = vmul.f32 %v1502, %v1354
        %v1712 = vmul.f32 %v1506, %v1354
        %v1713 = vmul.f32 %v1510, %v1354
        %v1714 = vmul.f32 %v1514, %v1354
        %v1715 = vmul.f32 %v1518, %v1354
        %v1716 = vmul.f32 %v1522, %v1354
        %v1717 = vmul.f32 %v1526, %v1354
        %v1718 = vmul.f32 %v1530, %v1354
        %v1719 = vmul.f32 %v1534, %v1354
        %v1720 = vmul.f32 %v1538, %v1354
        %v1721 = vmul.f32 %v1542, %v1354
        %v1722 = vmul.f32 %v1546, %v1354
        %v1723 = vmul.f32 %v1550, %v1354
        %v1724 = vmul.f32 %v1554, %v1354
        %v1725 = vmul.f32 %v1558, %v1354
        %v1726 = vmul.f32 %v1562, %v1354
        %v1727 = vmul.f32 %v1566, %v1354
        %v1728 = vmul.f32 %v1570, %v1354
        %v1729 = vmul.f32 %v1574, %v1354
        %v1730 = vmul.f32 %v1578, %v1354
        %v1731 = vmul.f32 %v1582, %v1354
        %v1732 = vmul.f32 %v1586, %v1354
        %v1733 = vmul.f32 %v1590, %v1354
        %v1734 = vmul.f32 %v1594, %v1354
        %v1735 = vmul.f32 %v1598, %v1354
        %v1736 = vmul.f32 %v1602, %v1354
        %v1737 = vmul.f32 %v1606, %v1354
        %v1738 = vmul.f32 %v1610, %v1354
        %v1739 = vmul.f32 %v1675, 1.442695
        %v1740 = vpow.pop %v1739
        %v1741 = vmul.f32 %v1676, 1.442695
        %v1742 = vpow.pop %v1741
        %v1743 = vmul.f32 %v1677, 1.442695
        %v1744 = vpow.pop %v1743
        %v1745 = vmul.f32 %v1678, 1.442695
        %v1746 = vpow.pop %v1745
        %v1747 = vmul.f32 %v1679, 1.442695
        %v1748 = vpow.pop %v1747
        %v1749 = vmul.f32 %v1680, 1.442695
        %v1750 = vpow.pop %v1749
        %v1751 = vmul.f32 %v1681, 1.442695
        %v1752 = vpow.pop %v1751
        %v1753 = vmul.f32 %v1682, 1.442695
        %v1754 = vpow.pop %v1753
        %v1755 = vmul.f32 %v1683, 1.442695
        %v1756 = vpow.pop %v1755
        %v1757 = vmul.f32 %v1684, 1.442695
        %v1758 = vpow.pop %v1757
        %v1759 = vmul.f32 %v1685, 1.442695
        %v1760 = vpow.pop %v1759
        %v1761 = vmul.f32 %v1686, 1.442695
        %v1762 = vpow.pop %v1761
        %v1763 = vmul.f32 %v1687, 1.442695
        %v1764 = vpow.pop %v1763
        %v1765 = vmul.f32 %v1688, 1.442695
        %v1766 = vpow.pop %v1765
        %v1767 = vmul.f32 %v1689, 1.442695
        %v1768 = vpow.pop %v1767
        %v1769 = vmul.f32 %v1690, 1.442695
        %v1770 = vpow.pop %v1769
        %v1771 = vmul.f32 %v1691, 1.442695
        %v1772 = vpow.pop %v1771
        %v1773 = vmul.f32 %v1692, 1.442695
        %v1774 = vpow.pop %v1773
        %v1775 = vmul.f32 %v1693, 1.442695
        %v1776 = vpow.pop %v1775
        %v1777 = vmul.f32 %v1694, 1.442695
        %v1778 = vpow.pop %v1777
        %v1779 = vmul.f32 %v1695, 1.442695
        %v1780 = vpow.pop %v1779
        %v1781 = vmul.f32 %v1696, 1.442695
        %v1782 = vpow.pop %v1781
        %v1783 = vmul.f32 %v1697, 1.442695
        %v1784 = vpow.pop %v1783
        %v1785 = vmul.f32 %v1698, 1.442695
        %v1786 = vpow.pop %v1785
        %v1787 = vmul.f32 %v1699, 1.442695
        %v1788 = vpow.pop %v1787
        %v1789 = vmul.f32 %v1700, 1.442695
        %v1790 = vpow.pop %v1789
        %v1791 = vmul.f32 %v1701, 1.442695
        %v1792 = vpow.pop %v1791
        %v1793 = vmul.f32 %v1702, 1.442695
        %v1794 = vpow.pop %v1793
        %v1795 = vmul.f32 %v1703, 1.442695
        %v1796 = vpow.pop %v1795
        %v1797 = vmul.f32 %v1704, 1.442695
        %v1798 = vpow.pop %v1797
        %v1799 = vmul.f32 %v1705, 1.442695
        %v1800 = vpow.pop %v1799
        %v1801 = vmul.f32 %v1706, 1.442695
        %v1802 = vpow.pop %v1801
        %v1803 = vmul.f32 %v1707, 1.442695
        %v1804 = vpow.pop %v1803
        %v1805 = vmul.f32 %v1708, 1.442695
        %v1806 = vpow.pop %v1805
        %v1807 = vmul.f32 %v1709, 1.442695
        %v1808 = vpow.pop %v1807
        %v1809 = vmul.f32 %v1710, 1.442695
        %v1810 = vpow.pop %v1809
        %v1811 = vmul.f32 %v1711, 1.442695
        %v1812 = vpow.pop %v1811
        %v1813 = vmul.f32 %v1712, 1.442695
        %v1814 = vpow.pop %v1813
        %v1815 = vmul.f32 %v1713, 1.442695
        %v1816 = vpow.pop %v1815
        %v1817 = vmul.f32 %v1714, 1.442695
        %v1818 = vpow.pop %v1817
        %v1819 = vmul.f32 %v1715, 1.442695
        %v1820 = vpow.pop %v1819
        %v1821 = vmul.f32 %v1716, 1.442695
        %v1822 = vpow.pop %v1821
        %v1823 = vmul.f32 %v1717, 1.442695
        %v1824 = vpow.pop %v1823
        %v1825 = vmul.f32 %v1718, 1.442695
        %v1826 = vpow.pop %v1825
        %v1827 = vmul.f32 %v1719, 1.442695
        %v1828 = vpow.pop %v1827
        %v1829 = vmul.f32 %v1720, 1.442695
        %v1830 = vpow.pop %v1829
        %v1831 = vmul.f32 %v1721, 1.442695
        %v1832 = vpow.pop %v1831
        %v1833 = vmul.f32 %v1722, 1.442695
        %v1834 = vpow.pop %v1833
        %v1835 = vmul.f32 %v1723, 1.442695
        %v1836 = vpow.pop %v1835
        %v1837 = vmul.f32 %v1724, 1.442695
        %v1838 = vpow.pop %v1837
        %v1839 = vmul.f32 %v1725, 1.442695
        %v1840 = vpow.pop %v1839
        %v1841 = vmul.f32 %v1726, 1.442695
        %v1842 = vpow.pop %v1841
        %v1843 = vmul.f32 %v1727, 1.442695
        %v1844 = vpow.pop %v1843
        %v1845 = vmul.f32 %v1728, 1.442695
        %v1846 = vpow.pop %v1845
        %v1847 = vmul.f32 %v1729, 1.442695
        %v1848 = vpow.pop %v1847
        %v1849 = vmul.f32 %v1730, 1.442695
        %v1850 = vpow.pop %v1849
        %v1851 = vmul.f32 %v1731, 1.442695
        %v1852 = vpow.pop %v1851
        %v1853 = vmul.f32 %v1732, 1.442695
        %v1854 = vpow.pop %v1853
        %v1855 = vmul.f32 %v1733, 1.442695
        %v1856 = vpow.pop %v1855
        %v1857 = vmul.f32 %v1734, 1.442695
        %v1858 = vpow.pop %v1857
        %v1859 = vmul.f32 %v1735, 1.442695
        %v1860 = vpow.pop %v1859
        %v1861 = vmul.f32 %v1736, 1.442695
        %v1862 = vpow.pop %v1861
        %v1863 = vmul.f32 %v1737, 1.442695
        %v1864 = vpow.pop %v1863
        %v1865 = vmul.f32 %v1738, 1.442695
        %v1866 = vpow.pop %v1865
        %1867 = vst [vmem:[#allocation2] sm:$0xff] %v1740
        %1868 = vst [vmem:[#allocation2 + $0x8] sm:$0xff] %v1742
        %1869 = vst [vmem:[#allocation2 + $0x10] sm:$0xff] %v1744
        %1870 = vst [vmem:[#allocation2 + $0x18] sm:$0xff] %v1746
        %1871 = vst [vmem:[#allocation2 + $0x20] sm:$0xff] %v1748
        %1872 = vst [vmem:[#allocation2 + $0x28] sm:$0xff] %v1750
        %1873 = vst [vmem:[#allocation2 + $0x30] sm:$0xff] %v1752
        %1874 = vst [vmem:[#allocation2 + $0x38] sm:$0xff] %v1754
        %1875 = vst [vmem:[#allocation2 + $0x40] sm:$0xff] %v1756
        %1876 = vst [vmem:[#allocation2 + $0x48] sm:$0xff] %v1758
        %1877 = vst [vmem:[#allocation2 + $0x50] sm:$0xff] %v1760
        %1878 = vst [vmem:[#allocation2 + $0x58] sm:$0xff] %v1762
        %1879 = vst [vmem:[#allocation2 + $0x60] sm:$0xff] %v1764
        %1880 = vst [vmem:[#allocation2 + $0x68] sm:$0xff] %v1766
        %1881 = vst [vmem:[#allocation2 + $0x70] sm:$0xff] %v1768
        %1882 = vst [vmem:[#allocation2 + $0x78] sm:$0xff] %v1770
        %1883 = vst [vmem:[#allocation2 + $0x80] sm:$0xff] %v1772
        %1884 = vst [vmem:[#allocation2 + $0x88] sm:$0xff] %v1774
        %1885 = vst [vmem:[#allocation2 + $0x90] sm:$0xff] %v1776
        %1886 = vst [vmem:[#allocation2 + $0x98] sm:$0xff] %v1778
        %1887 = vst [vmem:[#allocation2 + $0xa0] sm:$0xff] %v1780
        %1888 = vst [vmem:[#allocation2 + $0xa8] sm:$0xff] %v1782
        %1889 = vst [vmem:[#allocation2 + $0xb0] sm:$0xff] %v1784
        %1890 = vst [vmem:[#allocation2 + $0xb8] sm:$0xff] %v1786
        %1891 = vst [vmem:[#allocation2 + $0xc0] sm:$0xff] %v1788
        %1892 = vst [vmem:[#allocation2 + $0xc8] sm:$0xff] %v1790
        %1893 = vst [vmem:[#allocation2 + $0xd0] sm:$0xff] %v1792
        %1894 = vst [vmem:[#allocation2 + $0xd8] sm:$0xff] %v1794
        %1895 = vst [vmem:[#allocation2 + $0xe0] sm:$0xff] %v1796
        %1896 = vst [vmem:[#allocation2 + $0xe8] sm:$0xff] %v1798
        %1897 = vst [vmem:[#allocation2 + $0xf0] sm:$0xff] %v1800
        %1898 = vst [vmem:[#allocation2 + $0xf8] sm:$0xff] %v1802
        %1899 = vst [vmem:[#allocation2 + $0x100] sm:$0xff] %v1804
        %1900 = vst [vmem:[#allocation2 + $0x108] sm:$0xff] %v1806
        %1901 = vst [vmem:[#allocation2 + $0x110] sm:$0xff] %v1808
        %1902 = vst [vmem:[#allocation2 + $0x118] sm:$0xff] %v1810
        %1903 = vst [vmem:[#allocation2 + $0x120] sm:$0xff] %v1812
        %1904 = vst [vmem:[#allocation2 + $0x128] sm:$0xff] %v1814
        %1905 = vst [vmem:[#allocation2 + $0x130] sm:$0xff] %v1816
        %1906 = vst [vmem:[#allocation2 + $0x138] sm:$0xff] %v1818
        %1907 = vst [vmem:[#allocation2 + $0x140] sm:$0xff] %v1820
        %1908 = vst [vmem:[#allocation2 + $0x148] sm:$0xff] %v1822
        %1909 = vst [vmem:[#allocation2 + $0x150] sm:$0xff] %v1824
        %1910 = vst [vmem:[#allocation2 + $0x158] sm:$0xff] %v1826
        %1911 = vst [vmem:[#allocation2 + $0x160] sm:$0xff] %v1828
        %1912 = vst [vmem:[#allocation2 + $0x168] sm:$0xff] %v1830
        %1913 = vst [vmem:[#allocation2 + $0x170] sm:$0xff] %v1832
        %1914 = vst [vmem:[#allocation2 + $0x178] sm:$0xff] %v1834
        %1915 = vst [vmem:[#allocation2 + $0x180] sm:$0xff] %v1836
        %1916 = vst [vmem:[#allocation2 + $0x188] sm:$0xff] %v1838
        %1917 = vst [vmem:[#allocation2 + $0x190] sm:$0xff] %v1840
        %1918 = vst [vmem:[#allocation2 + $0x198] sm:$0xff] %v1842
        %1919 = vst [vmem:[#allocation2 + $0x1a0] sm:$0xff] %v1844
        %1920 = vst [vmem:[#allocation2 + $0x1a8] sm:$0xff] %v1846
        %1921 = vst [vmem:[#allocation2 + $0x1b0] sm:$0xff] %v1848
        %1922 = vst [vmem:[#allocation2 + $0x1b8] sm:$0xff] %v1850
        %1923 = vst [vmem:[#allocation2 + $0x1c0] sm:$0xff] %v1852
        %1924 = vst [vmem:[#allocation2 + $0x1c8] sm:$0xff] %v1854
        %1925 = vst [vmem:[#allocation2 + $0x1d0] sm:$0xff] %v1856
        %1926 = vst [vmem:[#allocation2 + $0x1d8] sm:$0xff] %v1858
        %1927 = vst [vmem:[#allocation2 + $0x1e0] sm:$0xff] %v1860
        %1928 = vst [vmem:[#allocation2 + $0x1e8] sm:$0xff] %v1862
        %1929 = vst [vmem:[#allocation2 + $0x1f0] sm:$0xff] %v1864
        %1930 = vst [vmem:[#allocation2 + $0x1f8] sm:$0xff] %v1866
        %v1939 = vcombine.high %v946, %v946
        %v1941 = vunpack.c.l.s4 1966171168
        %v1942 = vunpack.c.0.s8 %v1941
        %v1943 = vlaneseq
        %v1944 = vshrl.u32 %v1943, 7
        %v1945 = vsub.s32 %v1942, %v1944
        %v1946 = vrot.slane %v946, %v1945
        %v1948 = vunpack.c.l.s4 1966171168
        %v1949 = vunpack.c.0.s8 %v1948
        %v1950 = vlaneseq
        %v1951 = vshrl.u32 %v1950, 7
        %v1952 = vsub.s32 %v1949, %v1951
        %v1953 = vrot.slane %v1939, %v1952
        %v1954 = vcombine.high %v1946, %v1946
        %v1955 = vcombine.high %v1953, %v1953
        %v1957 = vunpack.c.l.s4 1966171168
        %v1958 = vunpack.c.0.s8 %v1957
        %v1959 = vlaneseq
        %v1960 = vshrl.u32 %v1959, 7
        %v1961 = vsub.s32 %v1958, %v1960
        %v1962 = vrot.slane %v1946, %v1961
        %v1964 = vunpack.c.l.s4 1966171168
        %v1965 = vunpack.c.0.s8 %v1964
        %v1966 = vlaneseq
        %v1967 = vshrl.u32 %v1966, 7
        %v1968 = vsub.s32 %v1965, %v1967
        %v1969 = vrot.slane %v1953, %v1968
        %v1971 = vunpack.c.l.s4 1966171168
        %v1972 = vunpack.c.0.s8 %v1971
        %v1973 = vlaneseq
        %v1974 = vshrl.u32 %v1973, 7
        %v1975 = vsub.s32 %v1972, %v1974
        %v1976 = vrot.slane %v1954, %v1975
        %v1978 = vunpack.c.l.s4 1966171168
        %v1979 = vunpack.c.0.s8 %v1978
        %v1980 = vlaneseq
        %v1981 = vshrl.u32 %v1980, 7
        %v1982 = vsub.s32 %v1979, %v1981
        %v1983 = vrot.slane %v1955, %v1982
        %v1984 = vcombine.high %v1962, %v1962
        %v1985 = vcombine.high %v1969, %v1969
        %v1986 = vcombine.high %v1976, %v1976
        %v1987 = vcombine.high %v1983, %v1983
        %v1988 = vcombine.high %v947, %v947
        %v1990 = vunpack.c.l.s4 1966171168
        %v1991 = vunpack.c.0.s8 %v1990
        %v1992 = vlaneseq
        %v1993 = vshrl.u32 %v1992, 7
        %v1994 = vsub.s32 %v1991, %v1993
        %v1995 = vrot.slane %v947, %v1994
        %v1997 = vunpack.c.l.s4 1966171168
        %v1998 = vunpack.c.0.s8 %v1997
        %v1999 = vlaneseq
        %v2000 = vshrl.u32 %v1999, 7
        %v2001 = vsub.s32 %v1998, %v2000
        %v2002 = vrot.slane %v1988, %v2001
        %v2003 = vcombine.high %v1995, %v1995
        %v2004 = vcombine.high %v2002, %v2002
        %v2006 = vunpack.c.l.s4 1966171168
        %v2007 = vunpack.c.0.s8 %v2006
        %v2008 = vlaneseq
        %v2009 = vshrl.u32 %v2008, 7
        %v2010 = vsub.s32 %v2007, %v2009
        %v2011 = vrot.slane %v1995, %v2010
        %v2013 = vunpack.c.l.s4 1966171168
        %v2014 = vunpack.c.0.s8 %v2013
        %v2015 = vlaneseq
        %v2016 = vshrl.u32 %v2015, 7
        %v2017 = vsub.s32 %v2014, %v2016
        %v2018 = vrot.slane %v2002, %v2017
        %v2020 = vunpack.c.l.s4 1966171168
        %v2021 = vunpack.c.0.s8 %v2020
        %v2022 = vlaneseq
        %v2023 = vshrl.u32 %v2022, 7
        %v2024 = vsub.s32 %v2021, %v2023
        %v2025 = vrot.slane %v2003, %v2024
        %v2027 = vunpack.c.l.s4 1966171168
        %v2028 = vunpack.c.0.s8 %v2027
        %v2029 = vlaneseq
        %v2030 = vshrl.u32 %v2029, 7
        %v2031 = vsub.s32 %v2028, %v2030
        %v2032 = vrot.slane %v2004, %v2031
        %v2033 = vcombine.high %v2011, %v2011
        %v2034 = vcombine.high %v2018, %v2018
        %v2035 = vcombine.high %v2025, %v2025
        %v2036 = vcombine.high %v2032, %v2032
        %v2037 = vcombine.high %v948, %v948
        %v2039 = vunpack.c.l.s4 1966171168
        %v2040 = vunpack.c.0.s8 %v2039
        %v2041 = vlaneseq
        %v2042 = vshrl.u32 %v2041, 7
        %v2043 = vsub.s32 %v2040, %v2042
        %v2044 = vrot.slane %v948, %v2043
        %v2046 = vunpack.c.l.s4 1966171168
        %v2047 = vunpack.c.0.s8 %v2046
        %v2048 = vlaneseq
        %v2049 = vshrl.u32 %v2048, 7
        %v2050 = vsub.s32 %v2047, %v2049
        %v2051 = vrot.slane %v2037, %v2050
        %v2052 = vcombine.high %v2044, %v2044
        %v2053 = vcombine.high %v2051, %v2051
        %v2055 = vunpack.c.l.s4 1966171168
        %v2056 = vunpack.c.0.s8 %v2055
        %v2057 = vlaneseq
        %v2058 = vshrl.u32 %v2057, 7
        %v2059 = vsub.s32 %v2056, %v2058
        %v2060 = vrot.slane %v2044, %v2059
        %v2062 = vunpack.c.l.s4 1966171168
        %v2063 = vunpack.c.0.s8 %v2062
        %v2064 = vlaneseq
        %v2065 = vshrl.u32 %v2064, 7
        %v2066 = vsub.s32 %v2063, %v2065
        %v2067 = vrot.slane %v2051, %v2066
        %v2069 = vunpack.c.l.s4 1966171168
        %v2070 = vunpack.c.0.s8 %v2069
        %v2071 = vlaneseq
        %v2072 = vshrl.u32 %v2071, 7
        %v2073 = vsub.s32 %v2070, %v2072
        %v2074 = vrot.slane %v2052, %v2073
        %v2076 = vunpack.c.l.s4 1966171168
        %v2077 = vunpack.c.0.s8 %v2076
        %v2078 = vlaneseq
        %v2079 = vshrl.u32 %v2078, 7
        %v2080 = vsub.s32 %v2077, %v2079
        %v2081 = vrot.slane %v2053, %v2080
        %v2082 = vcombine.high %v2060, %v2060
        %v2083 = vcombine.high %v2067, %v2067
        %v2084 = vcombine.high %v2074, %v2074
        %v2085 = vcombine.high %v2081, %v2081
        %v2086 = vcombine.high %v949, %v949
        %v2088 = vunpack.c.l.s4 1966171168
        %v2089 = vunpack.c.0.s8 %v2088
        %v2090 = vlaneseq
        %v2091 = vshrl.u32 %v2090, 7
        %v2092 = vsub.s32 %v2089, %v2091
        %v2093 = vrot.slane %v949, %v2092
        %v2095 = vunpack.c.l.s4 1966171168
        %v2096 = vunpack.c.0.s8 %v2095
        %v2097 = vlaneseq
        %v2098 = vshrl.u32 %v2097, 7
        %v2099 = vsub.s32 %v2096, %v2098
        %v2100 = vrot.slane %v2086, %v2099
        %v2101 = vcombine.high %v2093, %v2093
        %v2102 = vcombine.high %v2100, %v2100
        %v2104 = vunpack.c.l.s4 1966171168
        %v2105 = vunpack.c.0.s8 %v2104
        %v2106 = vlaneseq
        %v2107 = vshrl.u32 %v2106, 7
        %v2108 = vsub.s32 %v2105, %v2107
        %v2109 = vrot.slane %v2093, %v2108
        %v2111 = vunpack.c.l.s4 1966171168
        %v2112 = vunpack.c.0.s8 %v2111
        %v2113 = vlaneseq
        %v2114 = vshrl.u32 %v2113, 7
        %v2115 = vsub.s32 %v2112, %v2114
        %v2116 = vrot.slane %v2100, %v2115
        %v2118 = vunpack.c.l.s4 1966171168
        %v2119 = vunpack.c.0.s8 %v2118
        %v2120 = vlaneseq
        %v2121 = vshrl.u32 %v2120, 7
        %v2122 = vsub.s32 %v2119, %v2121
        %v2123 = vrot.slane %v2101, %v2122
        %v2125 = vunpack.c.l.s4 1966171168
        %v2126 = vunpack.c.0.s8 %v2125
        %v2127 = vlaneseq
        %v2128 = vshrl.u32 %v2127, 7
        %v2129 = vsub.s32 %v2126, %v2128
        %v2130 = vrot.slane %v2102, %v2129
        %v2131 = vcombine.high %v2109, %v2109
        %v2132 = vcombine.high %v2116, %v2116
        %v2133 = vcombine.high %v2123, %v2123
        %v2134 = vcombine.high %v2130, %v2130
        %v2135 = vcombine.high %v950, %v950
        %v2137 = vunpack.c.l.s4 1966171168
        %v2138 = vunpack.c.0.s8 %v2137
        %v2139 = vlaneseq
        %v2140 = vshrl.u32 %v2139, 7
        %v2141 = vsub.s32 %v2138, %v2140
        %v2142 = vrot.slane %v950, %v2141
        %v2144 = vunpack.c.l.s4 1966171168
        %v2145 = vunpack.c.0.s8 %v2144
        %v2146 = vlaneseq
        %v2147 = vshrl.u32 %v2146, 7
        %v2148 = vsub.s32 %v2145, %v2147
        %v2149 = vrot.slane %v2135, %v2148
        %v2150 = vcombine.high %v2142, %v2142
        %v2151 = vcombine.high %v2149, %v2149
        %v2153 = vunpack.c.l.s4 1966171168
        %v2154 = vunpack.c.0.s8 %v2153
        %v2155 = vlaneseq
        %v2156 = vshrl.u32 %v2155, 7
        %v2157 = vsub.s32 %v2154, %v2156
        %v2158 = vrot.slane %v2142, %v2157
        %v2160 = vunpack.c.l.s4 1966171168
        %v2161 = vunpack.c.0.s8 %v2160
        %v2162 = vlaneseq
        %v2163 = vshrl.u32 %v2162, 7
        %v2164 = vsub.s32 %v2161, %v2163
        %v2165 = vrot.slane %v2149, %v2164
        %v2167 = vunpack.c.l.s4 1966171168
        %v2168 = vunpack.c.0.s8 %v2167
        %v2169 = vlaneseq
        %v2170 = vshrl.u32 %v2169, 7
        %v2171 = vsub.s32 %v2168, %v2170
        %v2172 = vrot.slane %v2150, %v2171
        %v2174 = vunpack.c.l.s4 1966171168
        %v2175 = vunpack.c.0.s8 %v2174
        %v2176 = vlaneseq
        %v2177 = vshrl.u32 %v2176, 7
        %v2178 = vsub.s32 %v2175, %v2177
        %v2179 = vrot.slane %v2151, %v2178
        %v2180 = vcombine.high %v2158, %v2158
        %v2181 = vcombine.high %v2165, %v2165
        %v2182 = vcombine.high %v2172, %v2172
        %v2183 = vcombine.high %v2179, %v2179
        %v2184 = vcombine.high %v951, %v951
        %v2186 = vunpack.c.l.s4 1966171168
        %v2187 = vunpack.c.0.s8 %v2186
        %v2188 = vlaneseq
        %v2189 = vshrl.u32 %v2188, 7
        %v2190 = vsub.s32 %v2187, %v2189
        %v2191 = vrot.slane %v951, %v2190
        %v2193 = vunpack.c.l.s4 1966171168
        %v2194 = vunpack.c.0.s8 %v2193
        %v2195 = vlaneseq
        %v2196 = vshrl.u32 %v2195, 7
        %v2197 = vsub.s32 %v2194, %v2196
        %v2198 = vrot.slane %v2184, %v2197
        %v2199 = vcombine.high %v2191, %v2191
        %v2200 = vcombine.high %v2198, %v2198
        %v2202 = vunpack.c.l.s4 1966171168
        %v2203 = vunpack.c.0.s8 %v2202
        %v2204 = vlaneseq
        %v2205 = vshrl.u32 %v2204, 7
        %v2206 = vsub.s32 %v2203, %v2205
        %v2207 = vrot.slane %v2191, %v2206
        %v2209 = vunpack.c.l.s4 1966171168
        %v2210 = vunpack.c.0.s8 %v2209
        %v2211 = vlaneseq
        %v2212 = vshrl.u32 %v2211, 7
        %v2213 = vsub.s32 %v2210, %v2212
        %v2214 = vrot.slane %v2198, %v2213
        %v2216 = vunpack.c.l.s4 1966171168
        %v2217 = vunpack.c.0.s8 %v2216
        %v2218 = vlaneseq
        %v2219 = vshrl.u32 %v2218, 7
        %v2220 = vsub.s32 %v2217, %v2219
        %v2221 = vrot.slane %v2199, %v2220
        %v2223 = vunpack.c.l.s4 1966171168
        %v2224 = vunpack.c.0.s8 %v2223
        %v2225 = vlaneseq
        %v2226 = vshrl.u32 %v2225, 7
        %v2227 = vsub.s32 %v2224, %v2226
        %v2228 = vrot.slane %v2200, %v2227
        %v2229 = vcombine.high %v2207, %v2207
        %v2230 = vcombine.high %v2214, %v2214
        %v2231 = vcombine.high %v2221, %v2221
        %v2232 = vcombine.high %v2228, %v2228
        %v2233 = vcombine.high %v952, %v952
        %v2235 = vunpack.c.l.s4 1966171168
        %v2236 = vunpack.c.0.s8 %v2235
        %v2237 = vlaneseq
        %v2238 = vshrl.u32 %v2237, 7
        %v2239 = vsub.s32 %v2236, %v2238
        %v2240 = vrot.slane %v952, %v2239
        %v2242 = vunpack.c.l.s4 1966171168
        %v2243 = vunpack.c.0.s8 %v2242
        %v2244 = vlaneseq
        %v2245 = vshrl.u32 %v2244, 7
        %v2246 = vsub.s32 %v2243, %v2245
        %v2247 = vrot.slane %v2233, %v2246
        %v2248 = vcombine.high %v2240, %v2240
        %v2249 = vcombine.high %v2247, %v2247
        %v2251 = vunpack.c.l.s4 1966171168
        %v2252 = vunpack.c.0.s8 %v2251
        %v2253 = vlaneseq
        %v2254 = vshrl.u32 %v2253, 7
        %v2255 = vsub.s32 %v2252, %v2254
        %v2256 = vrot.slane %v2240, %v2255
        %v2258 = vunpack.c.l.s4 1966171168
        %v2259 = vunpack.c.0.s8 %v2258
        %v2260 = vlaneseq
        %v2261 = vshrl.u32 %v2260, 7
        %v2262 = vsub.s32 %v2259, %v2261
        %v2263 = vrot.slane %v2247, %v2262
        %v2265 = vunpack.c.l.s4 1966171168
        %v2266 = vunpack.c.0.s8 %v2265
        %v2267 = vlaneseq
        %v2268 = vshrl.u32 %v2267, 7
        %v2269 = vsub.s32 %v2266, %v2268
        %v2270 = vrot.slane %v2248, %v2269
        %v2272 = vunpack.c.l.s4 1966171168
        %v2273 = vunpack.c.0.s8 %v2272
        %v2274 = vlaneseq
        %v2275 = vshrl.u32 %v2274, 7
        %v2276 = vsub.s32 %v2273, %v2275
        %v2277 = vrot.slane %v2249, %v2276
        %v2278 = vcombine.high %v2256, %v2256
        %v2279 = vcombine.high %v2263, %v2263
        %v2280 = vcombine.high %v2270, %v2270
        %v2281 = vcombine.high %v2277, %v2277
        %v2282 = vcombine.high %v953, %v953
        %v2284 = vunpack.c.l.s4 1966171168
        %v2285 = vunpack.c.0.s8 %v2284
        %v2286 = vlaneseq
        %v2287 = vshrl.u32 %v2286, 7
        %v2288 = vsub.s32 %v2285, %v2287
        %v2289 = vrot.slane %v953, %v2288
        %v2291 = vunpack.c.l.s4 1966171168
        %v2292 = vunpack.c.0.s8 %v2291
        %v2293 = vlaneseq
        %v2294 = vshrl.u32 %v2293, 7
        %v2295 = vsub.s32 %v2292, %v2294
        %v2296 = vrot.slane %v2282, %v2295
        %v2297 = vcombine.high %v2289, %v2289
        %v2298 = vcombine.high %v2296, %v2296
        %v2300 = vunpack.c.l.s4 1966171168
        %v2301 = vunpack.c.0.s8 %v2300
        %v2302 = vlaneseq
        %v2303 = vshrl.u32 %v2302, 7
        %v2304 = vsub.s32 %v2301, %v2303
        %v2305 = vrot.slane %v2289, %v2304
        %v2307 = vunpack.c.l.s4 1966171168
        %v2308 = vunpack.c.0.s8 %v2307
        %v2309 = vlaneseq
        %v2310 = vshrl.u32 %v2309, 7
        %v2311 = vsub.s32 %v2308, %v2310
        %v2312 = vrot.slane %v2296, %v2311
        %v2314 = vunpack.c.l.s4 1966171168
        %v2315 = vunpack.c.0.s8 %v2314
        %v2316 = vlaneseq
        %v2317 = vshrl.u32 %v2316, 7
        %v2318 = vsub.s32 %v2315, %v2317
        %v2319 = vrot.slane %v2297, %v2318
        %v2321 = vunpack.c.l.s4 1966171168
        %v2322 = vunpack.c.0.s8 %v2321
        %v2323 = vlaneseq
        %v2324 = vshrl.u32 %v2323, 7
        %v2325 = vsub.s32 %v2322, %v2324
        %v2326 = vrot.slane %v2298, %v2325
        %v2327 = vcombine.high %v2305, %v2305
        %v2328 = vcombine.high %v2312, %v2312
        %v2329 = vcombine.high %v2319, %v2319
        %v2330 = vcombine.high %v2326, %v2326
        %v2331 = vld [vmem:[#allocation15] sm:$0xff]
        %v2332 = vlaneseq
        %v2333 = vshrl.u32 %v2332, 7
        %v2334 = vsub.s32 0, %v2333
        %v2335 = vrot.slane %v1962, %v2334
        %v2336 = vlaneseq
        %v2337 = vshrl.u32 %v2336, 7
        %v2338 = vsub.s32 0, %v2337
        %v2339 = vrot.slane %v1976, %v2338
        %v2340 = vlaneseq
        %v2341 = vshrl.u32 %v2340, 7
        %v2342 = vsub.s32 0, %v2341
        %v2343 = vrot.slane %v1984, %v2342
        %v2344 = vlaneseq
        %v2345 = vshrl.u32 %v2344, 7
        %v2346 = vsub.s32 0, %v2345
        %v2347 = vrot.slane %v1986, %v2346
        %v2348 = vlaneseq
        %v2349 = vshrl.u32 %v2348, 7
        %v2350 = vsub.s32 0, %v2349
        %v2351 = vrot.slane %v1969, %v2350
        %v2352 = vlaneseq
        %v2353 = vshrl.u32 %v2352, 7
        %v2354 = vsub.s32 0, %v2353
        %v2355 = vrot.slane %v1983, %v2354
        %v2356 = vlaneseq
        %v2357 = vshrl.u32 %v2356, 7
        %v2358 = vsub.s32 0, %v2357
        %v2359 = vrot.slane %v1985, %v2358
        %v2360 = vlaneseq
        %v2361 = vshrl.u32 %v2360, 7
        %v2362 = vsub.s32 0, %v2361
        %v2363 = vrot.slane %v1987, %v2362
        %v2364 = vlaneseq
        %v2365 = vshrl.u32 %v2364, 7
        %v2366 = vsub.s32 0, %v2365
        %v2367 = vrot.slane %v2011, %v2366
        %v2368 = vlaneseq
        %v2369 = vshrl.u32 %v2368, 7
        %v2370 = vsub.s32 0, %v2369
        %v2371 = vrot.slane %v2025, %v2370
        %v2372 = vlaneseq
        %v2373 = vshrl.u32 %v2372, 7
        %v2374 = vsub.s32 0, %v2373
        %v2375 = vrot.slane %v2033, %v2374
        %v2376 = vlaneseq
        %v2377 = vshrl.u32 %v2376, 7
        %v2378 = vsub.s32 0, %v2377
        %v2379 = vrot.slane %v2035, %v2378
        %v2380 = vlaneseq
        %v2381 = vshrl.u32 %v2380, 7
        %v2382 = vsub.s32 0, %v2381
        %v2383 = vrot.slane %v2018, %v2382
        %v2384 = vlaneseq
        %v2385 = vshrl.u32 %v2384, 7
        %v2386 = vsub.s32 0, %v2385
        %v2387 = vrot.slane %v2032, %v2386
        %v2388 = vlaneseq
        %v2389 = vshrl.u32 %v2388, 7
        %v2390 = vsub.s32 0, %v2389
        %v2391 = vrot.slane %v2034, %v2390
        %v2392 = vlaneseq
        %v2393 = vshrl.u32 %v2392, 7
        %v2394 = vsub.s32 0, %v2393
        %v2395 = vrot.slane %v2036, %v2394
        %v2396 = vlaneseq
        %v2397 = vshrl.u32 %v2396, 7
        %v2398 = vsub.s32 0, %v2397
        %v2399 = vrot.slane %v2060, %v2398
        %v2400 = vlaneseq
        %v2401 = vshrl.u32 %v2400, 7
        %v2402 = vsub.s32 0, %v2401
        %v2403 = vrot.slane %v2074, %v2402
        %v2404 = vlaneseq
        %v2405 = vshrl.u32 %v2404, 7
        %v2406 = vsub.s32 0, %v2405
        %v2407 = vrot.slane %v2082, %v2406
        %v2408 = vlaneseq
        %v2409 = vshrl.u32 %v2408, 7
        %v2410 = vsub.s32 0, %v2409
        %v2411 = vrot.slane %v2084, %v2410
        %v2412 = vlaneseq
        %v2413 = vshrl.u32 %v2412, 7
        %v2414 = vsub.s32 0, %v2413
        %v2415 = vrot.slane %v2067, %v2414
        %v2416 = vlaneseq
        %v2417 = vshrl.u32 %v2416, 7
        %v2418 = vsub.s32 0, %v2417
        %v2419 = vrot.slane %v2081, %v2418
        %v2420 = vlaneseq
        %v2421 = vshrl.u32 %v2420, 7
        %v2422 = vsub.s32 0, %v2421
        %v2423 = vrot.slane %v2083, %v2422
        %v2424 = vlaneseq
        %v2425 = vshrl.u32 %v2424, 7
        %v2426 = vsub.s32 0, %v2425
        %v2427 = vrot.slane %v2085, %v2426
        %v2428 = vlaneseq
        %v2429 = vshrl.u32 %v2428, 7
        %v2430 = vsub.s32 0, %v2429
        %v2431 = vrot.slane %v2109, %v2430
        %v2432 = vlaneseq
        %v2433 = vshrl.u32 %v2432, 7
        %v2434 = vsub.s32 0, %v2433
        %v2435 = vrot.slane %v2123, %v2434
        %v2436 = vlaneseq
        %v2437 = vshrl.u32 %v2436, 7
        %v2438 = vsub.s32 0, %v2437
        %v2439 = vrot.slane %v2131, %v2438
        %v2440 = vlaneseq
        %v2441 = vshrl.u32 %v2440, 7
        %v2442 = vsub.s32 0, %v2441
        %v2443 = vrot.slane %v2133, %v2442
        %v2444 = vlaneseq
        %v2445 = vshrl.u32 %v2444, 7
        %v2446 = vsub.s32 0, %v2445
        %v2447 = vrot.slane %v2116, %v2446
        %v2448 = vlaneseq
        %v2449 = vshrl.u32 %v2448, 7
        %v2450 = vsub.s32 0, %v2449
        %v2451 = vrot.slane %v2130, %v2450
        %v2452 = vlaneseq
        %v2453 = vshrl.u32 %v2452, 7
        %v2454 = vsub.s32 0, %v2453
        %v2455 = vrot.slane %v2132, %v2454
        %v2456 = vlaneseq
        %v2457 = vshrl.u32 %v2456, 7
        %v2458 = vsub.s32 0, %v2457
        %v2459 = vrot.slane %v2134, %v2458
        %v2460 = vlaneseq
        %v2461 = vshrl.u32 %v2460, 7
        %v2462 = vsub.s32 0, %v2461
        %v2463 = vrot.slane %v2158, %v2462
        %v2464 = vlaneseq
        %v2465 = vshrl.u32 %v2464, 7
        %v2466 = vsub.s32 0, %v2465
        %v2467 = vrot.slane %v2172, %v2466
        %v2468 = vlaneseq
        %v2469 = vshrl.u32 %v2468, 7
        %v2470 = vsub.s32 0, %v2469
        %v2471 = vrot.slane %v2180, %v2470
        %v2472 = vlaneseq
        %v2473 = vshrl.u32 %v2472, 7
        %v2474 = vsub.s32 0, %v2473
        %v2475 = vrot.slane %v2182, %v2474
        %v2476 = vlaneseq
        %v2477 = vshrl.u32 %v2476, 7
        %v2478 = vsub.s32 0, %v2477
        %v2479 = vrot.slane %v2165, %v2478
        %v2480 = vlaneseq
        %v2481 = vshrl.u32 %v2480, 7
        %v2482 = vsub.s32 0, %v2481
        %v2483 = vrot.slane %v2179, %v2482
        %v2484 = vlaneseq
        %v2485 = vshrl.u32 %v2484, 7
        %v2486 = vsub.s32 0, %v2485
        %v2487 = vrot.slane %v2181, %v2486
        %v2488 = vlaneseq
        %v2489 = vshrl.u32 %v2488, 7
        %v2490 = vsub.s32 0, %v2489
        %v2491 = vrot.slane %v2183, %v2490
        %v2492 = vlaneseq
        %v2493 = vshrl.u32 %v2492, 7
        %v2494 = vsub.s32 0, %v2493
        %v2495 = vrot.slane %v2207, %v2494
        %v2496 = vlaneseq
        %v2497 = vshrl.u32 %v2496, 7
        %v2498 = vsub.s32 0, %v2497
        %v2499 = vrot.slane %v2221, %v2498
        %v2500 = vlaneseq
        %v2501 = vshrl.u32 %v2500, 7
        %v2502 = vsub.s32 0, %v2501
        %v2503 = vrot.slane %v2229, %v2502
        %v2504 = vlaneseq
        %v2505 = vshrl.u32 %v2504, 7
        %v2506 = vsub.s32 0, %v2505
        %v2507 = vrot.slane %v2231, %v2506
        %v2508 = vlaneseq
        %v2509 = vshrl.u32 %v2508, 7
        %v2510 = vsub.s32 0, %v2509
        %v2511 = vrot.slane %v2214, %v2510
        %v2512 = vlaneseq
        %v2513 = vshrl.u32 %v2512, 7
        %v2514 = vsub.s32 0, %v2513
        %v2515 = vrot.slane %v2228, %v2514
        %v2516 = vlaneseq
        %v2517 = vshrl.u32 %v2516, 7
        %v2518 = vsub.s32 0, %v2517
        %v2519 = vrot.slane %v2230, %v2518
        %v2520 = vlaneseq
        %v2521 = vshrl.u32 %v2520, 7
        %v2522 = vsub.s32 0, %v2521
        %v2523 = vrot.slane %v2232, %v2522
        %v2524 = vlaneseq
        %v2525 = vshrl.u32 %v2524, 7
        %v2526 = vsub.s32 0, %v2525
        %v2527 = vrot.slane %v2256, %v2526
        %v2528 = vlaneseq
        %v2529 = vshrl.u32 %v2528, 7
        %v2530 = vsub.s32 0, %v2529
        %v2531 = vrot.slane %v2270, %v2530
        %v2532 = vlaneseq
        %v2533 = vshrl.u32 %v2532, 7
        %v2534 = vsub.s32 0, %v2533
        %v2535 = vrot.slane %v2278, %v2534
        %v2536 = vlaneseq
        %v2537 = vshrl.u32 %v2536, 7
        %v2538 = vsub.s32 0, %v2537
        %v2539 = vrot.slane %v2280, %v2538
        %v2540 = vlaneseq
        %v2541 = vshrl.u32 %v2540, 7
        %v2542 = vsub.s32 0, %v2541
        %v2543 = vrot.slane %v2263, %v2542
        %v2544 = vlaneseq
        %v2545 = vshrl.u32 %v2544, 7
        %v2546 = vsub.s32 0, %v2545
        %v2547 = vrot.slane %v2277, %v2546
        %v2548 = vlaneseq
        %v2549 = vshrl.u32 %v2548, 7
        %v2550 = vsub.s32 0, %v2549
        %v2551 = vrot.slane %v2279, %v2550
        %v2552 = vlaneseq
        %v2553 = vshrl.u32 %v2552, 7
        %v2554 = vsub.s32 0, %v2553
        %v2555 = vrot.slane %v2281, %v2554
        %v2556 = vlaneseq
        %v2557 = vshrl.u32 %v2556, 7
        %v2558 = vsub.s32 0, %v2557
        %v2559 = vrot.slane %v2305, %v2558
        %v2560 = vlaneseq
        %v2561 = vshrl.u32 %v2560, 7
        %v2562 = vsub.s32 0, %v2561
        %v2563 = vrot.slane %v2319, %v2562
        %v2564 = vlaneseq
        %v2565 = vshrl.u32 %v2564, 7
        %v2566 = vsub.s32 0, %v2565
        %v2567 = vrot.slane %v2327, %v2566
        %v2568 = vlaneseq
        %v2569 = vshrl.u32 %v2568, 7
        %v2570 = vsub.s32 0, %v2569
        %v2571 = vrot.slane %v2329, %v2570
        %v2572 = vlaneseq
        %v2573 = vshrl.u32 %v2572, 7
        %v2574 = vsub.s32 0, %v2573
        %v2575 = vrot.slane %v2312, %v2574
        %v2576 = vlaneseq
        %v2577 = vshrl.u32 %v2576, 7
        %v2578 = vsub.s32 0, %v2577
        %v2579 = vrot.slane %v2326, %v2578
        %v2580 = vlaneseq
        %v2581 = vshrl.u32 %v2580, 7
        %v2582 = vsub.s32 0, %v2581
        %v2583 = vrot.slane %v2328, %v2582
        %v2584 = vlaneseq
        %v2585 = vshrl.u32 %v2584, 7
        %v2586 = vsub.s32 0, %v2585
        %v2587 = vrot.slane %v2330, %v2586
        %v2652 = vmul.f32 %v2335, %v2331
        %v2653 = vmul.f32 %v2339, %v2331
        %v2654 = vmul.f32 %v2343, %v2331
        %v2655 = vmul.f32 %v2347, %v2331
        %v2656 = vmul.f32 %v2351, %v2331
        %v2657 = vmul.f32 %v2355, %v2331
        %v2658 = vmul.f32 %v2359, %v2331
        %v2659 = vmul.f32 %v2363, %v2331
        %v2660 = vmul.f32 %v2367, %v2331
        %v2661 = vmul.f32 %v2371, %v2331
        %v2662 = vmul.f32 %v2375, %v2331
        %v2663 = vmul.f32 %v2379, %v2331
        %v2664 = vmul.f32 %v2383, %v2331
        %v2665 = vmul.f32 %v2387, %v2331
        %v2666 = vmul.f32 %v2391, %v2331
        %v2667 = vmul.f32 %v2395, %v2331
        %v2668 = vmul.f32 %v2399, %v2331
        %v2669 = vmul.f32 %v2403, %v2331
        %v2670 = vmul.f32 %v2407, %v2331
        %v2671 = vmul.f32 %v2411, %v2331
        %v2672 = vmul.f32 %v2415, %v2331
        %v2673 = vmul.f32 %v2419, %v2331
        %v2674 = vmul.f32 %v2423, %v2331
        %v2675 = vmul.f32 %v2427, %v2331
        %v2676 = vmul.f32 %v2431, %v2331
        %v2677 = vmul.f32 %v2435, %v2331
        %v2678 = vmul.f32 %v2439, %v2331
        %v2679 = vmul.f32 %v2443, %v2331
        %v2680 = vmul.f32 %v2447, %v2331
        %v2681 = vmul.f32 %v2451, %v2331
        %v2682 = vmul.f32 %v2455, %v2331
        %v2683 = vmul.f32 %v2459, %v2331
        %v2684 = vmul.f32 %v2463, %v2331
        %v2685 = vmul.f32 %v2467, %v2331
        %v2686 = vmul.f32 %v2471, %v2331
        %v2687 = vmul.f32 %v2475, %v2331
        %v2688 = vmul.f32 %v2479, %v2331
        %v2689 = vmul.f32 %v2483, %v2331
        %v2690 = vmul.f32 %v2487, %v2331
        %v2691 = vmul.f32 %v2491, %v2331
        %v2692 = vmul.f32 %v2495, %v2331
        %v2693 = vmul.f32 %v2499, %v2331
        %v2694 = vmul.f32 %v2503, %v2331
        %v2695 = vmul.f32 %v2507, %v2331
        %v2696 = vmul.f32 %v2511, %v2331
        %v2697 = vmul.f32 %v2515, %v2331
        %v2698 = vmul.f32 %v2519, %v2331
        %v2699 = vmul.f32 %v2523, %v2331
        %v2700 = vmul.f32 %v2527, %v2331
        %v2701 = vmul.f32 %v2531, %v2331
        %v2702 = vmul.f32 %v2535, %v2331
        %v2703 = vmul.f32 %v2539, %v2331
        %v2704 = vmul.f32 %v2543, %v2331
        %v2705 = vmul.f32 %v2547, %v2331
        %v2706 = vmul.f32 %v2551, %v2331
        %v2707 = vmul.f32 %v2555, %v2331
        %v2708 = vmul.f32 %v2559, %v2331
        %v2709 = vmul.f32 %v2563, %v2331
        %v2710 = vmul.f32 %v2567, %v2331
        %v2711 = vmul.f32 %v2571, %v2331
        %v2712 = vmul.f32 %v2575, %v2331
        %v2713 = vmul.f32 %v2579, %v2331
        %v2714 = vmul.f32 %v2583, %v2331
        %v2715 = vmul.f32 %v2587, %v2331
        %v2716 = vmul.f32 %v2652, 1.442695
        %v2717 = vpow.pop %v2716
        %v2718 = vmul.f32 %v2653, 1.442695
        %v2719 = vpow.pop %v2718
        %v2720 = vmul.f32 %v2654, 1.442695
        %v2721 = vpow.pop %v2720
        %v2722 = vmul.f32 %v2655, 1.442695
        %v2723 = vpow.pop %v2722
        %v2724 = vmul.f32 %v2656, 1.442695
        %v2725 = vpow.pop %v2724
        %v2726 = vmul.f32 %v2657, 1.442695
        %v2727 = vpow.pop %v2726
        %v2728 = vmul.f32 %v2658, 1.442695
        %v2729 = vpow.pop %v2728
        %v2730 = vmul.f32 %v2659, 1.442695
        %v2731 = vpow.pop %v2730
        %v2732 = vmul.f32 %v2660, 1.442695
        %v2733 = vpow.pop %v2732
        %v2734 = vmul.f32 %v2661, 1.442695
        %v2735 = vpow.pop %v2734
        %v2736 = vmul.f32 %v2662, 1.442695
        %v2737 = vpow.pop %v2736
        %v2738 = vmul.f32 %v2663, 1.442695
        %v2739 = vpow.pop %v2738
        %v2740 = vmul.f32 %v2664, 1.442695
        %v2741 = vpow.pop %v2740
        %v2742 = vmul.f32 %v2665, 1.442695
        %v2743 = vpow.pop %v2742
        %v2744 = vmul.f32 %v2666, 1.442695
        %v2745 = vpow.pop %v2744
        %v2746 = vmul.f32 %v2667, 1.442695
        %v2747 = vpow.pop %v2746
        %v2748 = vmul.f32 %v2668, 1.442695
        %v2749 = vpow.pop %v2748
        %v2750 = vmul.f32 %v2669, 1.442695
        %v2751 = vpow.pop %v2750
        %v2752 = vmul.f32 %v2670, 1.442695
        %v2753 = vpow.pop %v2752
        %v2754 = vmul.f32 %v2671, 1.442695
        %v2755 = vpow.pop %v2754
        %v2756 = vmul.f32 %v2672, 1.442695
        %v2757 = vpow.pop %v2756
        %v2758 = vmul.f32 %v2673, 1.442695
        %v2759 = vpow.pop %v2758
        %v2760 = vmul.f32 %v2674, 1.442695
        %v2761 = vpow.pop %v2760
        %v2762 = vmul.f32 %v2675, 1.442695
        %v2763 = vpow.pop %v2762
        %v2764 = vmul.f32 %v2676, 1.442695
        %v2765 = vpow.pop %v2764
        %v2766 = vmul.f32 %v2677, 1.442695
        %v2767 = vpow.pop %v2766
        %v2768 = vmul.f32 %v2678, 1.442695
        %v2769 = vpow.pop %v2768
        %v2770 = vmul.f32 %v2679, 1.442695
        %v2771 = vpow.pop %v2770
        %v2772 = vmul.f32 %v2680, 1.442695
        %v2773 = vpow.pop %v2772
        %v2774 = vmul.f32 %v2681, 1.442695
        %v2775 = vpow.pop %v2774
        %v2776 = vmul.f32 %v2682, 1.442695
        %v2777 = vpow.pop %v2776
        %v2778 = vmul.f32 %v2683, 1.442695
        %v2779 = vpow.pop %v2778
        %v2780 = vmul.f32 %v2684, 1.442695
        %v2781 = vpow.pop %v2780
        %v2782 = vmul.f32 %v2685, 1.442695
        %v2783 = vpow.pop %v2782
        %v2784 = vmul.f32 %v2686, 1.442695
        %v2785 = vpow.pop %v2784
        %v2786 = vmul.f32 %v2687, 1.442695
        %v2787 = vpow.pop %v2786
        %v2788 = vmul.f32 %v2688, 1.442695
        %v2789 = vpow.pop %v2788
        %v2790 = vmul.f32 %v2689, 1.442695
        %v2791 = vpow.pop %v2790
        %v2792 = vmul.f32 %v2690, 1.442695
        %v2793 = vpow.pop %v2792
        %v2794 = vmul.f32 %v2691, 1.442695
        %v2795 = vpow.pop %v2794
        %v2796 = vmul.f32 %v2692, 1.442695
        %v2797 = vpow.pop %v2796
        %v2798 = vmul.f32 %v2693, 1.442695
        %v2799 = vpow.pop %v2798
        %v2800 = vmul.f32 %v2694, 1.442695
        %v2801 = vpow.pop %v2800
        %v2802 = vmul.f32 %v2695, 1.442695
        %v2803 = vpow.pop %v2802
        %v2804 = vmul.f32 %v2696, 1.442695
        %v2805 = vpow.pop %v2804
        %v2806 = vmul.f32 %v2697, 1.442695
        %v2807 = vpow.pop %v2806
        %v2808 = vmul.f32 %v2698, 1.442695
        %v2809 = vpow.pop %v2808
        %v2810 = vmul.f32 %v2699, 1.442695
        %v2811 = vpow.pop %v2810
        %v2812 = vmul.f32 %v2700, 1.442695
        %v2813 = vpow.pop %v2812
        %v2814 = vmul.f32 %v2701, 1.442695
        %v2815 = vpow.pop %v2814
        %v2816 = vmul.f32 %v2702, 1.442695
        %v2817 = vpow.pop %v2816
        %v2818 = vmul.f32 %v2703, 1.442695
        %v2819 = vpow.pop %v2818
        %v2820 = vmul.f32 %v2704, 1.442695
        %v2821 = vpow.pop %v2820
        %v2822 = vmul.f32 %v2705, 1.442695
        %v2823 = vpow.pop %v2822
        %v2824 = vmul.f32 %v2706, 1.442695
        %v2825 = vpow.pop %v2824
        %v2826 = vmul.f32 %v2707, 1.442695
        %v2827 = vpow.pop %v2826
        %v2828 = vmul.f32 %v2708, 1.442695
        %v2829 = vpow.pop %v2828
        %v2830 = vmul.f32 %v2709, 1.442695
        %v2831 = vpow.pop %v2830
        %v2832 = vmul.f32 %v2710, 1.442695
        %v2833 = vpow.pop %v2832
        %v2834 = vmul.f32 %v2711, 1.442695
        %v2835 = vpow.pop %v2834
        %v2836 = vmul.f32 %v2712, 1.442695
        %v2837 = vpow.pop %v2836
        %v2838 = vmul.f32 %v2713, 1.442695
        %v2839 = vpow.pop %v2838
        %v2840 = vmul.f32 %v2714, 1.442695
        %v2841 = vpow.pop %v2840
        %v2842 = vmul.f32 %v2715, 1.442695
        %v2843 = vpow.pop %v2842
        %2844 = vst [vmem:[#allocation3] sm:$0xff] %v2717
        %2845 = vst [vmem:[#allocation3 + $0x8] sm:$0xff] %v2719
        %2846 = vst [vmem:[#allocation3 + $0x10] sm:$0xff] %v2721
        %2847 = vst [vmem:[#allocation3 + $0x18] sm:$0xff] %v2723
        %2848 = vst [vmem:[#allocation3 + $0x20] sm:$0xff] %v2725
        %2849 = vst [vmem:[#allocation3 + $0x28] sm:$0xff] %v2727
        %2850 = vst [vmem:[#allocation3 + $0x30] sm:$0xff] %v2729
        %2851 = vst [vmem:[#allocation3 + $0x38] sm:$0xff] %v2731
        %2852 = vst [vmem:[#allocation3 + $0x40] sm:$0xff] %v2733
        %2853 = vst [vmem:[#allocation3 + $0x48] sm:$0xff] %v2735
        %2854 = vst [vmem:[#allocation3 + $0x50] sm:$0xff] %v2737
        %2855 = vst [vmem:[#allocation3 + $0x58] sm:$0xff] %v2739
        %2856 = vst [vmem:[#allocation3 + $0x60] sm:$0xff] %v2741
        %2857 = vst [vmem:[#allocation3 + $0x68] sm:$0xff] %v2743
        %2858 = vst [vmem:[#allocation3 + $0x70] sm:$0xff] %v2745
        %2859 = vst [vmem:[#allocation3 + $0x78] sm:$0xff] %v2747
        %2860 = vst [vmem:[#allocation3 + $0x80] sm:$0xff] %v2749
        %2861 = vst [vmem:[#allocation3 + $0x88] sm:$0xff] %v2751
        %2862 = vst [vmem:[#allocation3 + $0x90] sm:$0xff] %v2753
        %2863 = vst [vmem:[#allocation3 + $0x98] sm:$0xff] %v2755
        %2864 = vst [vmem:[#allocation3 + $0xa0] sm:$0xff] %v2757
        %2865 = vst [vmem:[#allocation3 + $0xa8] sm:$0xff] %v2759
        %2866 = vst [vmem:[#allocation3 + $0xb0] sm:$0xff] %v2761
        %2867 = vst [vmem:[#allocation3 + $0xb8] sm:$0xff] %v2763
        %2868 = vst [vmem:[#allocation3 + $0xc0] sm:$0xff] %v2765
        %2869 = vst [vmem:[#allocation3 + $0xc8] sm:$0xff] %v2767
        %2870 = vst [vmem:[#allocation3 + $0xd0] sm:$0xff] %v2769
        %2871 = vst [vmem:[#allocation3 + $0xd8] sm:$0xff] %v2771
        %2872 = vst [vmem:[#allocation3 + $0xe0] sm:$0xff] %v2773
        %2873 = vst [vmem:[#allocation3 + $0xe8] sm:$0xff] %v2775
        %2874 = vst [vmem:[#allocation3 + $0xf0] sm:$0xff] %v2777
        %2875 = vst [vmem:[#allocation3 + $0xf8] sm:$0xff] %v2779
        %2876 = vst [vmem:[#allocation3 + $0x100] sm:$0xff] %v2781
        %2877 = vst [vmem:[#allocation3 + $0x108] sm:$0xff] %v2783
        %2878 = vst [vmem:[#allocation3 + $0x110] sm:$0xff] %v2785
        %2879 = vst [vmem:[#allocation3 + $0x118] sm:$0xff] %v2787
        %2880 = vst [vmem:[#allocation3 + $0x120] sm:$0xff] %v2789
        %2881 = vst [vmem:[#allocation3 + $0x128] sm:$0xff] %v2791
        %2882 = vst [vmem:[#allocation3 + $0x130] sm:$0xff] %v2793
        %2883 = vst [vmem:[#allocation3 + $0x138] sm:$0xff] %v2795
        %2884 = vst [vmem:[#allocation3 + $0x140] sm:$0xff] %v2797
        %2885 = vst [vmem:[#allocation3 + $0x148] sm:$0xff] %v2799
        %2886 = vst [vmem:[#allocation3 + $0x150] sm:$0xff] %v2801
        %2887 = vst [vmem:[#allocation3 + $0x158] sm:$0xff] %v2803
        %2888 = vst [vmem:[#allocation3 + $0x160] sm:$0xff] %v2805
        %2889 = vst [vmem:[#allocation3 + $0x168] sm:$0xff] %v2807
        %2890 = vst [vmem:[#allocation3 + $0x170] sm:$0xff] %v2809
        %2891 = vst [vmem:[#allocation3 + $0x178] sm:$0xff] %v2811
        %2892 = vst [vmem:[#allocation3 + $0x180] sm:$0xff] %v2813
        %2893 = vst [vmem:[#allocation3 + $0x188] sm:$0xff] %v2815
        %2894 = vst [vmem:[#allocation3 + $0x190] sm:$0xff] %v2817
        %2895 = vst [vmem:[#allocation3 + $0x198] sm:$0xff] %v2819
        %2896 = vst [vmem:[#allocation3 + $0x1a0] sm:$0xff] %v2821
        %2897 = vst [vmem:[#allocation3 + $0x1a8] sm:$0xff] %v2823
        %2898 = vst [vmem:[#allocation3 + $0x1b0] sm:$0xff] %v2825
        %2899 = vst [vmem:[#allocation3 + $0x1b8] sm:$0xff] %v2827
        %2900 = vst [vmem:[#allocation3 + $0x1c0] sm:$0xff] %v2829
        %2901 = vst [vmem:[#allocation3 + $0x1c8] sm:$0xff] %v2831
        %2902 = vst [vmem:[#allocation3 + $0x1d0] sm:$0xff] %v2833
        %2903 = vst [vmem:[#allocation3 + $0x1d8] sm:$0xff] %v2835
        %2904 = vst [vmem:[#allocation3 + $0x1e0] sm:$0xff] %v2837
        %2905 = vst [vmem:[#allocation3 + $0x1e8] sm:$0xff] %v2839
        %2906 = vst [vmem:[#allocation3 + $0x1f0] sm:$0xff] %v2841
        %2907 = vst [vmem:[#allocation3 + $0x1f8] sm:$0xff] %v2843
        %v2908 = vadd.f32 %v898, %v915
        %v2909 = vadd.f32 %v899, %v917
        %v2910 = vadd.f32 %v900, %v919
        %v2911 = vadd.f32 %v901, %v921
        %v2912 = vadd.f32 %v902, %v923
        %v2913 = vadd.f32 %v903, %v925
        %v2914 = vadd.f32 %v904, %v927
        %v2915 = vadd.f32 %v905, %v929
        %v2916 = vmul.f32 %v2908, %v660
        %v2917 = vmul.f32 %v2909, %v661
        %v2918 = vmul.f32 %v2910, %v662
        %v2919 = vmul.f32 %v2911, %v663
        %v2920 = vmul.f32 %v2912, %v664
        %v2921 = vmul.f32 %v2913, %v665
        %v2922 = vmul.f32 %v2914, %v666
        %v2923 = vmul.f32 %v2915, %v667
        %v2932 = vcombine.high %v2916, %v2916
        %v2934 = vunpack.c.l.s4 1966171168
        %v2935 = vunpack.c.0.s8 %v2934
        %v2936 = vlaneseq
        %v2937 = vshrl.u32 %v2936, 7
        %v2938 = vsub.s32 %v2935, %v2937
        %v2939 = vrot.slane %v2916, %v2938
        %v2941 = vunpack.c.l.s4 1966171168
        %v2942 = vunpack.c.0.s8 %v2941
        %v2943 = vlaneseq
        %v2944 = vshrl.u32 %v2943, 7
        %v2945 = vsub.s32 %v2942, %v2944
        %v2946 = vrot.slane %v2932, %v2945
        %v2947 = vcombine.high %v2939, %v2939
        %v2948 = vcombine.high %v2946, %v2946
        %v2950 = vunpack.c.l.s4 1966171168
        %v2951 = vunpack.c.0.s8 %v2950
        %v2952 = vlaneseq
        %v2953 = vshrl.u32 %v2952, 7
        %v2954 = vsub.s32 %v2951, %v2953
        %v2955 = vrot.slane %v2939, %v2954
        %v2957 = vunpack.c.l.s4 1966171168
        %v2958 = vunpack.c.0.s8 %v2957
        %v2959 = vlaneseq
        %v2960 = vshrl.u32 %v2959, 7
        %v2961 = vsub.s32 %v2958, %v2960
        %v2962 = vrot.slane %v2946, %v2961
        %v2964 = vunpack.c.l.s4 1966171168
        %v2965 = vunpack.c.0.s8 %v2964
        %v2966 = vlaneseq
        %v2967 = vshrl.u32 %v2966, 7
        %v2968 = vsub.s32 %v2965, %v2967
        %v2969 = vrot.slane %v2947, %v2968
        %v2971 = vunpack.c.l.s4 1966171168
        %v2972 = vunpack.c.0.s8 %v2971
        %v2973 = vlaneseq
        %v2974 = vshrl.u32 %v2973, 7
        %v2975 = vsub.s32 %v2972, %v2974
        %v2976 = vrot.slane %v2948, %v2975
        %v2977 = vcombine.high %v2955, %v2955
        %v2978 = vcombine.high %v2962, %v2962
        %v2979 = vcombine.high %v2969, %v2969
        %v2980 = vcombine.high %v2976, %v2976
        %v2981 = vcombine.high %v2917, %v2917
        %v2983 = vunpack.c.l.s4 1966171168
        %v2984 = vunpack.c.0.s8 %v2983
        %v2985 = vlaneseq
        %v2986 = vshrl.u32 %v2985, 7
        %v2987 = vsub.s32 %v2984, %v2986
        %v2988 = vrot.slane %v2917, %v2987
        %v2990 = vunpack.c.l.s4 1966171168
        %v2991 = vunpack.c.0.s8 %v2990
        %v2992 = vlaneseq
        %v2993 = vshrl.u32 %v2992, 7
        %v2994 = vsub.s32 %v2991, %v2993
        %v2995 = vrot.slane %v2981, %v2994
        %v2996 = vcombine.high %v2988, %v2988
        %v2997 = vcombine.high %v2995, %v2995
        %v2999 = vunpack.c.l.s4 1966171168
        %v3000 = vunpack.c.0.s8 %v2999
        %v3001 = vlaneseq
        %v3002 = vshrl.u32 %v3001, 7
        %v3003 = vsub.s32 %v3000, %v3002
        %v3004 = vrot.slane %v2988, %v3003
        %v3006 = vunpack.c.l.s4 1966171168
        %v3007 = vunpack.c.0.s8 %v3006
        %v3008 = vlaneseq
        %v3009 = vshrl.u32 %v3008, 7
        %v3010 = vsub.s32 %v3007, %v3009
        %v3011 = vrot.slane %v2995, %v3010
        %v3013 = vunpack.c.l.s4 1966171168
        %v3014 = vunpack.c.0.s8 %v3013
        %v3015 = vlaneseq
        %v3016 = vshrl.u32 %v3015, 7
        %v3017 = vsub.s32 %v3014, %v3016
        %v3018 = vrot.slane %v2996, %v3017
        %v3020 = vunpack.c.l.s4 1966171168
        %v3021 = vunpack.c.0.s8 %v3020
        %v3022 = vlaneseq
        %v3023 = vshrl.u32 %v3022, 7
        %v3024 = vsub.s32 %v3021, %v3023
        %v3025 = vrot.slane %v2997, %v3024
        %v3026 = vcombine.high %v3004, %v3004
        %v3027 = vcombine.high %v3011, %v3011
        %v3028 = vcombine.high %v3018, %v3018
        %v3029 = vcombine.high %v3025, %v3025
        %v3030 = vcombine.high %v2918, %v2918
        %v3032 = vunpack.c.l.s4 1966171168
        %v3033 = vunpack.c.0.s8 %v3032
        %v3034 = vlaneseq
        %v3035 = vshrl.u32 %v3034, 7
        %v3036 = vsub.s32 %v3033, %v3035
        %v3037 = vrot.slane %v2918, %v3036
        %v3039 = vunpack.c.l.s4 1966171168
        %v3040 = vunpack.c.0.s8 %v3039
        %v3041 = vlaneseq
        %v3042 = vshrl.u32 %v3041, 7
        %v3043 = vsub.s32 %v3040, %v3042
        %v3044 = vrot.slane %v3030, %v3043
        %v3045 = vcombine.high %v3037, %v3037
        %v3046 = vcombine.high %v3044, %v3044
        %v3048 = vunpack.c.l.s4 1966171168
        %v3049 = vunpack.c.0.s8 %v3048
        %v3050 = vlaneseq
        %v3051 = vshrl.u32 %v3050, 7
        %v3052 = vsub.s32 %v3049, %v3051
        %v3053 = vrot.slane %v3037, %v3052
        %v3055 = vunpack.c.l.s4 1966171168
        %v3056 = vunpack.c.0.s8 %v3055
        %v3057 = vlaneseq
        %v3058 = vshrl.u32 %v3057, 7
        %v3059 = vsub.s32 %v3056, %v3058
        %v3060 = vrot.slane %v3044, %v3059
        %v3062 = vunpack.c.l.s4 1966171168
        %v3063 = vunpack.c.0.s8 %v3062
        %v3064 = vlaneseq
        %v3065 = vshrl.u32 %v3064, 7
        %v3066 = vsub.s32 %v3063, %v3065
        %v3067 = vrot.slane %v3045, %v3066
        %v3069 = vunpack.c.l.s4 1966171168
        %v3070 = vunpack.c.0.s8 %v3069
        %v3071 = vlaneseq
        %v3072 = vshrl.u32 %v3071, 7
        %v3073 = vsub.s32 %v3070, %v3072
        %v3074 = vrot.slane %v3046, %v3073
        %v3075 = vcombine.high %v3053, %v3053
        %v3076 = vcombine.high %v3060, %v3060
        %v3077 = vcombine.high %v3067, %v3067
        %v3078 = vcombine.high %v3074, %v3074
        %v3079 = vcombine.high %v2919, %v2919
        %v3081 = vunpack.c.l.s4 1966171168
        %v3082 = vunpack.c.0.s8 %v3081
        %v3083 = vlaneseq
        %v3084 = vshrl.u32 %v3083, 7
        %v3085 = vsub.s32 %v3082, %v3084
        %v3086 = vrot.slane %v2919, %v3085
        %v3088 = vunpack.c.l.s4 1966171168
        %v3089 = vunpack.c.0.s8 %v3088
        %v3090 = vlaneseq
        %v3091 = vshrl.u32 %v3090, 7
        %v3092 = vsub.s32 %v3089, %v3091
        %v3093 = vrot.slane %v3079, %v3092
        %v3094 = vcombine.high %v3086, %v3086
        %v3095 = vcombine.high %v3093, %v3093
        %v3097 = vunpack.c.l.s4 1966171168
        %v3098 = vunpack.c.0.s8 %v3097
        %v3099 = vlaneseq
        %v3100 = vshrl.u32 %v3099, 7
        %v3101 = vsub.s32 %v3098, %v3100
        %v3102 = vrot.slane %v3086, %v3101
        %v3104 = vunpack.c.l.s4 1966171168
        %v3105 = vunpack.c.0.s8 %v3104
        %v3106 = vlaneseq
        %v3107 = vshrl.u32 %v3106, 7
        %v3108 = vsub.s32 %v3105, %v3107
        %v3109 = vrot.slane %v3093, %v3108
        %v3111 = vunpack.c.l.s4 1966171168
        %v3112 = vunpack.c.0.s8 %v3111
        %v3113 = vlaneseq
        %v3114 = vshrl.u32 %v3113, 7
        %v3115 = vsub.s32 %v3112, %v3114
        %v3116 = vrot.slane %v3094, %v3115
        %v3118 = vunpack.c.l.s4 1966171168
        %v3119 = vunpack.c.0.s8 %v3118
        %v3120 = vlaneseq
        %v3121 = vshrl.u32 %v3120, 7
        %v3122 = vsub.s32 %v3119, %v3121
        %v3123 = vrot.slane %v3095, %v3122
        %v3124 = vcombine.high %v3102, %v3102
        %v3125 = vcombine.high %v3109, %v3109
        %v3126 = vcombine.high %v3116, %v3116
        %v3127 = vcombine.high %v3123, %v3123
        %v3128 = vcombine.high %v2920, %v2920
        %v3130 = vunpack.c.l.s4 1966171168
        %v3131 = vunpack.c.0.s8 %v3130
        %v3132 = vlaneseq
        %v3133 = vshrl.u32 %v3132, 7
        %v3134 = vsub.s32 %v3131, %v3133
        %v3135 = vrot.slane %v2920, %v3134
        %v3137 = vunpack.c.l.s4 1966171168
        %v3138 = vunpack.c.0.s8 %v3137
        %v3139 = vlaneseq
        %v3140 = vshrl.u32 %v3139, 7
        %v3141 = vsub.s32 %v3138, %v3140
        %v3142 = vrot.slane %v3128, %v3141
        %v3143 = vcombine.high %v3135, %v3135
        %v3144 = vcombine.high %v3142, %v3142
        %v3146 = vunpack.c.l.s4 1966171168
        %v3147 = vunpack.c.0.s8 %v3146
        %v3148 = vlaneseq
        %v3149 = vshrl.u32 %v3148, 7
        %v3150 = vsub.s32 %v3147, %v3149
        %v3151 = vrot.slane %v3135, %v3150
        %v3153 = vunpack.c.l.s4 1966171168
        %v3154 = vunpack.c.0.s8 %v3153
        %v3155 = vlaneseq
        %v3156 = vshrl.u32 %v3155, 7
        %v3157 = vsub.s32 %v3154, %v3156
        %v3158 = vrot.slane %v3142, %v3157
        %v3160 = vunpack.c.l.s4 1966171168
        %v3161 = vunpack.c.0.s8 %v3160
        %v3162 = vlaneseq
        %v3163 = vshrl.u32 %v3162, 7
        %v3164 = vsub.s32 %v3161, %v3163
        %v3165 = vrot.slane %v3143, %v3164
        %v3167 = vunpack.c.l.s4 1966171168
        %v3168 = vunpack.c.0.s8 %v3167
        %v3169 = vlaneseq
        %v3170 = vshrl.u32 %v3169, 7
        %v3171 = vsub.s32 %v3168, %v3170
        %v3172 = vrot.slane %v3144, %v3171
        %v3173 = vcombine.high %v3151, %v3151
        %v3174 = vcombine.high %v3158, %v3158
        %v3175 = vcombine.high %v3165, %v3165
        %v3176 = vcombine.high %v3172, %v3172
        %v3177 = vcombine.high %v2921, %v2921
        %v3179 = vunpack.c.l.s4 1966171168
        %v3180 = vunpack.c.0.s8 %v3179
        %v3181 = vlaneseq
        %v3182 = vshrl.u32 %v3181, 7
        %v3183 = vsub.s32 %v3180, %v3182
        %v3184 = vrot.slane %v2921, %v3183
        %v3186 = vunpack.c.l.s4 1966171168
        %v3187 = vunpack.c.0.s8 %v3186
        %v3188 = vlaneseq
        %v3189 = vshrl.u32 %v3188, 7
        %v3190 = vsub.s32 %v3187, %v3189
        %v3191 = vrot.slane %v3177, %v3190
        %v3192 = vcombine.high %v3184, %v3184
        %v3193 = vcombine.high %v3191, %v3191
        %v3195 = vunpack.c.l.s4 1966171168
        %v3196 = vunpack.c.0.s8 %v3195
        %v3197 = vlaneseq
        %v3198 = vshrl.u32 %v3197, 7
        %v3199 = vsub.s32 %v3196, %v3198
        %v3200 = vrot.slane %v3184, %v3199
        %v3202 = vunpack.c.l.s4 1966171168
        %v3203 = vunpack.c.0.s8 %v3202
        %v3204 = vlaneseq
        %v3205 = vshrl.u32 %v3204, 7
        %v3206 = vsub.s32 %v3203, %v3205
        %v3207 = vrot.slane %v3191, %v3206
        %v3209 = vunpack.c.l.s4 1966171168
        %v3210 = vunpack.c.0.s8 %v3209
        %v3211 = vlaneseq
        %v3212 = vshrl.u32 %v3211, 7
        %v3213 = vsub.s32 %v3210, %v3212
        %v3214 = vrot.slane %v3192, %v3213
        %v3216 = vunpack.c.l.s4 1966171168
        %v3217 = vunpack.c.0.s8 %v3216
        %v3218 = vlaneseq
        %v3219 = vshrl.u32 %v3218, 7
        %v3220 = vsub.s32 %v3217, %v3219
        %v3221 = vrot.slane %v3193, %v3220
        %v3222 = vcombine.high %v3200, %v3200
        %v3223 = vcombine.high %v3207, %v3207
        %v3224 = vcombine.high %v3214, %v3214
        %v3225 = vcombine.high %v3221, %v3221
        %v3226 = vcombine.high %v2922, %v2922
        %v3228 = vunpack.c.l.s4 1966171168
        %v3229 = vunpack.c.0.s8 %v3228
        %v3230 = vlaneseq
        %v3231 = vshrl.u32 %v3230, 7
        %v3232 = vsub.s32 %v3229, %v3231
        %v3233 = vrot.slane %v2922, %v3232
        %v3235 = vunpack.c.l.s4 1966171168
        %v3236 = vunpack.c.0.s8 %v3235
        %v3237 = vlaneseq
        %v3238 = vshrl.u32 %v3237, 7
        %v3239 = vsub.s32 %v3236, %v3238
        %v3240 = vrot.slane %v3226, %v3239
        %v3241 = vcombine.high %v3233, %v3233
        %v3242 = vcombine.high %v3240, %v3240
        %v3244 = vunpack.c.l.s4 1966171168
        %v3245 = vunpack.c.0.s8 %v3244
        %v3246 = vlaneseq
        %v3247 = vshrl.u32 %v3246, 7
        %v3248 = vsub.s32 %v3245, %v3247
        %v3249 = vrot.slane %v3233, %v3248
        %v3251 = vunpack.c.l.s4 1966171168
        %v3252 = vunpack.c.0.s8 %v3251
        %v3253 = vlaneseq
        %v3254 = vshrl.u32 %v3253, 7
        %v3255 = vsub.s32 %v3252, %v3254
        %v3256 = vrot.slane %v3240, %v3255
        %v3258 = vunpack.c.l.s4 1966171168
        %v3259 = vunpack.c.0.s8 %v3258
        %v3260 = vlaneseq
        %v3261 = vshrl.u32 %v3260, 7
        %v3262 = vsub.s32 %v3259, %v3261
        %v3263 = vrot.slane %v3241, %v3262
        %v3265 = vunpack.c.l.s4 1966171168
        %v3266 = vunpack.c.0.s8 %v3265
        %v3267 = vlaneseq
        %v3268 = vshrl.u32 %v3267, 7
        %v3269 = vsub.s32 %v3266, %v3268
        %v3270 = vrot.slane %v3242, %v3269
        %v3271 = vcombine.high %v3249, %v3249
        %v3272 = vcombine.high %v3256, %v3256
        %v3273 = vcombine.high %v3263, %v3263
        %v3274 = vcombine.high %v3270, %v3270
        %v3275 = vcombine.high %v2923, %v2923
        %v3277 = vunpack.c.l.s4 1966171168
        %v3278 = vunpack.c.0.s8 %v3277
        %v3279 = vlaneseq
        %v3280 = vshrl.u32 %v3279, 7
        %v3281 = vsub.s32 %v3278, %v3280
        %v3282 = vrot.slane %v2923, %v3281
        %v3284 = vunpack.c.l.s4 1966171168
        %v3285 = vunpack.c.0.s8 %v3284
        %v3286 = vlaneseq
        %v3287 = vshrl.u32 %v3286, 7
        %v3288 = vsub.s32 %v3285, %v3287
        %v3289 = vrot.slane %v3275, %v3288
        %v3290 = vcombine.high %v3282, %v3282
        %v3291 = vcombine.high %v3289, %v3289
        %v3293 = vunpack.c.l.s4 1966171168
        %v3294 = vunpack.c.0.s8 %v3293
        %v3295 = vlaneseq
        %v3296 = vshrl.u32 %v3295, 7
        %v3297 = vsub.s32 %v3294, %v3296
        %v3298 = vrot.slane %v3282, %v3297
        %v3300 = vunpack.c.l.s4 1966171168
        %v3301 = vunpack.c.0.s8 %v3300
        %v3302 = vlaneseq
        %v3303 = vshrl.u32 %v3302, 7
        %v3304 = vsub.s32 %v3301, %v3303
        %v3305 = vrot.slane %v3289, %v3304
        %v3307 = vunpack.c.l.s4 1966171168
        %v3308 = vunpack.c.0.s8 %v3307
        %v3309 = vlaneseq
        %v3310 = vshrl.u32 %v3309, 7
        %v3311 = vsub.s32 %v3308, %v3310
        %v3312 = vrot.slane %v3290, %v3311
        %v3314 = vunpack.c.l.s4 1966171168
        %v3315 = vunpack.c.0.s8 %v3314
        %v3316 = vlaneseq
        %v3317 = vshrl.u32 %v3316, 7
        %v3318 = vsub.s32 %v3315, %v3317
        %v3319 = vrot.slane %v3291, %v3318
        %v3320 = vcombine.high %v3298, %v3298
        %v3321 = vcombine.high %v3305, %v3305
        %v3322 = vcombine.high %v3312, %v3312
        %v3323 = vcombine.high %v3319, %v3319
        %v3324 = vlaneseq
        %v3325 = vshrl.u32 %v3324, 7
        %v3326 = vsub.s32 0, %v3325
        %v3327 = vrot.slane %v790, %v3326
        %3329 = vbcast.lane.b32.xlu0 %v3327, 256
        %v3330 = vpop.permute.xlu0 %3329
        %v3331 = vlaneseq
        %v3332 = vshrl.u32 %v3331, 7
        %v3333 = vsub.s32 1, %v3332
        %v3334 = vrot.slane %v790, %v3333
        %3336 = vbcast.lane.b32.xlu0 %v3334, 256
        %v3337 = vpop.permute.xlu0 %3336
        %v3338 = vlaneseq
        %v3339 = vshrl.u32 %v3338, 7
        %v3340 = vsub.s32 2, %v3339
        %v3341 = vrot.slane %v790, %v3340
        %3343 = vbcast.lane.b32.xlu0 %v3341, 256
        %v3344 = vpop.permute.xlu0 %3343
        %v3345 = vlaneseq
        %v3346 = vshrl.u32 %v3345, 7
        %v3347 = vsub.s32 3, %v3346
        %v3348 = vrot.slane %v790, %v3347
        %3350 = vbcast.lane.b32.xlu0 %v3348, 256
        %v3351 = vpop.permute.xlu0 %3350
        %v3352 = vlaneseq
        %v3353 = vshrl.u32 %v3352, 7
        %v3354 = vsub.s32 4, %v3353
        %v3355 = vrot.slane %v790, %v3354
        %3357 = vbcast.lane.b32.xlu0 %v3355, 256
        %v3358 = vpop.permute.xlu0 %3357
        %v3359 = vlaneseq
        %v3360 = vshrl.u32 %v3359, 7
        %v3361 = vsub.s32 5, %v3360
        %v3362 = vrot.slane %v790, %v3361
        %3364 = vbcast.lane.b32.xlu0 %v3362, 256
        %v3365 = vpop.permute.xlu0 %3364
        %v3366 = vlaneseq
        %v3367 = vshrl.u32 %v3366, 7
        %v3368 = vsub.s32 6, %v3367
        %v3369 = vrot.slane %v790, %v3368
        %3371 = vbcast.lane.b32.xlu0 %v3369, 256
        %v3372 = vpop.permute.xlu0 %3371
        %v3373 = vlaneseq
        %v3374 = vshrl.u32 %v3373, 7
        %v3375 = vsub.s32 7, %v3374
        %v3376 = vrot.slane %v790, %v3375
        %3378 = vbcast.lane.b32.xlu0 %v3376, 256
        %v3379 = vpop.permute.xlu0 %3378
        %v3380 = vlaneseq
        %v3381 = vshrl.u32 %v3380, 7
        %v3382 = vsub.s32 0, %v3381
        %v3383 = vrot.slane %v796, %v3382
        %3385 = vbcast.lane.b32.xlu0 %v3383, 256
        %v3386 = vpop.permute.xlu0 %3385
        %v3387 = vlaneseq
        %v3388 = vshrl.u32 %v3387, 7
        %v3389 = vsub.s32 1, %v3388
        %v3390 = vrot.slane %v796, %v3389
        %3392 = vbcast.lane.b32.xlu0 %v3390, 256
        %v3393 = vpop.permute.xlu0 %3392
        %v3394 = vlaneseq
        %v3395 = vshrl.u32 %v3394, 7
        %v3396 = vsub.s32 2, %v3395
        %v3397 = vrot.slane %v796, %v3396
        %3399 = vbcast.lane.b32.xlu0 %v3397, 256
        %v3400 = vpop.permute.xlu0 %3399
        %v3401 = vlaneseq
        %v3402 = vshrl.u32 %v3401, 7
        %v3403 = vsub.s32 3, %v3402
        %v3404 = vrot.slane %v796, %v3403
        %3406 = vbcast.lane.b32.xlu0 %v3404, 256
        %v3407 = vpop.permute.xlu0 %3406
        %v3408 = vlaneseq
        %v3409 = vshrl.u32 %v3408, 7
        %v3410 = vsub.s32 4, %v3409
        %v3411 = vrot.slane %v796, %v3410
        %3413 = vbcast.lane.b32.xlu0 %v3411, 256
        %v3414 = vpop.permute.xlu0 %3413
        %v3415 = vlaneseq
        %v3416 = vshrl.u32 %v3415, 7
        %v3417 = vsub.s32 5, %v3416
        %v3418 = vrot.slane %v796, %v3417
        %3420 = vbcast.lane.b32.xlu0 %v3418, 256
        %v3421 = vpop.permute.xlu0 %3420
        %v3422 = vlaneseq
        %v3423 = vshrl.u32 %v3422, 7
        %v3424 = vsub.s32 6, %v3423
        %v3425 = vrot.slane %v796, %v3424
        %3427 = vbcast.lane.b32.xlu0 %v3425, 256
        %v3428 = vpop.permute.xlu0 %3427
        %v3429 = vlaneseq
        %v3430 = vshrl.u32 %v3429, 7
        %v3431 = vsub.s32 7, %v3430
        %v3432 = vrot.slane %v796, %v3431
        %3434 = vbcast.lane.b32.xlu0 %v3432, 256
        %v3435 = vpop.permute.xlu0 %3434
        %v3436 = vlaneseq
        %v3437 = vshrl.u32 %v3436, 7
        %v3438 = vsub.s32 0, %v3437
        %v3439 = vrot.slane %v802, %v3438
        %3441 = vbcast.lane.b32.xlu0 %v3439, 256
        %v3442 = vpop.permute.xlu0 %3441
        %v3443 = vlaneseq
        %v3444 = vshrl.u32 %v3443, 7
        %v3445 = vsub.s32 1, %v3444
        %v3446 = vrot.slane %v802, %v3445
        %3448 = vbcast.lane.b32.xlu0 %v3446, 256
        %v3449 = vpop.permute.xlu0 %3448
        %v3450 = vlaneseq
        %v3451 = vshrl.u32 %v3450, 7
        %v3452 = vsub.s32 2, %v3451
        %v3453 = vrot.slane %v802, %v3452
        %3455 = vbcast.lane.b32.xlu0 %v3453, 256
        %v3456 = vpop.permute.xlu0 %3455
        %v3457 = vlaneseq
        %v3458 = vshrl.u32 %v3457, 7
        %v3459 = vsub.s32 3, %v3458
        %v3460 = vrot.slane %v802, %v3459
        %3462 = vbcast.lane.b32.xlu0 %v3460, 256
        %v3463 = vpop.permute.xlu0 %3462
        %v3464 = vlaneseq
        %v3465 = vshrl.u32 %v3464, 7
        %v3466 = vsub.s32 4, %v3465
        %v3467 = vrot.slane %v802, %v3466
        %3469 = vbcast.lane.b32.xlu0 %v3467, 256
        %v3470 = vpop.permute.xlu0 %3469
        %v3471 = vlaneseq
        %v3472 = vshrl.u32 %v3471, 7
        %v3473 = vsub.s32 5, %v3472
        %v3474 = vrot.slane %v802, %v3473
        %3476 = vbcast.lane.b32.xlu0 %v3474, 256
        %v3477 = vpop.permute.xlu0 %3476
        %v3478 = vlaneseq
        %v3479 = vshrl.u32 %v3478, 7
        %v3480 = vsub.s32 6, %v3479
        %v3481 = vrot.slane %v802, %v3480
        %3483 = vbcast.lane.b32.xlu0 %v3481, 256
        %v3484 = vpop.permute.xlu0 %3483
        %v3485 = vlaneseq
        %v3486 = vshrl.u32 %v3485, 7
        %v3487 = vsub.s32 7, %v3486
        %v3488 = vrot.slane %v802, %v3487
        %3490 = vbcast.lane.b32.xlu0 %v3488, 256
        %v3491 = vpop.permute.xlu0 %3490
        %v3492 = vlaneseq
        %v3493 = vshrl.u32 %v3492, 7
        %v3494 = vsub.s32 0, %v3493
        %v3495 = vrot.slane %v808, %v3494
        %3497 = vbcast.lane.b32.xlu0 %v3495, 256
        %v3498 = vpop.permute.xlu0 %3497
        %v3499 = vlaneseq
        %v3500 = vshrl.u32 %v3499, 7
        %v3501 = vsub.s32 1, %v3500
        %v3502 = vrot.slane %v808, %v3501
        %3504 = vbcast.lane.b32.xlu0 %v3502, 256
        %v3505 = vpop.permute.xlu0 %3504
        %v3506 = vlaneseq
        %v3507 = vshrl.u32 %v3506, 7
        %v3508 = vsub.s32 2, %v3507
        %v3509 = vrot.slane %v808, %v3508
        %3511 = vbcast.lane.b32.xlu0 %v3509, 256
        %v3512 = vpop.permute.xlu0 %3511
        %v3513 = vlaneseq
        %v3514 = vshrl.u32 %v3513, 7
        %v3515 = vsub.s32 3, %v3514
        %v3516 = vrot.slane %v808, %v3515
        %3518 = vbcast.lane.b32.xlu0 %v3516, 256
        %v3519 = vpop.permute.xlu0 %3518
        %v3520 = vlaneseq
        %v3521 = vshrl.u32 %v3520, 7
        %v3522 = vsub.s32 4, %v3521
        %v3523 = vrot.slane %v808, %v3522
        %3525 = vbcast.lane.b32.xlu0 %v3523, 256
        %v3526 = vpop.permute.xlu0 %3525
        %v3527 = vlaneseq
        %v3528 = vshrl.u32 %v3527, 7
        %v3529 = vsub.s32 5, %v3528
        %v3530 = vrot.slane %v808, %v3529
        %3532 = vbcast.lane.b32.xlu0 %v3530, 256
        %v3533 = vpop.permute.xlu0 %3532
        %v3534 = vlaneseq
        %v3535 = vshrl.u32 %v3534, 7
        %v3536 = vsub.s32 6, %v3535
        %v3537 = vrot.slane %v808, %v3536
        %3539 = vbcast.lane.b32.xlu0 %v3537, 256
        %v3540 = vpop.permute.xlu0 %3539
        %v3541 = vlaneseq
        %v3542 = vshrl.u32 %v3541, 7
        %v3543 = vsub.s32 7, %v3542
        %v3544 = vrot.slane %v808, %v3543
        %3546 = vbcast.lane.b32.xlu0 %v3544, 256
        %v3547 = vpop.permute.xlu0 %3546
        %v3548 = vlaneseq
        %v3549 = vshrl.u32 %v3548, 7
        %v3550 = vsub.s32 0, %v3549
        %v3551 = vrot.slane %v814, %v3550
        %3553 = vbcast.lane.b32.xlu0 %v3551, 256
        %v3554 = vpop.permute.xlu0 %3553
        %v3555 = vlaneseq
        %v3556 = vshrl.u32 %v3555, 7
        %v3557 = vsub.s32 1, %v3556
        %v3558 = vrot.slane %v814, %v3557
        %3560 = vbcast.lane.b32.xlu0 %v3558, 256
        %v3561 = vpop.permute.xlu0 %3560
        %v3562 = vlaneseq
        %v3563 = vshrl.u32 %v3562, 7
        %v3564 = vsub.s32 2, %v3563
        %v3565 = vrot.slane %v814, %v3564
        %3567 = vbcast.lane.b32.xlu0 %v3565, 256
        %v3568 = vpop.permute.xlu0 %3567
        %v3569 = vlaneseq
        %v3570 = vshrl.u32 %v3569, 7
        %v3571 = vsub.s32 3, %v3570
        %v3572 = vrot.slane %v814, %v3571
        %3574 = vbcast.lane.b32.xlu0 %v3572, 256
        %v3575 = vpop.permute.xlu0 %3574
        %v3576 = vlaneseq
        %v3577 = vshrl.u32 %v3576, 7
        %v3578 = vsub.s32 4, %v3577
        %v3579 = vrot.slane %v814, %v3578
        %3581 = vbcast.lane.b32.xlu0 %v3579, 256
        %v3582 = vpop.permute.xlu0 %3581
        %v3583 = vlaneseq
        %v3584 = vshrl.u32 %v3583, 7
        %v3585 = vsub.s32 5, %v3584
        %v3586 = vrot.slane %v814, %v3585
        %3588 = vbcast.lane.b32.xlu0 %v3586, 256
        %v3589 = vpop.permute.xlu0 %3588
        %v3590 = vlaneseq
        %v3591 = vshrl.u32 %v3590, 7
        %v3592 = vsub.s32 6, %v3591
        %v3593 = vrot.slane %v814, %v3592
        %3595 = vbcast.lane.b32.xlu0 %v3593, 256
        %v3596 = vpop.permute.xlu0 %3595
        %v3597 = vlaneseq
        %v3598 = vshrl.u32 %v3597, 7
        %v3599 = vsub.s32 7, %v3598
        %v3600 = vrot.slane %v814, %v3599
        %3602 = vbcast.lane.b32.xlu0 %v3600, 256
        %v3603 = vpop.permute.xlu0 %3602
        %v3604 = vlaneseq
        %v3605 = vshrl.u32 %v3604, 7
        %v3606 = vsub.s32 0, %v3605
        %v3607 = vrot.slane %v820, %v3606
        %3609 = vbcast.lane.b32.xlu0 %v3607, 256
        %v3610 = vpop.permute.xlu0 %3609
        %v3611 = vlaneseq
        %v3612 = vshrl.u32 %v3611, 7
        %v3613 = vsub.s32 1, %v3612
        %v3614 = vrot.slane %v820, %v3613
        %3616 = vbcast.lane.b32.xlu0 %v3614, 256
        %v3617 = vpop.permute.xlu0 %3616
        %v3618 = vlaneseq
        %v3619 = vshrl.u32 %v3618, 7
        %v3620 = vsub.s32 2, %v3619
        %v3621 = vrot.slane %v820, %v3620
        %3623 = vbcast.lane.b32.xlu0 %v3621, 256
        %v3624 = vpop.permute.xlu0 %3623
        %v3625 = vlaneseq
        %v3626 = vshrl.u32 %v3625, 7
        %v3627 = vsub.s32 3, %v3626
        %v3628 = vrot.slane %v820, %v3627
        %3630 = vbcast.lane.b32.xlu0 %v3628, 256
        %v3631 = vpop.permute.xlu0 %3630
        %v3632 = vlaneseq
        %v3633 = vshrl.u32 %v3632, 7
        %v3634 = vsub.s32 4, %v3633
        %v3635 = vrot.slane %v820, %v3634
        %3637 = vbcast.lane.b32.xlu0 %v3635, 256
        %v3638 = vpop.permute.xlu0 %3637
        %v3639 = vlaneseq
        %v3640 = vshrl.u32 %v3639, 7
        %v3641 = vsub.s32 5, %v3640
        %v3642 = vrot.slane %v820, %v3641
        %3644 = vbcast.lane.b32.xlu0 %v3642, 256
        %v3645 = vpop.permute.xlu0 %3644
        %v3646 = vlaneseq
        %v3647 = vshrl.u32 %v3646, 7
        %v3648 = vsub.s32 6, %v3647
        %v3649 = vrot.slane %v820, %v3648
        %3651 = vbcast.lane.b32.xlu0 %v3649, 256
        %v3652 = vpop.permute.xlu0 %3651
        %v3653 = vlaneseq
        %v3654 = vshrl.u32 %v3653, 7
        %v3655 = vsub.s32 7, %v3654
        %v3656 = vrot.slane %v820, %v3655
        %3658 = vbcast.lane.b32.xlu0 %v3656, 256
        %v3659 = vpop.permute.xlu0 %3658
        %v3660 = vlaneseq
        %v3661 = vshrl.u32 %v3660, 7
        %v3662 = vsub.s32 0, %v3661
        %v3663 = vrot.slane %v826, %v3662
        %3665 = vbcast.lane.b32.xlu0 %v3663, 256
        %v3666 = vpop.permute.xlu0 %3665
        %v3667 = vlaneseq
        %v3668 = vshrl.u32 %v3667, 7
        %v3669 = vsub.s32 1, %v3668
        %v3670 = vrot.slane %v826, %v3669
        %3672 = vbcast.lane.b32.xlu0 %v3670, 256
        %v3673 = vpop.permute.xlu0 %3672
        %v3674 = vlaneseq
        %v3675 = vshrl.u32 %v3674, 7
        %v3676 = vsub.s32 2, %v3675
        %v3677 = vrot.slane %v826, %v3676
        %3679 = vbcast.lane.b32.xlu0 %v3677, 256
        %v3680 = vpop.permute.xlu0 %3679
        %v3681 = vlaneseq
        %v3682 = vshrl.u32 %v3681, 7
        %v3683 = vsub.s32 3, %v3682
        %v3684 = vrot.slane %v826, %v3683
        %3686 = vbcast.lane.b32.xlu0 %v3684, 256
        %v3687 = vpop.permute.xlu0 %3686
        %v3688 = vlaneseq
        %v3689 = vshrl.u32 %v3688, 7
        %v3690 = vsub.s32 4, %v3689
        %v3691 = vrot.slane %v826, %v3690
        %3693 = vbcast.lane.b32.xlu0 %v3691, 256
        %v3694 = vpop.permute.xlu0 %3693
        %v3695 = vlaneseq
        %v3696 = vshrl.u32 %v3695, 7
        %v3697 = vsub.s32 5, %v3696
        %v3698 = vrot.slane %v826, %v3697
        %3700 = vbcast.lane.b32.xlu0 %v3698, 256
        %v3701 = vpop.permute.xlu0 %3700
        %v3702 = vlaneseq
        %v3703 = vshrl.u32 %v3702, 7
        %v3704 = vsub.s32 6, %v3703
        %v3705 = vrot.slane %v826, %v3704
        %3707 = vbcast.lane.b32.xlu0 %v3705, 256
        %v3708 = vpop.permute.xlu0 %3707
        %v3709 = vlaneseq
        %v3710 = vshrl.u32 %v3709, 7
        %v3711 = vsub.s32 7, %v3710
        %v3712 = vrot.slane %v826, %v3711
        %3714 = vbcast.lane.b32.xlu0 %v3712, 256
        %v3715 = vpop.permute.xlu0 %3714
        %v3716 = vlaneseq
        %v3717 = vshrl.u32 %v3716, 7
        %v3718 = vsub.s32 0, %v3717
        %v3719 = vrot.slane %v832, %v3718
        %3721 = vbcast.lane.b32.xlu0 %v3719, 256
        %v3722 = vpop.permute.xlu0 %3721
        %v3723 = vlaneseq
        %v3724 = vshrl.u32 %v3723, 7
        %v3725 = vsub.s32 1, %v3724
        %v3726 = vrot.slane %v832, %v3725
        %3728 = vbcast.lane.b32.xlu0 %v3726, 256
        %v3729 = vpop.permute.xlu0 %3728
        %v3730 = vlaneseq
        %v3731 = vshrl.u32 %v3730, 7
        %v3732 = vsub.s32 2, %v3731
        %v3733 = vrot.slane %v832, %v3732
        %3735 = vbcast.lane.b32.xlu0 %v3733, 256
        %v3736 = vpop.permute.xlu0 %3735
        %v3737 = vlaneseq
        %v3738 = vshrl.u32 %v3737, 7
        %v3739 = vsub.s32 3, %v3738
        %v3740 = vrot.slane %v832, %v3739
        %3742 = vbcast.lane.b32.xlu0 %v3740, 256
        %v3743 = vpop.permute.xlu0 %3742
        %v3744 = vlaneseq
        %v3745 = vshrl.u32 %v3744, 7
        %v3746 = vsub.s32 4, %v3745
        %v3747 = vrot.slane %v832, %v3746
        %3749 = vbcast.lane.b32.xlu0 %v3747, 256
        %v3750 = vpop.permute.xlu0 %3749
        %v3751 = vlaneseq
        %v3752 = vshrl.u32 %v3751, 7
        %v3753 = vsub.s32 5, %v3752
        %v3754 = vrot.slane %v832, %v3753
        %3756 = vbcast.lane.b32.xlu0 %v3754, 256
        %v3757 = vpop.permute.xlu0 %3756
        %v3758 = vlaneseq
        %v3759 = vshrl.u32 %v3758, 7
        %v3760 = vsub.s32 6, %v3759
        %v3761 = vrot.slane %v832, %v3760
        %3763 = vbcast.lane.b32.xlu0 %v3761, 256
        %v3764 = vpop.permute.xlu0 %3763
        %v3765 = vlaneseq
        %v3766 = vshrl.u32 %v3765, 7
        %v3767 = vsub.s32 7, %v3766
        %v3768 = vrot.slane %v832, %v3767
        %3770 = vbcast.lane.b32.xlu0 %v3768, 256
        %v3771 = vpop.permute.xlu0 %3770
        %v3772 = vlaneseq
        %v3773 = vshrl.u32 %v3772, 7
        %v3774 = vsub.s32 0, %v3773
        %v3775 = vrot.slane %v2955, %v3774
        %v3776 = vlaneseq
        %v3777 = vshrl.u32 %v3776, 7
        %v3778 = vsub.s32 0, %v3777
        %v3779 = vrot.slane %v2969, %v3778
        %v3780 = vlaneseq
        %v3781 = vshrl.u32 %v3780, 7
        %v3782 = vsub.s32 0, %v3781
        %v3783 = vrot.slane %v2977, %v3782
        %v3784 = vlaneseq
        %v3785 = vshrl.u32 %v3784, 7
        %v3786 = vsub.s32 0, %v3785
        %v3787 = vrot.slane %v2979, %v3786
        %v3788 = vlaneseq
        %v3789 = vshrl.u32 %v3788, 7
        %v3790 = vsub.s32 0, %v3789
        %v3791 = vrot.slane %v2962, %v3790
        %v3792 = vlaneseq
        %v3793 = vshrl.u32 %v3792, 7
        %v3794 = vsub.s32 0, %v3793
        %v3795 = vrot.slane %v2976, %v3794
        %v3796 = vlaneseq
        %v3797 = vshrl.u32 %v3796, 7
        %v3798 = vsub.s32 0, %v3797
        %v3799 = vrot.slane %v2978, %v3798
        %v3800 = vlaneseq
        %v3801 = vshrl.u32 %v3800, 7
        %v3802 = vsub.s32 0, %v3801
        %v3803 = vrot.slane %v2980, %v3802
        %v3804 = vlaneseq
        %v3805 = vshrl.u32 %v3804, 7
        %v3806 = vsub.s32 0, %v3805
        %v3807 = vrot.slane %v3004, %v3806
        %v3808 = vlaneseq
        %v3809 = vshrl.u32 %v3808, 7
        %v3810 = vsub.s32 0, %v3809
        %v3811 = vrot.slane %v3018, %v3810
        %v3812 = vlaneseq
        %v3813 = vshrl.u32 %v3812, 7
        %v3814 = vsub.s32 0, %v3813
        %v3815 = vrot.slane %v3026, %v3814
        %v3816 = vlaneseq
        %v3817 = vshrl.u32 %v3816, 7
        %v3818 = vsub.s32 0, %v3817
        %v3819 = vrot.slane %v3028, %v3818
        %v3820 = vlaneseq
        %v3821 = vshrl.u32 %v3820, 7
        %v3822 = vsub.s32 0, %v3821
        %v3823 = vrot.slane %v3011, %v3822
        %v3824 = vlaneseq
        %v3825 = vshrl.u32 %v3824, 7
        %v3826 = vsub.s32 0, %v3825
        %v3827 = vrot.slane %v3025, %v3826
        %v3828 = vlaneseq
        %v3829 = vshrl.u32 %v3828, 7
        %v3830 = vsub.s32 0, %v3829
        %v3831 = vrot.slane %v3027, %v3830
        %v3832 = vlaneseq
        %v3833 = vshrl.u32 %v3832, 7
        %v3834 = vsub.s32 0, %v3833
        %v3835 = vrot.slane %v3029, %v3834
        %v3836 = vlaneseq
        %v3837 = vshrl.u32 %v3836, 7
        %v3838 = vsub.s32 0, %v3837
        %v3839 = vrot.slane %v3053, %v3838
        %v3840 = vlaneseq
        %v3841 = vshrl.u32 %v3840, 7
        %v3842 = vsub.s32 0, %v3841
        %v3843 = vrot.slane %v3067, %v3842
        %v3844 = vlaneseq
        %v3845 = vshrl.u32 %v3844, 7
        %v3846 = vsub.s32 0, %v3845
        %v3847 = vrot.slane %v3075, %v3846
        %v3848 = vlaneseq
        %v3849 = vshrl.u32 %v3848, 7
        %v3850 = vsub.s32 0, %v3849
        %v3851 = vrot.slane %v3077, %v3850
        %v3852 = vlaneseq
        %v3853 = vshrl.u32 %v3852, 7
        %v3854 = vsub.s32 0, %v3853
        %v3855 = vrot.slane %v3060, %v3854
        %v3856 = vlaneseq
        %v3857 = vshrl.u32 %v3856, 7
        %v3858 = vsub.s32 0, %v3857
        %v3859 = vrot.slane %v3074, %v3858
        %v3860 = vlaneseq
        %v3861 = vshrl.u32 %v3860, 7
        %v3862 = vsub.s32 0, %v3861
        %v3863 = vrot.slane %v3076, %v3862
        %v3864 = vlaneseq
        %v3865 = vshrl.u32 %v3864, 7
        %v3866 = vsub.s32 0, %v3865
        %v3867 = vrot.slane %v3078, %v3866
        %v3868 = vlaneseq
        %v3869 = vshrl.u32 %v3868, 7
        %v3870 = vsub.s32 0, %v3869
        %v3871 = vrot.slane %v3102, %v3870
        %v3872 = vlaneseq
        %v3873 = vshrl.u32 %v3872, 7
        %v3874 = vsub.s32 0, %v3873
        %v3875 = vrot.slane %v3116, %v3874
        %v3876 = vlaneseq
        %v3877 = vshrl.u32 %v3876, 7
        %v3878 = vsub.s32 0, %v3877
        %v3879 = vrot.slane %v3124, %v3878
        %v3880 = vlaneseq
        %v3881 = vshrl.u32 %v3880, 7
        %v3882 = vsub.s32 0, %v3881
        %v3883 = vrot.slane %v3126, %v3882
        %v3884 = vlaneseq
        %v3885 = vshrl.u32 %v3884, 7
        %v3886 = vsub.s32 0, %v3885
        %v3887 = vrot.slane %v3109, %v3886
        %v3888 = vlaneseq
        %v3889 = vshrl.u32 %v3888, 7
        %v3890 = vsub.s32 0, %v3889
        %v3891 = vrot.slane %v3123, %v3890
        %v3892 = vlaneseq
        %v3893 = vshrl.u32 %v3892, 7
        %v3894 = vsub.s32 0, %v3893
        %v3895 = vrot.slane %v3125, %v3894
        %v3896 = vlaneseq
        %v3897 = vshrl.u32 %v3896, 7
        %v3898 = vsub.s32 0, %v3897
        %v3899 = vrot.slane %v3127, %v3898
        %v3900 = vlaneseq
        %v3901 = vshrl.u32 %v3900, 7
        %v3902 = vsub.s32 0, %v3901
        %v3903 = vrot.slane %v3151, %v3902
        %v3904 = vlaneseq
        %v3905 = vshrl.u32 %v3904, 7
        %v3906 = vsub.s32 0, %v3905
        %v3907 = vrot.slane %v3165, %v3906
        %v3908 = vlaneseq
        %v3909 = vshrl.u32 %v3908, 7
        %v3910 = vsub.s32 0, %v3909
        %v3911 = vrot.slane %v3173, %v3910
        %v3912 = vlaneseq
        %v3913 = vshrl.u32 %v3912, 7
        %v3914 = vsub.s32 0, %v3913
        %v3915 = vrot.slane %v3175, %v3914
        %v3916 = vlaneseq
        %v3917 = vshrl.u32 %v3916, 7
        %v3918 = vsub.s32 0, %v3917
        %v3919 = vrot.slane %v3158, %v3918
        %v3920 = vlaneseq
        %v3921 = vshrl.u32 %v3920, 7
        %v3922 = vsub.s32 0, %v3921
        %v3923 = vrot.slane %v3172, %v3922
        %v3924 = vlaneseq
        %v3925 = vshrl.u32 %v3924, 7
        %v3926 = vsub.s32 0, %v3925
        %v3927 = vrot.slane %v3174, %v3926
        %v3928 = vlaneseq
        %v3929 = vshrl.u32 %v3928, 7
        %v3930 = vsub.s32 0, %v3929
        %v3931 = vrot.slane %v3176, %v3930
        %v3932 = vlaneseq
        %v3933 = vshrl.u32 %v3932, 7
        %v3934 = vsub.s32 0, %v3933
        %v3935 = vrot.slane %v3200, %v3934
        %v3936 = vlaneseq
        %v3937 = vshrl.u32 %v3936, 7
        %v3938 = vsub.s32 0, %v3937
        %v3939 = vrot.slane %v3214, %v3938
        %v3940 = vlaneseq
        %v3941 = vshrl.u32 %v3940, 7
        %v3942 = vsub.s32 0, %v3941
        %v3943 = vrot.slane %v3222, %v3942
        %v3944 = vlaneseq
        %v3945 = vshrl.u32 %v3944, 7
        %v3946 = vsub.s32 0, %v3945
        %v3947 = vrot.slane %v3224, %v3946
        %v3948 = vlaneseq
        %v3949 = vshrl.u32 %v3948, 7
        %v3950 = vsub.s32 0, %v3949
        %v3951 = vrot.slane %v3207, %v3950
        %v3952 = vlaneseq
        %v3953 = vshrl.u32 %v3952, 7
        %v3954 = vsub.s32 0, %v3953
        %v3955 = vrot.slane %v3221, %v3954
        %v3956 = vlaneseq
        %v3957 = vshrl.u32 %v3956, 7
        %v3958 = vsub.s32 0, %v3957
        %v3959 = vrot.slane %v3223, %v3958
        %v3960 = vlaneseq
        %v3961 = vshrl.u32 %v3960, 7
        %v3962 = vsub.s32 0, %v3961
        %v3963 = vrot.slane %v3225, %v3962
        %v3964 = vlaneseq
        %v3965 = vshrl.u32 %v3964, 7
        %v3966 = vsub.s32 0, %v3965
        %v3967 = vrot.slane %v3249, %v3966
        %v3968 = vlaneseq
        %v3969 = vshrl.u32 %v3968, 7
        %v3970 = vsub.s32 0, %v3969
        %v3971 = vrot.slane %v3263, %v3970
        %v3972 = vlaneseq
        %v3973 = vshrl.u32 %v3972, 7
        %v3974 = vsub.s32 0, %v3973
        %v3975 = vrot.slane %v3271, %v3974
        %v3976 = vlaneseq
        %v3977 = vshrl.u32 %v3976, 7
        %v3978 = vsub.s32 0, %v3977
        %v3979 = vrot.slane %v3273, %v3978
        %v3980 = vlaneseq
        %v3981 = vshrl.u32 %v3980, 7
        %v3982 = vsub.s32 0, %v3981
        %v3983 = vrot.slane %v3256, %v3982
        %v3984 = vlaneseq
        %v3985 = vshrl.u32 %v3984, 7
        %v3986 = vsub.s32 0, %v3985
        %v3987 = vrot.slane %v3270, %v3986
        %v3988 = vlaneseq
        %v3989 = vshrl.u32 %v3988, 7
        %v3990 = vsub.s32 0, %v3989
        %v3991 = vrot.slane %v3272, %v3990
        %v3992 = vlaneseq
        %v3993 = vshrl.u32 %v3992, 7
        %v3994 = vsub.s32 0, %v3993
        %v3995 = vrot.slane %v3274, %v3994
        %v3996 = vlaneseq
        %v3997 = vshrl.u32 %v3996, 7
        %v3998 = vsub.s32 0, %v3997
        %v3999 = vrot.slane %v3298, %v3998
        %v4000 = vlaneseq
        %v4001 = vshrl.u32 %v4000, 7
        %v4002 = vsub.s32 0, %v4001
        %v4003 = vrot.slane %v3312, %v4002
        %v4004 = vlaneseq
        %v4005 = vshrl.u32 %v4004, 7
        %v4006 = vsub.s32 0, %v4005
        %v4007 = vrot.slane %v3320, %v4006
        %v4008 = vlaneseq
        %v4009 = vshrl.u32 %v4008, 7
        %v4010 = vsub.s32 0, %v4009
        %v4011 = vrot.slane %v3322, %v4010
        %v4012 = vlaneseq
        %v4013 = vshrl.u32 %v4012, 7
        %v4014 = vsub.s32 0, %v4013
        %v4015 = vrot.slane %v3305, %v4014
        %v4016 = vlaneseq
        %v4017 = vshrl.u32 %v4016, 7
        %v4018 = vsub.s32 0, %v4017
        %v4019 = vrot.slane %v3319, %v4018
        %v4020 = vlaneseq
        %v4021 = vshrl.u32 %v4020, 7
        %v4022 = vsub.s32 0, %v4021
        %v4023 = vrot.slane %v3321, %v4022
        %v4024 = vlaneseq
        %v4025 = vshrl.u32 %v4024, 7
        %v4026 = vsub.s32 0, %v4025
        %v4027 = vrot.slane %v3323, %v4026
        %v4092 = vmul.f32 %v3775, %v3330
        %v4093 = vmul.f32 %v3779, %v3337
        %v4094 = vmul.f32 %v3783, %v3344
        %v4095 = vmul.f32 %v3787, %v3351
        %v4096 = vmul.f32 %v3791, %v3358
        %v4097 = vmul.f32 %v3795, %v3365
        %v4098 = vmul.f32 %v3799, %v3372
        %v4099 = vmul.f32 %v3803, %v3379
        %v4100 = vmul.f32 %v3807, %v3386
        %v4101 = vmul.f32 %v3811, %v3393
        %v4102 = vmul.f32 %v3815, %v3400
        %v4103 = vmul.f32 %v3819, %v3407
        %v4104 = vmul.f32 %v3823, %v3414
        %v4105 = vmul.f32 %v3827, %v3421
        %v4106 = vmul.f32 %v3831, %v3428
        %v4107 = vmul.f32 %v3835, %v3435
        %v4108 = vmul.f32 %v3839, %v3442
        %v4109 = vmul.f32 %v3843, %v3449
        %v4110 = vmul.f32 %v3847, %v3456
        %v4111 = vmul.f32 %v3851, %v3463
        %v4112 = vmul.f32 %v3855, %v3470
        %v4113 = vmul.f32 %v3859, %v3477
        %v4114 = vmul.f32 %v3863, %v3484
        %v4115 = vmul.f32 %v3867, %v3491
        %v4116 = vmul.f32 %v3871, %v3498
        %v4117 = vmul.f32 %v3875, %v3505
        %v4118 = vmul.f32 %v3879, %v3512
        %v4119 = vmul.f32 %v3883, %v3519
        %v4120 = vmul.f32 %v3887, %v3526
        %v4121 = vmul.f32 %v3891, %v3533
        %v4122 = vmul.f32 %v3895, %v3540
        %v4123 = vmul.f32 %v3899, %v3547
        %v4124 = vmul.f32 %v3903, %v3554
        %v4125 = vmul.f32 %v3907, %v3561
        %v4126 = vmul.f32 %v3911, %v3568
        %v4127 = vmul.f32 %v3915, %v3575
        %v4128 = vmul.f32 %v3919, %v3582
        %v4129 = vmul.f32 %v3923, %v3589
        %v4130 = vmul.f32 %v3927, %v3596
        %v4131 = vmul.f32 %v3931, %v3603
        %v4132 = vmul.f32 %v3935, %v3610
        %v4133 = vmul.f32 %v3939, %v3617
        %v4134 = vmul.f32 %v3943, %v3624
        %v4135 = vmul.f32 %v3947, %v3631
        %v4136 = vmul.f32 %v3951, %v3638
        %v4137 = vmul.f32 %v3955, %v3645
        %v4138 = vmul.f32 %v3959, %v3652
        %v4139 = vmul.f32 %v3963, %v3659
        %v4140 = vmul.f32 %v3967, %v3666
        %v4141 = vmul.f32 %v3971, %v3673
        %v4142 = vmul.f32 %v3975, %v3680
        %v4143 = vmul.f32 %v3979, %v3687
        %v4144 = vmul.f32 %v3983, %v3694
        %v4145 = vmul.f32 %v3987, %v3701
        %v4146 = vmul.f32 %v3991, %v3708
        %v4147 = vmul.f32 %v3995, %v3715
        %v4148 = vmul.f32 %v3999, %v3722
        %v4149 = vmul.f32 %v4003, %v3729
        %v4150 = vmul.f32 %v4007, %v3736
        %v4151 = vmul.f32 %v4011, %v3743
        %v4152 = vmul.f32 %v4015, %v3750
        %v4153 = vmul.f32 %v4019, %v3757
        %v4154 = vmul.f32 %v4023, %v3764
        %v4155 = vmul.f32 %v4027, %v3771
        %s4157 = sor.u32 256, 8
        %4158 = vbcast.lane.b32.xlu0 %v3327, %s4157
        %v4159 = vpop.permute.xlu0 %4158
        %s4161 = sor.u32 256, 8
        %4162 = vbcast.lane.b32.xlu0 %v3334, %s4161
        %v4163 = vpop.permute.xlu0 %4162
        %s4165 = sor.u32 256, 8
        %4166 = vbcast.lane.b32.xlu0 %v3341, %s4165
        %v4167 = vpop.permute.xlu0 %4166
        %s4169 = sor.u32 256, 8
        %4170 = vbcast.lane.b32.xlu0 %v3348, %s4169
        %v4171 = vpop.permute.xlu0 %4170
        %s4173 = sor.u32 256, 8
        %4174 = vbcast.lane.b32.xlu0 %v3355, %s4173
        %v4175 = vpop.permute.xlu0 %4174
        %s4177 = sor.u32 256, 8
        %4178 = vbcast.lane.b32.xlu0 %v3362, %s4177
        %v4179 = vpop.permute.xlu0 %4178
        %s4181 = sor.u32 256, 8
        %4182 = vbcast.lane.b32.xlu0 %v3369, %s4181
        %v4183 = vpop.permute.xlu0 %4182
        %s4185 = sor.u32 256, 8
        %4186 = vbcast.lane.b32.xlu0 %v3376, %s4185
        %v4187 = vpop.permute.xlu0 %4186
        %s4189 = sor.u32 256, 8
        %4190 = vbcast.lane.b32.xlu0 %v3383, %s4189
        %v4191 = vpop.permute.xlu0 %4190
        %s4193 = sor.u32 256, 8
        %4194 = vbcast.lane.b32.xlu0 %v3390, %s4193
        %v4195 = vpop.permute.xlu0 %4194
        %s4197 = sor.u32 256, 8
        %4198 = vbcast.lane.b32.xlu0 %v3397, %s4197
        %v4199 = vpop.permute.xlu0 %4198
        %s4201 = sor.u32 256, 8
        %4202 = vbcast.lane.b32.xlu0 %v3404, %s4201
        %v4203 = vpop.permute.xlu0 %4202
        %s4205 = sor.u32 256, 8
        %4206 = vbcast.lane.b32.xlu0 %v3411, %s4205
        %v4207 = vpop.permute.xlu0 %4206
        %s4209 = sor.u32 256, 8
        %4210 = vbcast.lane.b32.xlu0 %v3418, %s4209
        %v4211 = vpop.permute.xlu0 %4210
        %s4213 = sor.u32 256, 8
        %4214 = vbcast.lane.b32.xlu0 %v3425, %s4213
        %v4215 = vpop.permute.xlu0 %4214
        %s4217 = sor.u32 256, 8
        %4218 = vbcast.lane.b32.xlu0 %v3432, %s4217
        %v4219 = vpop.permute.xlu0 %4218
        %s4221 = sor.u32 256, 8
        %4222 = vbcast.lane.b32.xlu0 %v3439, %s4221
        %v4223 = vpop.permute.xlu0 %4222
        %s4225 = sor.u32 256, 8
        %4226 = vbcast.lane.b32.xlu0 %v3446, %s4225
        %v4227 = vpop.permute.xlu0 %4226
        %s4229 = sor.u32 256, 8
        %4230 = vbcast.lane.b32.xlu0 %v3453, %s4229
        %v4231 = vpop.permute.xlu0 %4230
        %s4233 = sor.u32 256, 8
        %4234 = vbcast.lane.b32.xlu0 %v3460, %s4233
        %v4235 = vpop.permute.xlu0 %4234
        %s4237 = sor.u32 256, 8
        %4238 = vbcast.lane.b32.xlu0 %v3467, %s4237
        %v4239 = vpop.permute.xlu0 %4238
        %s4241 = sor.u32 256, 8
        %4242 = vbcast.lane.b32.xlu0 %v3474, %s4241
        %v4243 = vpop.permute.xlu0 %4242
        %s4245 = sor.u32 256, 8
        %4246 = vbcast.lane.b32.xlu0 %v3481, %s4245
        %v4247 = vpop.permute.xlu0 %4246
        %s4249 = sor.u32 256, 8
        %4250 = vbcast.lane.b32.xlu0 %v3488, %s4249
        %v4251 = vpop.permute.xlu0 %4250
        %s4253 = sor.u32 256, 8
        %4254 = vbcast.lane.b32.xlu0 %v3495, %s4253
        %v4255 = vpop.permute.xlu0 %4254
        %s4257 = sor.u32 256, 8
        %4258 = vbcast.lane.b32.xlu0 %v3502, %s4257
        %v4259 = vpop.permute.xlu0 %4258
        %s4261 = sor.u32 256, 8
        %4262 = vbcast.lane.b32.xlu0 %v3509, %s4261
        %v4263 = vpop.permute.xlu0 %4262
        %s4265 = sor.u32 256, 8
        %4266 = vbcast.lane.b32.xlu0 %v3516, %s4265
        %v4267 = vpop.permute.xlu0 %4266
        %s4269 = sor.u32 256, 8
        %4270 = vbcast.lane.b32.xlu0 %v3523, %s4269
        %v4271 = vpop.permute.xlu0 %4270
        %s4273 = sor.u32 256, 8
        %4274 = vbcast.lane.b32.xlu0 %v3530, %s4273
        %v4275 = vpop.permute.xlu0 %4274
        %s4277 = sor.u32 256, 8
        %4278 = vbcast.lane.b32.xlu0 %v3537, %s4277
        %v4279 = vpop.permute.xlu0 %4278
        %s4281 = sor.u32 256, 8
        %4282 = vbcast.lane.b32.xlu0 %v3544, %s4281
        %v4283 = vpop.permute.xlu0 %4282
        %s4285 = sor.u32 256, 8
        %4286 = vbcast.lane.b32.xlu0 %v3551, %s4285
        %v4287 = vpop.permute.xlu0 %4286
        %s4289 = sor.u32 256, 8
        %4290 = vbcast.lane.b32.xlu0 %v3558, %s4289
        %v4291 = vpop.permute.xlu0 %4290
        %s4293 = sor.u32 256, 8
        %4294 = vbcast.lane.b32.xlu0 %v3565, %s4293
        %v4295 = vpop.permute.xlu0 %4294
        %s4297 = sor.u32 256, 8
        %4298 = vbcast.lane.b32.xlu0 %v3572, %s4297
        %v4299 = vpop.permute.xlu0 %4298
        %s4301 = sor.u32 256, 8
        %4302 = vbcast.lane.b32.xlu0 %v3579, %s4301
        %v4303 = vpop.permute.xlu0 %4302
        %s4305 = sor.u32 256, 8
        %4306 = vbcast.lane.b32.xlu0 %v3586, %s4305
        %v4307 = vpop.permute.xlu0 %4306
        %s4309 = sor.u32 256, 8
        %4310 = vbcast.lane.b32.xlu0 %v3593, %s4309
        %v4311 = vpop.permute.xlu0 %4310
        %s4313 = sor.u32 256, 8
        %4314 = vbcast.lane.b32.xlu0 %v3600, %s4313
        %v4315 = vpop.permute.xlu0 %4314
        %s4317 = sor.u32 256, 8
        %4318 = vbcast.lane.b32.xlu0 %v3607, %s4317
        %v4319 = vpop.permute.xlu0 %4318
        %s4321 = sor.u32 256, 8
        %4322 = vbcast.lane.b32.xlu0 %v3614, %s4321
        %v4323 = vpop.permute.xlu0 %4322
        %s4325 = sor.u32 256, 8
        %4326 = vbcast.lane.b32.xlu0 %v3621, %s4325
        %v4327 = vpop.permute.xlu0 %4326
        %s4329 = sor.u32 256, 8
        %4330 = vbcast.lane.b32.xlu0 %v3628, %s4329
        %v4331 = vpop.permute.xlu0 %4330
        %s4333 = sor.u32 256, 8
        %4334 = vbcast.lane.b32.xlu0 %v3635, %s4333
        %v4335 = vpop.permute.xlu0 %4334
        %s4337 = sor.u32 256, 8
        %4338 = vbcast.lane.b32.xlu0 %v3642, %s4337
        %v4339 = vpop.permute.xlu0 %4338
        %s4341 = sor.u32 256, 8
        %4342 = vbcast.lane.b32.xlu0 %v3649, %s4341
        %v4343 = vpop.permute.xlu0 %4342
        %s4345 = sor.u32 256, 8
        %4346 = vbcast.lane.b32.xlu0 %v3656, %s4345
        %v4347 = vpop.permute.xlu0 %4346
        %s4349 = sor.u32 256, 8
        %4350 = vbcast.lane.b32.xlu0 %v3663, %s4349
        %v4351 = vpop.permute.xlu0 %4350
        %s4353 = sor.u32 256, 8
        %4354 = vbcast.lane.b32.xlu0 %v3670, %s4353
        %v4355 = vpop.permute.xlu0 %4354
        %s4357 = sor.u32 256, 8
        %4358 = vbcast.lane.b32.xlu0 %v3677, %s4357
        %v4359 = vpop.permute.xlu0 %4358
        %s4361 = sor.u32 256, 8
        %4362 = vbcast.lane.b32.xlu0 %v3684, %s4361
        %v4363 = vpop.permute.xlu0 %4362
        %s4365 = sor.u32 256, 8
        %4366 = vbcast.lane.b32.xlu0 %v3691, %s4365
        %v4367 = vpop.permute.xlu0 %4366
        %s4369 = sor.u32 256, 8
        %4370 = vbcast.lane.b32.xlu0 %v3698, %s4369
        %v4371 = vpop.permute.xlu0 %4370
        %s4373 = sor.u32 256, 8
        %4374 = vbcast.lane.b32.xlu0 %v3705, %s4373
        %v4375 = vpop.permute.xlu0 %4374
        %s4377 = sor.u32 256, 8
        %4378 = vbcast.lane.b32.xlu0 %v3712, %s4377
        %v4379 = vpop.permute.xlu0 %4378
        %s4381 = sor.u32 256, 8
        %4382 = vbcast.lane.b32.xlu0 %v3719, %s4381
        %v4383 = vpop.permute.xlu0 %4382
        %s4385 = sor.u32 256, 8
        %4386 = vbcast.lane.b32.xlu0 %v3726, %s4385
        %v4387 = vpop.permute.xlu0 %4386
        %s4389 = sor.u32 256, 8
        %4390 = vbcast.lane.b32.xlu0 %v3733, %s4389
        %v4391 = vpop.permute.xlu0 %4390
        %s4393 = sor.u32 256, 8
        %4394 = vbcast.lane.b32.xlu0 %v3740, %s4393
        %v4395 = vpop.permute.xlu0 %4394
        %s4397 = sor.u32 256, 8
        %4398 = vbcast.lane.b32.xlu0 %v3747, %s4397
        %v4399 = vpop.permute.xlu0 %4398
        %s4401 = sor.u32 256, 8
        %4402 = vbcast.lane.b32.xlu0 %v3754, %s4401
        %v4403 = vpop.permute.xlu0 %4402
        %s4405 = sor.u32 256, 8
        %4406 = vbcast.lane.b32.xlu0 %v3761, %s4405
        %v4407 = vpop.permute.xlu0 %4406
        %s4409 = sor.u32 256, 8
        %4410 = vbcast.lane.b32.xlu0 %v3768, %s4409
        %v4411 = vpop.permute.xlu0 %4410
        %v4412 = vmul.f32 %v3775, %v4159
        %v4413 = vmul.f32 %v3779, %v4163
        %v4414 = vmul.f32 %v3783, %v4167
        %v4415 = vmul.f32 %v3787, %v4171
        %v4416 = vmul.f32 %v3791, %v4175
        %v4417 = vmul.f32 %v3795, %v4179
        %v4418 = vmul.f32 %v3799, %v4183
        %v4419 = vmul.f32 %v3803, %v4187
        %v4420 = vmul.f32 %v3807, %v4191
        %v4421 = vmul.f32 %v3811, %v4195
        %v4422 = vmul.f32 %v3815, %v4199
        %v4423 = vmul.f32 %v3819, %v4203
        %v4424 = vmul.f32 %v3823, %v4207
        %v4425 = vmul.f32 %v3827, %v4211
        %v4426 = vmul.f32 %v3831, %v4215
        %v4427 = vmul.f32 %v3835, %v4219
        %v4428 = vmul.f32 %v3839, %v4223
        %v4429 = vmul.f32 %v3843, %v4227
        %v4430 = vmul.f32 %v3847, %v4231
        %v4431 = vmul.f32 %v3851, %v4235
        %v4432 = vmul.f32 %v3855, %v4239
        %v4433 = vmul.f32 %v3859, %v4243
        %v4434 = vmul.f32 %v3863, %v4247
        %v4435 = vmul.f32 %v3867, %v4251
        %v4436 = vmul.f32 %v3871, %v4255
        %v4437 = vmul.f32 %v3875, %v4259
        %v4438 = vmul.f32 %v3879, %v4263
        %v4439 = vmul.f32 %v3883, %v4267
        %v4440 = vmul.f32 %v3887, %v4271
        %v4441 = vmul.f32 %v3891, %v4275
        %v4442 = vmul.f32 %v3895, %v4279
        %v4443 = vmul.f32 %v3899, %v4283
        %v4444 = vmul.f32 %v3903, %v4287
        %v4445 = vmul.f32 %v3907, %v4291
        %v4446 = vmul.f32 %v3911, %v4295
        %v4447 = vmul.f32 %v3915, %v4299
        %v4448 = vmul.f32 %v3919, %v4303
        %v4449 = vmul.f32 %v3923, %v4307
        %v4450 = vmul.f32 %v3927, %v4311
        %v4451 = vmul.f32 %v3931, %v4315
        %v4452 = vmul.f32 %v3935, %v4319
        %v4453 = vmul.f32 %v3939, %v4323
        %v4454 = vmul.f32 %v3943, %v4327
        %v4455 = vmul.f32 %v3947, %v4331
        %v4456 = vmul.f32 %v3951, %v4335
        %v4457 = vmul.f32 %v3955, %v4339
        %v4458 = vmul.f32 %v3959, %v4343
        %v4459 = vmul.f32 %v3963, %v4347
        %v4460 = vmul.f32 %v3967, %v4351
        %v4461 = vmul.f32 %v3971, %v4355
        %v4462 = vmul.f32 %v3975, %v4359
        %v4463 = vmul.f32 %v3979, %v4363
        %v4464 = vmul.f32 %v3983, %v4367
        %v4465 = vmul.f32 %v3987, %v4371
        %v4466 = vmul.f32 %v3991, %v4375
        %v4467 = vmul.f32 %v3995, %v4379
        %v4468 = vmul.f32 %v3999, %v4383
        %v4469 = vmul.f32 %v4003, %v4387
        %v4470 = vmul.f32 %v4007, %v4391
        %v4471 = vmul.f32 %v4011, %v4395
        %v4472 = vmul.f32 %v4015, %v4399
        %v4473 = vmul.f32 %v4019, %v4403
        %v4474 = vmul.f32 %v4023, %v4407
        %v4475 = vmul.f32 %v4027, %v4411
        %4540 = vrot.lane.b32.xlu0 %v4412, 64
        %v4541 = vpop.permute.xlu0 %4540
        %4542 = vrot.lane.b32.xlu0 %v4413, 64
        %v4543 = vpop.permute.xlu0 %4542
        %4544 = vrot.lane.b32.xlu0 %v4414, 64
        %v4545 = vpop.permute.xlu0 %4544
        %4546 = vrot.lane.b32.xlu0 %v4415, 64
        %v4547 = vpop.permute.xlu0 %4546
        %4548 = vrot.lane.b32.xlu0 %v4416, 64
        %v4549 = vpop.permute.xlu0 %4548
        %4550 = vrot.lane.b32.xlu0 %v4417, 64
        %v4551 = vpop.permute.xlu0 %4550
        %4552 = vrot.lane.b32.xlu0 %v4418, 64
        %v4553 = vpop.permute.xlu0 %4552
        %4554 = vrot.lane.b32.xlu0 %v4419, 64
        %v4555 = vpop.permute.xlu0 %4554
        %4556 = vrot.lane.b32.xlu0 %v4420, 64
        %v4557 = vpop.permute.xlu0 %4556
        %4558 = vrot.lane.b32.xlu0 %v4421, 64
        %v4559 = vpop.permute.xlu0 %4558
        %4560 = vrot.lane.b32.xlu0 %v4422, 64
        %v4561 = vpop.permute.xlu0 %4560
        %4562 = vrot.lane.b32.xlu0 %v4423, 64
        %v4563 = vpop.permute.xlu0 %4562
        %4564 = vrot.lane.b32.xlu0 %v4424, 64
        %v4565 = vpop.permute.xlu0 %4564
        %4566 = vrot.lane.b32.xlu0 %v4425, 64
        %v4567 = vpop.permute.xlu0 %4566
        %4568 = vrot.lane.b32.xlu0 %v4426, 64
        %v4569 = vpop.permute.xlu0 %4568
        %4570 = vrot.lane.b32.xlu0 %v4427, 64
        %v4571 = vpop.permute.xlu0 %4570
        %4572 = vrot.lane.b32.xlu0 %v4428, 64
        %v4573 = vpop.permute.xlu0 %4572
        %4574 = vrot.lane.b32.xlu0 %v4429, 64
        %v4575 = vpop.permute.xlu0 %4574
        %4576 = vrot.lane.b32.xlu0 %v4430, 64
        %v4577 = vpop.permute.xlu0 %4576
        %4578 = vrot.lane.b32.xlu0 %v4431, 64
        %v4579 = vpop.permute.xlu0 %4578
        %4580 = vrot.lane.b32.xlu0 %v4432, 64
        %v4581 = vpop.permute.xlu0 %4580
        %4582 = vrot.lane.b32.xlu0 %v4433, 64
        %v4583 = vpop.permute.xlu0 %4582
        %4584 = vrot.lane.b32.xlu0 %v4434, 64
        %v4585 = vpop.permute.xlu0 %4584
        %4586 = vrot.lane.b32.xlu0 %v4435, 64
        %v4587 = vpop.permute.xlu0 %4586
        %4588 = vrot.lane.b32.xlu0 %v4436, 64
        %v4589 = vpop.permute.xlu0 %4588
        %4590 = vrot.lane.b32.xlu0 %v4437, 64
        %v4591 = vpop.permute.xlu0 %4590
        %4592 = vrot.lane.b32.xlu0 %v4438, 64
        %v4593 = vpop.permute.xlu0 %4592
        %4594 = vrot.lane.b32.xlu0 %v4439, 64
        %v4595 = vpop.permute.xlu0 %4594
        %4596 = vrot.lane.b32.xlu0 %v4440, 64
        %v4597 = vpop.permute.xlu0 %4596
        %4598 = vrot.lane.b32.xlu0 %v4441, 64
        %v4599 = vpop.permute.xlu0 %4598
        %4600 = vrot.lane.b32.xlu0 %v4442, 64
        %v4601 = vpop.permute.xlu0 %4600
        %4602 = vrot.lane.b32.xlu0 %v4443, 64
        %v4603 = vpop.permute.xlu0 %4602
        %4604 = vrot.lane.b32.xlu0 %v4444, 64
        %v4605 = vpop.permute.xlu0 %4604
        %4606 = vrot.lane.b32.xlu0 %v4445, 64
        %v4607 = vpop.permute.xlu0 %4606
        %4608 = vrot.lane.b32.xlu0 %v4446, 64
        %v4609 = vpop.permute.xlu0 %4608
        %4610 = vrot.lane.b32.xlu0 %v4447, 64
        %v4611 = vpop.permute.xlu0 %4610
        %4612 = vrot.lane.b32.xlu0 %v4448, 64
        %v4613 = vpop.permute.xlu0 %4612
        %4614 = vrot.lane.b32.xlu0 %v4449, 64
        %v4615 = vpop.permute.xlu0 %4614
        %4616 = vrot.lane.b32.xlu0 %v4450, 64
        %v4617 = vpop.permute.xlu0 %4616
        %4618 = vrot.lane.b32.xlu0 %v4451, 64
        %v4619 = vpop.permute.xlu0 %4618
        %4620 = vrot.lane.b32.xlu0 %v4452, 64
        %v4621 = vpop.permute.xlu0 %4620
        %4622 = vrot.lane.b32.xlu0 %v4453, 64
        %v4623 = vpop.permute.xlu0 %4622
        %4624 = vrot.lane.b32.xlu0 %v4454, 64
        %v4625 = vpop.permute.xlu0 %4624
        %4626 = vrot.lane.b32.xlu0 %v4455, 64
        %v4627 = vpop.permute.xlu0 %4626
        %4628 = vrot.lane.b32.xlu0 %v4456, 64
        %v4629 = vpop.permute.xlu0 %4628
        %4630 = vrot.lane.b32.xlu0 %v4457, 64
        %v4631 = vpop.permute.xlu0 %4630
        %4632 = vrot.lane.b32.xlu0 %v4458, 64
        %v4633 = vpop.permute.xlu0 %4632
        %4634 = vrot.lane.b32.xlu0 %v4459, 64
        %v4635 = vpop.permute.xlu0 %4634
        %4636 = vrot.lane.b32.xlu0 %v4460, 64
        %v4637 = vpop.permute.xlu0 %4636
        %4638 = vrot.lane.b32.xlu0 %v4461, 64
        %v4639 = vpop.permute.xlu0 %4638
        %4640 = vrot.lane.b32.xlu0 %v4462, 64
        %v4641 = vpop.permute.xlu0 %4640
        %4642 = vrot.lane.b32.xlu0 %v4463, 64
        %v4643 = vpop.permute.xlu0 %4642
        %4644 = vrot.lane.b32.xlu0 %v4464, 64
        %v4645 = vpop.permute.xlu0 %4644
        %4646 = vrot.lane.b32.xlu0 %v4465, 64
        %v4647 = vpop.permute.xlu0 %4646
        %4648 = vrot.lane.b32.xlu0 %v4466, 64
        %v4649 = vpop.permute.xlu0 %4648
        %4650 = vrot.lane.b32.xlu0 %v4467, 64
        %v4651 = vpop.permute.xlu0 %4650
        %4652 = vrot.lane.b32.xlu0 %v4468, 64
        %v4653 = vpop.permute.xlu0 %4652
        %4654 = vrot.lane.b32.xlu0 %v4469, 64
        %v4655 = vpop.permute.xlu0 %4654
        %4656 = vrot.lane.b32.xlu0 %v4470, 64
        %v4657 = vpop.permute.xlu0 %4656
        %4658 = vrot.lane.b32.xlu0 %v4471, 64
        %v4659 = vpop.permute.xlu0 %4658
        %4660 = vrot.lane.b32.xlu0 %v4472, 64
        %v4661 = vpop.permute.xlu0 %4660
        %4662 = vrot.lane.b32.xlu0 %v4473, 64
        %v4663 = vpop.permute.xlu0 %4662
        %4664 = vrot.lane.b32.xlu0 %v4474, 64
        %v4665 = vpop.permute.xlu0 %4664
        %4666 = vrot.lane.b32.xlu0 %v4475, 64
        %v4667 = vpop.permute.xlu0 %4666
        %v4732 = vsel %vm696, %v4092, %v4541
        %v4733 = vsel %vm696, %v4093, %v4543
        %v4734 = vsel %vm696, %v4094, %v4545
        %v4735 = vsel %vm696, %v4095, %v4547
        %v4736 = vsel %vm696, %v4096, %v4549
        %v4737 = vsel %vm696, %v4097, %v4551
        %v4738 = vsel %vm696, %v4098, %v4553
        %v4739 = vsel %vm696, %v4099, %v4555
        %v4740 = vsel %vm696, %v4100, %v4557
        %v4741 = vsel %vm696, %v4101, %v4559
        %v4742 = vsel %vm696, %v4102, %v4561
        %v4743 = vsel %vm696, %v4103, %v4563
        %v4744 = vsel %vm696, %v4104, %v4565
        %v4745 = vsel %vm696, %v4105, %v4567
        %v4746 = vsel %vm696, %v4106, %v4569
        %v4747 = vsel %vm696, %v4107, %v4571
        %v4748 = vsel %vm696, %v4108, %v4573
        %v4749 = vsel %vm696, %v4109, %v4575
        %v4750 = vsel %vm696, %v4110, %v4577
        %v4751 = vsel %vm696, %v4111, %v4579
        %v4752 = vsel %vm696, %v4112, %v4581
        %v4753 = vsel %vm696, %v4113, %v4583
        %v4754 = vsel %vm696, %v4114, %v4585
        %v4755 = vsel %vm696, %v4115, %v4587
        %v4756 = vsel %vm696, %v4116, %v4589
        %v4757 = vsel %vm696, %v4117, %v4591
        %v4758 = vsel %vm696, %v4118, %v4593
        %v4759 = vsel %vm696, %v4119, %v4595
        %v4760 = vsel %vm696, %v4120, %v4597
        %v4761 = vsel %vm696, %v4121, %v4599
        %v4762 = vsel %vm696, %v4122, %v4601
        %v4763 = vsel %vm696, %v4123, %v4603
        %v4764 = vsel %vm696, %v4124, %v4605
        %v4765 = vsel %vm696, %v4125, %v4607
        %v4766 = vsel %vm696, %v4126, %v4609
        %v4767 = vsel %vm696, %v4127, %v4611
        %v4768 = vsel %vm696, %v4128, %v4613
        %v4769 = vsel %vm696, %v4129, %v4615
        %v4770 = vsel %vm696, %v4130, %v4617
        %v4771 = vsel %vm696, %v4131, %v4619
        %v4772 = vsel %vm696, %v4132, %v4621
        %v4773 = vsel %vm696, %v4133, %v4623
        %v4774 = vsel %vm696, %v4134, %v4625
        %v4775 = vsel %vm696, %v4135, %v4627
        %v4776 = vsel %vm696, %v4136, %v4629
        %v4777 = vsel %vm696, %v4137, %v4631
        %v4778 = vsel %vm696, %v4138, %v4633
        %v4779 = vsel %vm696, %v4139, %v4635
        %v4780 = vsel %vm696, %v4140, %v4637
        %v4781 = vsel %vm696, %v4141, %v4639
        %v4782 = vsel %vm696, %v4142, %v4641
        %v4783 = vsel %vm696, %v4143, %v4643
        %v4784 = vsel %vm696, %v4144, %v4645
        %v4785 = vsel %vm696, %v4145, %v4647
        %v4786 = vsel %vm696, %v4146, %v4649
        %v4787 = vsel %vm696, %v4147, %v4651
        %v4788 = vsel %vm696, %v4148, %v4653
        %v4789 = vsel %vm696, %v4149, %v4655
        %v4790 = vsel %vm696, %v4150, %v4657
        %v4791 = vsel %vm696, %v4151, %v4659
        %v4792 = vsel %vm696, %v4152, %v4661
        %v4793 = vsel %vm696, %v4153, %v4663
        %v4794 = vsel %vm696, %v4154, %v4665
        %v4795 = vsel %vm696, %v4155, %v4667
        %4796 = vst [vmem:[#allocation4] sm:$0xff] %v4732
        %4797 = vst [vmem:[#allocation4 + $0x8] sm:$0xff] %v4733
        %4798 = vst [vmem:[#allocation4 + $0x10] sm:$0xff] %v4734
        %4799 = vst [vmem:[#allocation4 + $0x18] sm:$0xff] %v4735
        %4800 = vst [vmem:[#allocation4 + $0x20] sm:$0xff] %v4736
        %4801 = vst [vmem:[#allocation4 + $0x28] sm:$0xff] %v4737
        %4802 = vst [vmem:[#allocation4 + $0x30] sm:$0xff] %v4738
        %4803 = vst [vmem:[#allocation4 + $0x38] sm:$0xff] %v4739
        %4804 = vst [vmem:[#allocation4 + $0x40] sm:$0xff] %v4740
        %4805 = vst [vmem:[#allocation4 + $0x48] sm:$0xff] %v4741
        %4806 = vst [vmem:[#allocation4 + $0x50] sm:$0xff] %v4742
        %4807 = vst [vmem:[#allocation4 + $0x58] sm:$0xff] %v4743
        %4808 = vst [vmem:[#allocation4 + $0x60] sm:$0xff] %v4744
        %4809 = vst [vmem:[#allocation4 + $0x68] sm:$0xff] %v4745
        %4810 = vst [vmem:[#allocation4 + $0x70] sm:$0xff] %v4746
        %4811 = vst [vmem:[#allocation4 + $0x78] sm:$0xff] %v4747
        %4812 = vst [vmem:[#allocation4 + $0x80] sm:$0xff] %v4748
        %4813 = vst [vmem:[#allocation4 + $0x88] sm:$0xff] %v4749
        %4814 = vst [vmem:[#allocation4 + $0x90] sm:$0xff] %v4750
        %4815 = vst [vmem:[#allocation4 + $0x98] sm:$0xff] %v4751
        %4816 = vst [vmem:[#allocation4 + $0xa0] sm:$0xff] %v4752
        %4817 = vst [vmem:[#allocation4 + $0xa8] sm:$0xff] %v4753
        %4818 = vst [vmem:[#allocation4 + $0xb0] sm:$0xff] %v4754
        %4819 = vst [vmem:[#allocation4 + $0xb8] sm:$0xff] %v4755
        %4820 = vst [vmem:[#allocation4 + $0xc0] sm:$0xff] %v4756
        %4821 = vst [vmem:[#allocation4 + $0xc8] sm:$0xff] %v4757
        %4822 = vst [vmem:[#allocation4 + $0xd0] sm:$0xff] %v4758
        %4823 = vst [vmem:[#allocation4 + $0xd8] sm:$0xff] %v4759
        %4824 = vst [vmem:[#allocation4 + $0xe0] sm:$0xff] %v4760
        %4825 = vst [vmem:[#allocation4 + $0xe8] sm:$0xff] %v4761
        %4826 = vst [vmem:[#allocation4 + $0xf0] sm:$0xff] %v4762
        %4827 = vst [vmem:[#allocation4 + $0xf8] sm:$0xff] %v4763
        %4828 = vst [vmem:[#allocation4 + $0x100] sm:$0xff] %v4764
        %4829 = vst [vmem:[#allocation4 + $0x108] sm:$0xff] %v4765
        %4830 = vst [vmem:[#allocation4 + $0x110] sm:$0xff] %v4766
        %4831 = vst [vmem:[#allocation4 + $0x118] sm:$0xff] %v4767
        %4832 = vst [vmem:[#allocation4 + $0x120] sm:$0xff] %v4768
        %4833 = vst [vmem:[#allocation4 + $0x128] sm:$0xff] %v4769
        %4834 = vst [vmem:[#allocation4 + $0x130] sm:$0xff] %v4770
        %4835 = vst [vmem:[#allocation4 + $0x138] sm:$0xff] %v4771
        %4836 = vst [vmem:[#allocation4 + $0x140] sm:$0xff] %v4772
        %4837 = vst [vmem:[#allocation4 + $0x148] sm:$0xff] %v4773
        %4838 = vst [vmem:[#allocation4 + $0x150] sm:$0xff] %v4774
        %4839 = vst [vmem:[#allocation4 + $0x158] sm:$0xff] %v4775
        %4840 = vst [vmem:[#allocation4 + $0x160] sm:$0xff] %v4776
        %4841 = vst [vmem:[#allocation4 + $0x168] sm:$0xff] %v4777
        %4842 = vst [vmem:[#allocation4 + $0x170] sm:$0xff] %v4778
        %4843 = vst [vmem:[#allocation4 + $0x178] sm:$0xff] %v4779
        %4844 = vst [vmem:[#allocation4 + $0x180] sm:$0xff] %v4780
        %4845 = vst [vmem:[#allocation4 + $0x188] sm:$0xff] %v4781
        %4846 = vst [vmem:[#allocation4 + $0x190] sm:$0xff] %v4782
        %4847 = vst [vmem:[#allocation4 + $0x198] sm:$0xff] %v4783
        %4848 = vst [vmem:[#allocation4 + $0x1a0] sm:$0xff] %v4784
        %4849 = vst [vmem:[#allocation4 + $0x1a8] sm:$0xff] %v4785
        %4850 = vst [vmem:[#allocation4 + $0x1b0] sm:$0xff] %v4786
        %4851 = vst [vmem:[#allocation4 + $0x1b8] sm:$0xff] %v4787
        %4852 = vst [vmem:[#allocation4 + $0x1c0] sm:$0xff] %v4788
        %4853 = vst [vmem:[#allocation4 + $0x1c8] sm:$0xff] %v4789
        %4854 = vst [vmem:[#allocation4 + $0x1d0] sm:$0xff] %v4790
        %4855 = vst [vmem:[#allocation4 + $0x1d8] sm:$0xff] %v4791
        %4856 = vst [vmem:[#allocation4 + $0x1e0] sm:$0xff] %v4792
        %4857 = vst [vmem:[#allocation4 + $0x1e8] sm:$0xff] %v4793
        %4858 = vst [vmem:[#allocation4 + $0x1f0] sm:$0xff] %v4794
        %4859 = vst [vmem:[#allocation4 + $0x1f8] sm:$0xff] %v4795
        %s4861 = sor.u32 256, 16
        %4862 = vbcast.lane.b32.xlu0 %v3327, %s4861
        %v4863 = vpop.permute.xlu0 %4862
        %s4865 = sor.u32 256, 16
        %4866 = vbcast.lane.b32.xlu0 %v3334, %s4865
        %v4867 = vpop.permute.xlu0 %4866
        %s4869 = sor.u32 256, 16
        %4870 = vbcast.lane.b32.xlu0 %v3341, %s4869
        %v4871 = vpop.permute.xlu0 %4870
        %s4873 = sor.u32 256, 16
        %4874 = vbcast.lane.b32.xlu0 %v3348, %s4873
        %v4875 = vpop.permute.xlu0 %4874
        %s4877 = sor.u32 256, 16
        %4878 = vbcast.lane.b32.xlu0 %v3355, %s4877
        %v4879 = vpop.permute.xlu0 %4878
        %s4881 = sor.u32 256, 16
        %4882 = vbcast.lane.b32.xlu0 %v3362, %s4881
        %v4883 = vpop.permute.xlu0 %4882
        %s4885 = sor.u32 256, 16
        %4886 = vbcast.lane.b32.xlu0 %v3369, %s4885
        %v4887 = vpop.permute.xlu0 %4886
        %s4889 = sor.u32 256, 16
        %4890 = vbcast.lane.b32.xlu0 %v3376, %s4889
        %v4891 = vpop.permute.xlu0 %4890
        %s4893 = sor.u32 256, 16
        %4894 = vbcast.lane.b32.xlu0 %v3383, %s4893
        %v4895 = vpop.permute.xlu0 %4894
        %s4897 = sor.u32 256, 16
        %4898 = vbcast.lane.b32.xlu0 %v3390, %s4897
        %v4899 = vpop.permute.xlu0 %4898
        %s4901 = sor.u32 256, 16
        %4902 = vbcast.lane.b32.xlu0 %v3397, %s4901
        %v4903 = vpop.permute.xlu0 %4902
        %s4905 = sor.u32 256, 16
        %4906 = vbcast.lane.b32.xlu0 %v3404, %s4905
        %v4907 = vpop.permute.xlu0 %4906
        %s4909 = sor.u32 256, 16
        %4910 = vbcast.lane.b32.xlu0 %v3411, %s4909
        %v4911 = vpop.permute.xlu0 %4910
        %s4913 = sor.u32 256, 16
        %4914 = vbcast.lane.b32.xlu0 %v3418, %s4913
        %v4915 = vpop.permute.xlu0 %4914
        %s4917 = sor.u32 256, 16
        %4918 = vbcast.lane.b32.xlu0 %v3425, %s4917
        %v4919 = vpop.permute.xlu0 %4918
        %s4921 = sor.u32 256, 16
        %4922 = vbcast.lane.b32.xlu0 %v3432, %s4921
        %v4923 = vpop.permute.xlu0 %4922
        %s4925 = sor.u32 256, 16
        %4926 = vbcast.lane.b32.xlu0 %v3439, %s4925
        %v4927 = vpop.permute.xlu0 %4926
        %s4929 = sor.u32 256, 16
        %4930 = vbcast.lane.b32.xlu0 %v3446, %s4929
        %v4931 = vpop.permute.xlu0 %4930
        %s4933 = sor.u32 256, 16
        %4934 = vbcast.lane.b32.xlu0 %v3453, %s4933
        %v4935 = vpop.permute.xlu0 %4934
        %s4937 = sor.u32 256, 16
        %4938 = vbcast.lane.b32.xlu0 %v3460, %s4937
        %v4939 = vpop.permute.xlu0 %4938
        %s4941 = sor.u32 256, 16
        %4942 = vbcast.lane.b32.xlu0 %v3467, %s4941
        %v4943 = vpop.permute.xlu0 %4942
        %s4945 = sor.u32 256, 16
        %4946 = vbcast.lane.b32.xlu0 %v3474, %s4945
        %v4947 = vpop.permute.xlu0 %4946
        %s4949 = sor.u32 256, 16
        %4950 = vbcast.lane.b32.xlu0 %v3481, %s4949
        %v4951 = vpop.permute.xlu0 %4950
        %s4953 = sor.u32 256, 16
        %4954 = vbcast.lane.b32.xlu0 %v3488, %s4953
        %v4955 = vpop.permute.xlu0 %4954
        %s4957 = sor.u32 256, 16
        %4958 = vbcast.lane.b32.xlu0 %v3495, %s4957
        %v4959 = vpop.permute.xlu0 %4958
        %s4961 = sor.u32 256, 16
        %4962 = vbcast.lane.b32.xlu0 %v3502, %s4961
        %v4963 = vpop.permute.xlu0 %4962
        %s4965 = sor.u32 256, 16
        %4966 = vbcast.lane.b32.xlu0 %v3509, %s4965
        %v4967 = vpop.permute.xlu0 %4966
        %s4969 = sor.u32 256, 16
        %4970 = vbcast.lane.b32.xlu0 %v3516, %s4969
        %v4971 = vpop.permute.xlu0 %4970
        %s4973 = sor.u32 256, 16
        %4974 = vbcast.lane.b32.xlu0 %v3523, %s4973
        %v4975 = vpop.permute.xlu0 %4974
        %s4977 = sor.u32 256, 16
        %4978 = vbcast.lane.b32.xlu0 %v3530, %s4977
        %v4979 = vpop.permute.xlu0 %4978
        %s4981 = sor.u32 256, 16
        %4982 = vbcast.lane.b32.xlu0 %v3537, %s4981
        %v4983 = vpop.permute.xlu0 %4982
        %s4985 = sor.u32 256, 16
        %4986 = vbcast.lane.b32.xlu0 %v3544, %s4985
        %v4987 = vpop.permute.xlu0 %4986
        %s4989 = sor.u32 256, 16
        %4990 = vbcast.lane.b32.xlu0 %v3551, %s4989
        %v4991 = vpop.permute.xlu0 %4990
        %s4993 = sor.u32 256, 16
        %4994 = vbcast.lane.b32.xlu0 %v3558, %s4993
        %v4995 = vpop.permute.xlu0 %4994
        %s4997 = sor.u32 256, 16
        %4998 = vbcast.lane.b32.xlu0 %v3565, %s4997
        %v4999 = vpop.permute.xlu0 %4998
        %s5001 = sor.u32 256, 16
        %5002 = vbcast.lane.b32.xlu0 %v3572, %s5001
        %v5003 = vpop.permute.xlu0 %5002
        %s5005 = sor.u32 256, 16
        %5006 = vbcast.lane.b32.xlu0 %v3579, %s5005
        %v5007 = vpop.permute.xlu0 %5006
        %s5009 = sor.u32 256, 16
        %5010 = vbcast.lane.b32.xlu0 %v3586, %s5009
        %v5011 = vpop.permute.xlu0 %5010
        %s5013 = sor.u32 256, 16
        %5014 = vbcast.lane.b32.xlu0 %v3593, %s5013
        %v5015 = vpop.permute.xlu0 %5014
        %s5017 = sor.u32 256, 16
        %5018 = vbcast.lane.b32.xlu0 %v3600, %s5017
        %v5019 = vpop.permute.xlu0 %5018
        %s5021 = sor.u32 256, 16
        %5022 = vbcast.lane.b32.xlu0 %v3607, %s5021
        %v5023 = vpop.permute.xlu0 %5022
        %s5025 = sor.u32 256, 16
        %5026 = vbcast.lane.b32.xlu0 %v3614, %s5025
        %v5027 = vpop.permute.xlu0 %5026
        %s5029 = sor.u32 256, 16
        %5030 = vbcast.lane.b32.xlu0 %v3621, %s5029
        %v5031 = vpop.permute.xlu0 %5030
        %s5033 = sor.u32 256, 16
        %5034 = vbcast.lane.b32.xlu0 %v3628, %s5033
        %v5035 = vpop.permute.xlu0 %5034
        %s5037 = sor.u32 256, 16
        %5038 = vbcast.lane.b32.xlu0 %v3635, %s5037
        %v5039 = vpop.permute.xlu0 %5038
        %s5041 = sor.u32 256, 16
        %5042 = vbcast.lane.b32.xlu0 %v3642, %s5041
        %v5043 = vpop.permute.xlu0 %5042
        %s5045 = sor.u32 256, 16
        %5046 = vbcast.lane.b32.xlu0 %v3649, %s5045
        %v5047 = vpop.permute.xlu0 %5046
        %s5049 = sor.u32 256, 16
        %5050 = vbcast.lane.b32.xlu0 %v3656, %s5049
        %v5051 = vpop.permute.xlu0 %5050
        %s5053 = sor.u32 256, 16
        %5054 = vbcast.lane.b32.xlu0 %v3663, %s5053
        %v5055 = vpop.permute.xlu0 %5054
        %s5057 = sor.u32 256, 16
        %5058 = vbcast.lane.b32.xlu0 %v3670, %s5057
        %v5059 = vpop.permute.xlu0 %5058
        %s5061 = sor.u32 256, 16
        %5062 = vbcast.lane.b32.xlu0 %v3677, %s5061
        %v5063 = vpop.permute.xlu0 %5062
        %s5065 = sor.u32 256, 16
        %5066 = vbcast.lane.b32.xlu0 %v3684, %s5065
        %v5067 = vpop.permute.xlu0 %5066
        %s5069 = sor.u32 256, 16
        %5070 = vbcast.lane.b32.xlu0 %v3691, %s5069
        %v5071 = vpop.permute.xlu0 %5070
        %s5073 = sor.u32 256, 16
        %5074 = vbcast.lane.b32.xlu0 %v3698, %s5073
        %v5075 = vpop.permute.xlu0 %5074
        %s5077 = sor.u32 256, 16
        %5078 = vbcast.lane.b32.xlu0 %v3705, %s5077
        %v5079 = vpop.permute.xlu0 %5078
        %s5081 = sor.u32 256, 16
        %5082 = vbcast.lane.b32.xlu0 %v3712, %s5081
        %v5083 = vpop.permute.xlu0 %5082
        %s5085 = sor.u32 256, 16
        %5086 = vbcast.lane.b32.xlu0 %v3719, %s5085
        %v5087 = vpop.permute.xlu0 %5086
        %s5089 = sor.u32 256, 16
        %5090 = vbcast.lane.b32.xlu0 %v3726, %s5089
        %v5091 = vpop.permute.xlu0 %5090
        %s5093 = sor.u32 256, 16
        %5094 = vbcast.lane.b32.xlu0 %v3733, %s5093
        %v5095 = vpop.permute.xlu0 %5094
        %s5097 = sor.u32 256, 16
        %5098 = vbcast.lane.b32.xlu0 %v3740, %s5097
        %v5099 = vpop.permute.xlu0 %5098
        %s5101 = sor.u32 256, 16
        %5102 = vbcast.lane.b32.xlu0 %v3747, %s5101
        %v5103 = vpop.permute.xlu0 %5102
        %s5105 = sor.u32 256, 16
        %5106 = vbcast.lane.b32.xlu0 %v3754, %s5105
        %v5107 = vpop.permute.xlu0 %5106
        %s5109 = sor.u32 256, 16
        %5110 = vbcast.lane.b32.xlu0 %v3761, %s5109
        %v5111 = vpop.permute.xlu0 %5110
        %s5113 = sor.u32 256, 16
        %5114 = vbcast.lane.b32.xlu0 %v3768, %s5113
        %v5115 = vpop.permute.xlu0 %5114
        %s5117 = sor.u32 256, 24
        %5118 = vbcast.lane.b32.xlu0 %v3327, %s5117
        %v5119 = vpop.permute.xlu0 %5118
        %s5121 = sor.u32 256, 24
        %5122 = vbcast.lane.b32.xlu0 %v3334, %s5121
        %v5123 = vpop.permute.xlu0 %5122
        %s5125 = sor.u32 256, 24
        %5126 = vbcast.lane.b32.xlu0 %v3341, %s5125
        %v5127 = vpop.permute.xlu0 %5126
        %s5129 = sor.u32 256, 24
        %5130 = vbcast.lane.b32.xlu0 %v3348, %s5129
        %v5131 = vpop.permute.xlu0 %5130
        %s5133 = sor.u32 256, 24
        %5134 = vbcast.lane.b32.xlu0 %v3355, %s5133
        %v5135 = vpop.permute.xlu0 %5134
        %s5137 = sor.u32 256, 24
        %5138 = vbcast.lane.b32.xlu0 %v3362, %s5137
        %v5139 = vpop.permute.xlu0 %5138
        %s5141 = sor.u32 256, 24
        %5142 = vbcast.lane.b32.xlu0 %v3369, %s5141
        %v5143 = vpop.permute.xlu0 %5142
        %s5145 = sor.u32 256, 24
        %5146 = vbcast.lane.b32.xlu0 %v3376, %s5145
        %v5147 = vpop.permute.xlu0 %5146
        %s5149 = sor.u32 256, 24
        %5150 = vbcast.lane.b32.xlu0 %v3383, %s5149
        %v5151 = vpop.permute.xlu0 %5150
        %s5153 = sor.u32 256, 24
        %5154 = vbcast.lane.b32.xlu0 %v3390, %s5153
        %v5155 = vpop.permute.xlu0 %5154
        %s5157 = sor.u32 256, 24
        %5158 = vbcast.lane.b32.xlu0 %v3397, %s5157
        %v5159 = vpop.permute.xlu0 %5158
        %s5161 = sor.u32 256, 24
        %5162 = vbcast.lane.b32.xlu0 %v3404, %s5161
        %v5163 = vpop.permute.xlu0 %5162
        %s5165 = sor.u32 256, 24
        %5166 = vbcast.lane.b32.xlu0 %v3411, %s5165
        %v5167 = vpop.permute.xlu0 %5166
        %s5169 = sor.u32 256, 24
        %5170 = vbcast.lane.b32.xlu0 %v3418, %s5169
        %v5171 = vpop.permute.xlu0 %5170
        %s5173 = sor.u32 256, 24
        %5174 = vbcast.lane.b32.xlu0 %v3425, %s5173
        %v5175 = vpop.permute.xlu0 %5174
        %s5177 = sor.u32 256, 24
        %5178 = vbcast.lane.b32.xlu0 %v3432, %s5177
        %v5179 = vpop.permute.xlu0 %5178
        %s5181 = sor.u32 256, 24
        %5182 = vbcast.lane.b32.xlu0 %v3439, %s5181
        %v5183 = vpop.permute.xlu0 %5182
        %s5185 = sor.u32 256, 24
        %5186 = vbcast.lane.b32.xlu0 %v3446, %s5185
        %v5187 = vpop.permute.xlu0 %5186
        %s5189 = sor.u32 256, 24
        %5190 = vbcast.lane.b32.xlu0 %v3453, %s5189
        %v5191 = vpop.permute.xlu0 %5190
        %s5193 = sor.u32 256, 24
        %5194 = vbcast.lane.b32.xlu0 %v3460, %s5193
        %v5195 = vpop.permute.xlu0 %5194
        %s5197 = sor.u32 256, 24
        %5198 = vbcast.lane.b32.xlu0 %v3467, %s5197
        %v5199 = vpop.permute.xlu0 %5198
        %s5201 = sor.u32 256, 24
        %5202 = vbcast.lane.b32.xlu0 %v3474, %s5201
        %v5203 = vpop.permute.xlu0 %5202
        %s5205 = sor.u32 256, 24
        %5206 = vbcast.lane.b32.xlu0 %v3481, %s5205
        %v5207 = vpop.permute.xlu0 %5206
        %s5209 = sor.u32 256, 24
        %5210 = vbcast.lane.b32.xlu0 %v3488, %s5209
        %v5211 = vpop.permute.xlu0 %5210
        %s5213 = sor.u32 256, 24
        %5214 = vbcast.lane.b32.xlu0 %v3495, %s5213
        %v5215 = vpop.permute.xlu0 %5214
        %s5217 = sor.u32 256, 24
        %5218 = vbcast.lane.b32.xlu0 %v3502, %s5217
        %v5219 = vpop.permute.xlu0 %5218
        %s5221 = sor.u32 256, 24
        %5222 = vbcast.lane.b32.xlu0 %v3509, %s5221
        %v5223 = vpop.permute.xlu0 %5222
        %s5225 = sor.u32 256, 24
        %5226 = vbcast.lane.b32.xlu0 %v3516, %s5225
        %v5227 = vpop.permute.xlu0 %5226
        %s5229 = sor.u32 256, 24
        %5230 = vbcast.lane.b32.xlu0 %v3523, %s5229
        %v5231 = vpop.permute.xlu0 %5230
        %s5233 = sor.u32 256, 24
        %5234 = vbcast.lane.b32.xlu0 %v3530, %s5233
        %v5235 = vpop.permute.xlu0 %5234
        %s5237 = sor.u32 256, 24
        %5238 = vbcast.lane.b32.xlu0 %v3537, %s5237
        %v5239 = vpop.permute.xlu0 %5238
        %s5241 = sor.u32 256, 24
        %5242 = vbcast.lane.b32.xlu0 %v3544, %s5241
        %v5243 = vpop.permute.xlu0 %5242
        %s5245 = sor.u32 256, 24
        %5246 = vbcast.lane.b32.xlu0 %v3551, %s5245
        %v5247 = vpop.permute.xlu0 %5246
        %s5249 = sor.u32 256, 24
        %5250 = vbcast.lane.b32.xlu0 %v3558, %s5249
        %v5251 = vpop.permute.xlu0 %5250
        %s5253 = sor.u32 256, 24
        %5254 = vbcast.lane.b32.xlu0 %v3565, %s5253
        %v5255 = vpop.permute.xlu0 %5254
        %s5257 = sor.u32 256, 24
        %5258 = vbcast.lane.b32.xlu0 %v3572, %s5257
        %v5259 = vpop.permute.xlu0 %5258
        %s5261 = sor.u32 256, 24
        %5262 = vbcast.lane.b32.xlu0 %v3579, %s5261
        %v5263 = vpop.permute.xlu0 %5262
        %s5265 = sor.u32 256, 24
        %5266 = vbcast.lane.b32.xlu0 %v3586, %s5265
        %v5267 = vpop.permute.xlu0 %5266
        %s5269 = sor.u32 256, 24
        %5270 = vbcast.lane.b32.xlu0 %v3593, %s5269
        %v5271 = vpop.permute.xlu0 %5270
        %s5273 = sor.u32 256, 24
        %5274 = vbcast.lane.b32.xlu0 %v3600, %s5273
        %v5275 = vpop.permute.xlu0 %5274
        %s5277 = sor.u32 256, 24
        %5278 = vbcast.lane.b32.xlu0 %v3607, %s5277
        %v5279 = vpop.permute.xlu0 %5278
        %s5281 = sor.u32 256, 24
        %5282 = vbcast.lane.b32.xlu0 %v3614, %s5281
        %v5283 = vpop.permute.xlu0 %5282
        %s5285 = sor.u32 256, 24
        %5286 = vbcast.lane.b32.xlu0 %v3621, %s5285
        %v5287 = vpop.permute.xlu0 %5286
        %s5289 = sor.u32 256, 24
        %5290 = vbcast.lane.b32.xlu0 %v3628, %s5289
        %v5291 = vpop.permute.xlu0 %5290
        %s5293 = sor.u32 256, 24
        %5294 = vbcast.lane.b32.xlu0 %v3635, %s5293
        %v5295 = vpop.permute.xlu0 %5294
        %s5297 = sor.u32 256, 24
        %5298 = vbcast.lane.b32.xlu0 %v3642, %s5297
        %v5299 = vpop.permute.xlu0 %5298
        %s5301 = sor.u32 256, 24
        %5302 = vbcast.lane.b32.xlu0 %v3649, %s5301
        %v5303 = vpop.permute.xlu0 %5302
        %s5305 = sor.u32 256, 24
        %5306 = vbcast.lane.b32.xlu0 %v3656, %s5305
        %v5307 = vpop.permute.xlu0 %5306
        %s5309 = sor.u32 256, 24
        %5310 = vbcast.lane.b32.xlu0 %v3663, %s5309
        %v5311 = vpop.permute.xlu0 %5310
        %s5313 = sor.u32 256, 24
        %5314 = vbcast.lane.b32.xlu0 %v3670, %s5313
        %v5315 = vpop.permute.xlu0 %5314
        %s5317 = sor.u32 256, 24
        %5318 = vbcast.lane.b32.xlu0 %v3677, %s5317
        %v5319 = vpop.permute.xlu0 %5318
        %s5321 = sor.u32 256, 24
        %5322 = vbcast.lane.b32.xlu0 %v3684, %s5321
        %v5323 = vpop.permute.xlu0 %5322
        %s5325 = sor.u32 256, 24
        %5326 = vbcast.lane.b32.xlu0 %v3691, %s5325
        %v5327 = vpop.permute.xlu0 %5326
        %s5329 = sor.u32 256, 24
        %5330 = vbcast.lane.b32.xlu0 %v3698, %s5329
        %v5331 = vpop.permute.xlu0 %5330
        %s5333 = sor.u32 256, 24
        %5334 = vbcast.lane.b32.xlu0 %v3705, %s5333
        %v5335 = vpop.permute.xlu0 %5334
        %s5337 = sor.u32 256, 24
        %5338 = vbcast.lane.b32.xlu0 %v3712, %s5337
        %v5339 = vpop.permute.xlu0 %5338
        %s5341 = sor.u32 256, 24
        %5342 = vbcast.lane.b32.xlu0 %v3719, %s5341
        %v5343 = vpop.permute.xlu0 %5342
        %s5345 = sor.u32 256, 24
        %5346 = vbcast.lane.b32.xlu0 %v3726, %s5345
        %v5347 = vpop.permute.xlu0 %5346
        %s5349 = sor.u32 256, 24
        %5350 = vbcast.lane.b32.xlu0 %v3733, %s5349
        %v5351 = vpop.permute.xlu0 %5350
        %s5353 = sor.u32 256, 24
        %5354 = vbcast.lane.b32.xlu0 %v3740, %s5353
        %v5355 = vpop.permute.xlu0 %5354
        %s5357 = sor.u32 256, 24
        %5358 = vbcast.lane.b32.xlu0 %v3747, %s5357
        %v5359 = vpop.permute.xlu0 %5358
        %s5361 = sor.u32 256, 24
        %5362 = vbcast.lane.b32.xlu0 %v3754, %s5361
        %v5363 = vpop.permute.xlu0 %5362
        %s5365 = sor.u32 256, 24
        %5366 = vbcast.lane.b32.xlu0 %v3761, %s5365
        %v5367 = vpop.permute.xlu0 %5366
        %s5369 = sor.u32 256, 24
        %5370 = vbcast.lane.b32.xlu0 %v3768, %s5369
        %v5371 = vpop.permute.xlu0 %5370
        %v5372 = vsel %vm696, %v4863, %v5119
        %v5373 = vsel %vm696, %v4867, %v5123
        %v5374 = vsel %vm696, %v4871, %v5127
        %v5375 = vsel %vm696, %v4875, %v5131
        %v5376 = vsel %vm696, %v4879, %v5135
        %v5377 = vsel %vm696, %v4883, %v5139
        %v5378 = vsel %vm696, %v4887, %v5143
        %v5379 = vsel %vm696, %v4891, %v5147
        %v5380 = vsel %vm696, %v4895, %v5151
        %v5381 = vsel %vm696, %v4899, %v5155
        %v5382 = vsel %vm696, %v4903, %v5159
        %v5383 = vsel %vm696, %v4907, %v5163
        %v5384 = vsel %vm696, %v4911, %v5167
        %v5385 = vsel %vm696, %v4915, %v5171
        %v5386 = vsel %vm696, %v4919, %v5175
        %v5387 = vsel %vm696, %v4923, %v5179
        %v5388 = vsel %vm696, %v4927, %v5183
        %v5389 = vsel %vm696, %v4931, %v5187
        %v5390 = vsel %vm696, %v4935, %v5191
        %v5391 = vsel %vm696, %v4939, %v5195
        %v5392 = vsel %vm696, %v4943, %v5199
        %v5393 = vsel %vm696, %v4947, %v5203
        %v5394 = vsel %vm696, %v4951, %v5207
        %v5395 = vsel %vm696, %v4955, %v5211
        %v5396 = vsel %vm696, %v4959, %v5215
        %v5397 = vsel %vm696, %v4963, %v5219
        %v5398 = vsel %vm696, %v4967, %v5223
        %v5399 = vsel %vm696, %v4971, %v5227
        %v5400 = vsel %vm696, %v4975, %v5231
        %v5401 = vsel %vm696, %v4979, %v5235
        %v5402 = vsel %vm696, %v4983, %v5239
        %v5403 = vsel %vm696, %v4987, %v5243
        %v5404 = vsel %vm696, %v4991, %v5247
        %v5405 = vsel %vm696, %v4995, %v5251
        %v5406 = vsel %vm696, %v4999, %v5255
        %v5407 = vsel %vm696, %v5003, %v5259
        %v5408 = vsel %vm696, %v5007, %v5263
        %v5409 = vsel %vm696, %v5011, %v5267
        %v5410 = vsel %vm696, %v5015, %v5271
        %v5411 = vsel %vm696, %v5019, %v5275
        %v5412 = vsel %vm696, %v5023, %v5279
        %v5413 = vsel %vm696, %v5027, %v5283
        %v5414 = vsel %vm696, %v5031, %v5287
        %v5415 = vsel %vm696, %v5035, %v5291
        %v5416 = vsel %vm696, %v5039, %v5295
        %v5417 = vsel %vm696, %v5043, %v5299
        %v5418 = vsel %vm696, %v5047, %v5303
        %v5419 = vsel %vm696, %v5051, %v5307
        %v5420 = vsel %vm696, %v5055, %v5311
        %v5421 = vsel %vm696, %v5059, %v5315
        %v5422 = vsel %vm696, %v5063, %v5319
        %v5423 = vsel %vm696, %v5067, %v5323
        %v5424 = vsel %vm696, %v5071, %v5327
        %v5425 = vsel %vm696, %v5075, %v5331
        %v5426 = vsel %vm696, %v5079, %v5335
        %v5427 = vsel %vm696, %v5083, %v5339
        %v5428 = vsel %vm696, %v5087, %v5343
        %v5429 = vsel %vm696, %v5091, %v5347
        %v5430 = vsel %vm696, %v5095, %v5351
        %v5431 = vsel %vm696, %v5099, %v5355
        %v5432 = vsel %vm696, %v5103, %v5359
        %v5433 = vsel %vm696, %v5107, %v5363
        %v5434 = vsel %vm696, %v5111, %v5367
        %v5435 = vsel %vm696, %v5115, %v5371
        %5436 = vst [vmem:[#allocation5] sm:$0xff] %v5372
        %5437 = vst [vmem:[#allocation5 + $0x8] sm:$0xff] %v5373
        %5438 = vst [vmem:[#allocation5 + $0x10] sm:$0xff] %v5374
        %5439 = vst [vmem:[#allocation5 + $0x18] sm:$0xff] %v5375
        %5440 = vst [vmem:[#allocation5 + $0x20] sm:$0xff] %v5376
        %5441 = vst [vmem:[#allocation5 + $0x28] sm:$0xff] %v5377
        %5442 = vst [vmem:[#allocation5 + $0x30] sm:$0xff] %v5378
        %5443 = vst [vmem:[#allocation5 + $0x38] sm:$0xff] %v5379
        %5444 = vst [vmem:[#allocation5 + $0x40] sm:$0xff] %v5380
        %5445 = vst [vmem:[#allocation5 + $0x48] sm:$0xff] %v5381
        %5446 = vst [vmem:[#allocation5 + $0x50] sm:$0xff] %v5382
        %5447 = vst [vmem:[#allocation5 + $0x58] sm:$0xff] %v5383
        %5448 = vst [vmem:[#allocation5 + $0x60] sm:$0xff] %v5384
        %5449 = vst [vmem:[#allocation5 + $0x68] sm:$0xff] %v5385
        %5450 = vst [vmem:[#allocation5 + $0x70] sm:$0xff] %v5386
        %5451 = vst [vmem:[#allocation5 + $0x78] sm:$0xff] %v5387
        %5452 = vst [vmem:[#allocation5 + $0x80] sm:$0xff] %v5388
        %5453 = vst [vmem:[#allocation5 + $0x88] sm:$0xff] %v5389
        %5454 = vst [vmem:[#allocation5 + $0x90] sm:$0xff] %v5390
        %5455 = vst [vmem:[#allocation5 + $0x98] sm:$0xff] %v5391
        %5456 = vst [vmem:[#allocation5 + $0xa0] sm:$0xff] %v5392
        %5457 = vst [vmem:[#allocation5 + $0xa8] sm:$0xff] %v5393
        %5458 = vst [vmem:[#allocation5 + $0xb0] sm:$0xff] %v5394
        %5459 = vst [vmem:[#allocation5 + $0xb8] sm:$0xff] %v5395
        %5460 = vst [vmem:[#allocation5 + $0xc0] sm:$0xff] %v5396
        %5461 = vst [vmem:[#allocation5 + $0xc8] sm:$0xff] %v5397
        %5462 = vst [vmem:[#allocation5 + $0xd0] sm:$0xff] %v5398
        %5463 = vst [vmem:[#allocation5 + $0xd8] sm:$0xff] %v5399
        %5464 = vst [vmem:[#allocation5 + $0xe0] sm:$0xff] %v5400
        %5465 = vst [vmem:[#allocation5 + $0xe8] sm:$0xff] %v5401
        %5466 = vst [vmem:[#allocation5 + $0xf0] sm:$0xff] %v5402
        %5467 = vst [vmem:[#allocation5 + $0xf8] sm:$0xff] %v5403
        %5468 = vst [vmem:[#allocation5 + $0x100] sm:$0xff] %v5404
        %5469 = vst [vmem:[#allocation5 + $0x108] sm:$0xff] %v5405
        %5470 = vst [vmem:[#allocation5 + $0x110] sm:$0xff] %v5406
        %5471 = vst [vmem:[#allocation5 + $0x118] sm:$0xff] %v5407
        %5472 = vst [vmem:[#allocation5 + $0x120] sm:$0xff] %v5408
        %5473 = vst [vmem:[#allocation5 + $0x128] sm:$0xff] %v5409
        %5474 = vst [vmem:[#allocation5 + $0x130] sm:$0xff] %v5410
        %5475 = vst [vmem:[#allocation5 + $0x138] sm:$0xff] %v5411
        %5476 = vst [vmem:[#allocation5 + $0x140] sm:$0xff] %v5412
        %5477 = vst [vmem:[#allocation5 + $0x148] sm:$0xff] %v5413
        %5478 = vst [vmem:[#allocation5 + $0x150] sm:$0xff] %v5414
        %5479 = vst [vmem:[#allocation5 + $0x158] sm:$0xff] %v5415
        %5480 = vst [vmem:[#allocation5 + $0x160] sm:$0xff] %v5416
        %5481 = vst [vmem:[#allocation5 + $0x168] sm:$0xff] %v5417
        %5482 = vst [vmem:[#allocation5 + $0x170] sm:$0xff] %v5418
        %5483 = vst [vmem:[#allocation5 + $0x178] sm:$0xff] %v5419
        %5484 = vst [vmem:[#allocation5 + $0x180] sm:$0xff] %v5420
        %5485 = vst [vmem:[#allocation5 + $0x188] sm:$0xff] %v5421
        %5486 = vst [vmem:[#allocation5 + $0x190] sm:$0xff] %v5422
        %5487 = vst [vmem:[#allocation5 + $0x198] sm:$0xff] %v5423
        %5488 = vst [vmem:[#allocation5 + $0x1a0] sm:$0xff] %v5424
        %5489 = vst [vmem:[#allocation5 + $0x1a8] sm:$0xff] %v5425
        %5490 = vst [vmem:[#allocation5 + $0x1b0] sm:$0xff] %v5426
        %5491 = vst [vmem:[#allocation5 + $0x1b8] sm:$0xff] %v5427
        %5492 = vst [vmem:[#allocation5 + $0x1c0] sm:$0xff] %v5428
        %5493 = vst [vmem:[#allocation5 + $0x1c8] sm:$0xff] %v5429
        %5494 = vst [vmem:[#allocation5 + $0x1d0] sm:$0xff] %v5430
        %5495 = vst [vmem:[#allocation5 + $0x1d8] sm:$0xff] %v5431
        %5496 = vst [vmem:[#allocation5 + $0x1e0] sm:$0xff] %v5432
        %5497 = vst [vmem:[#allocation5 + $0x1e8] sm:$0xff] %v5433
        %5498 = vst [vmem:[#allocation5 + $0x1f0] sm:$0xff] %v5434
        %5499 = vst [vmem:[#allocation5 + $0x1f8] sm:$0xff] %v5435
        loop: start=0, step=1, limit=8
        $region85: #{tpu_custom_call.1} parent=59 // loop_pre_header
          _
        $region86: #{tpu_custom_call.1} parent=59 // loop_header
          %s5501 = sphi 0, %s5505
          %p5502 = scmp.ge.s32.totalorder %s5501, 8
          %v5506 = vphi 0.0, %v5560
          %v5507 = vphi 0.0, %v5562
          %v5508 = vphi 0.0, %v5564
          %v5509 = vphi 0.0, %v5566
          %v5510 = vphi 0.0, %v5568
          %v5511 = vphi 0.0, %v5570
          %v5512 = vphi 0.0, %v5572
          %v5513 = vphi 0.0, %v5574
        $region87: #{tpu_custom_call.1} parent=59 // loop_header_branch
          %5504 = sbr.rel (%p5502) target = $region91
        $region88: #{tpu_custom_call.1} parent=59 // loop_body
          %s5514 = smul.u32 %s5501, 8
          %s5515 = smul.u32 %s5514, 8
          %s5516 = scalar_lea.vmem [#allocation2], %s5515
          %v5517 = vld [vmem:[%s5516] sm:$0xff]
          %v5518 = vld [vmem:[%s5516 + $0x8] sm:$0xff]
          %v5519 = vld [vmem:[%s5516 + $0x10] sm:$0xff]
          %v5520 = vld [vmem:[%s5516 + $0x18] sm:$0xff]
          %v5521 = vld [vmem:[%s5516 + $0x20] sm:$0xff]
          %v5522 = vld [vmem:[%s5516 + $0x28] sm:$0xff]
          %v5523 = vld [vmem:[%s5516 + $0x30] sm:$0xff]
          %v5524 = vld [vmem:[%s5516 + $0x38] sm:$0xff]
          %s5525 = scalar_lea.vmem [#allocation3], %s5515
          %v5526 = vld [vmem:[%s5525] sm:$0xff]
          %v5527 = vld [vmem:[%s5525 + $0x8] sm:$0xff]
          %v5528 = vld [vmem:[%s5525 + $0x10] sm:$0xff]
          %v5529 = vld [vmem:[%s5525 + $0x18] sm:$0xff]
          %v5530 = vld [vmem:[%s5525 + $0x20] sm:$0xff]
          %v5531 = vld [vmem:[%s5525 + $0x28] sm:$0xff]
          %v5532 = vld [vmem:[%s5525 + $0x30] sm:$0xff]
          %v5533 = vld [vmem:[%s5525 + $0x38] sm:$0xff]
          %s5534 = scalar_lea.vmem [#allocation4], %s5515
          %v5535 = vld [vmem:[%s5534] sm:$0xff]
          %v5536 = vld [vmem:[%s5534 + $0x8] sm:$0xff]
          %v5537 = vld [vmem:[%s5534 + $0x10] sm:$0xff]
          %v5538 = vld [vmem:[%s5534 + $0x18] sm:$0xff]
          %v5539 = vld [vmem:[%s5534 + $0x20] sm:$0xff]
          %v5540 = vld [vmem:[%s5534 + $0x28] sm:$0xff]
          %v5541 = vld [vmem:[%s5534 + $0x30] sm:$0xff]
          %v5542 = vld [vmem:[%s5534 + $0x38] sm:$0xff]
          %v5543 = vmul.f32 %v5517, %v5506
          %v5544 = vmul.f32 %v5518, %v5507
          %v5545 = vmul.f32 %v5519, %v5508
          %v5546 = vmul.f32 %v5520, %v5509
          %v5547 = vmul.f32 %v5521, %v5510
          %v5548 = vmul.f32 %v5522, %v5511
          %v5549 = vmul.f32 %v5523, %v5512
          %v5550 = vmul.f32 %v5524, %v5513
          %v5551 = vadd.f32 %v5543, %v5535
          %v5552 = vadd.f32 %v5544, %v5536
          %v5553 = vadd.f32 %v5545, %v5537
          %v5554 = vadd.f32 %v5546, %v5538
          %v5555 = vadd.f32 %v5547, %v5539
          %v5556 = vadd.f32 %v5548, %v5540
          %v5557 = vadd.f32 %v5549, %v5541
          %v5558 = vadd.f32 %v5550, %v5542
          %v5559 = vmul.f32 %v5526, 0.0
          %v5560 = vadd.f32 %v5559, %v5551
          %v5561 = vmul.f32 %v5527, %v5560
          %v5562 = vadd.f32 %v5561, %v5552
          %v5563 = vmul.f32 %v5528, %v5562
          %v5564 = vadd.f32 %v5563, %v5553
          %v5565 = vmul.f32 %v5529, %v5564
          %v5566 = vadd.f32 %v5565, %v5554
          %v5567 = vmul.f32 %v5530, %v5566
          %v5568 = vadd.f32 %v5567, %v5555
          %v5569 = vmul.f32 %v5531, %v5568
          %v5570 = vadd.f32 %v5569, %v5556
          %v5571 = vmul.f32 %v5532, %v5570
          %v5572 = vadd.f32 %v5571, %v5557
          %v5573 = vmul.f32 %v5533, %v5572
          %v5574 = vadd.f32 %v5573, %v5558
          %s5575 = scalar_lea.vmem [#allocation5], %s5515
          %v5576 = vld [vmem:[%s5575] sm:$0xff]
          %v5577 = vld [vmem:[%s5575 + $0x8] sm:$0xff]
          %v5578 = vld [vmem:[%s5575 + $0x10] sm:$0xff]
          %v5579 = vld [vmem:[%s5575 + $0x18] sm:$0xff]
          %v5580 = vld [vmem:[%s5575 + $0x20] sm:$0xff]
          %v5581 = vld [vmem:[%s5575 + $0x28] sm:$0xff]
          %v5582 = vld [vmem:[%s5575 + $0x30] sm:$0xff]
          %v5583 = vld [vmem:[%s5575 + $0x38] sm:$0xff]
          %v5584 = vmul.f32 %v5560, %v5576
          %v5585 = vmul.f32 %v5562, %v5577
          %v5586 = vmul.f32 %v5564, %v5578
          %v5587 = vmul.f32 %v5566, %v5579
          %v5588 = vmul.f32 %v5568, %v5580
          %v5589 = vmul.f32 %v5570, %v5581
          %v5590 = vmul.f32 %v5572, %v5582
          %v5591 = vmul.f32 %v5574, %v5583
          %v5592 = vrot.slane %v5584, 4
          %v5593 = vadd.f32 %v5584, %v5592
          %v5594 = vrot.slane %v5593, 2
          %v5595 = vadd.f32 %v5593, %v5594
          %v5596 = vrot.slane %v5595, 1
          %v5597 = vadd.f32 %v5595, %v5596
          %v5598 = vrot.slane %v5585, 4
          %v5599 = vadd.f32 %v5585, %v5598
          %v5600 = vrot.slane %v5599, 2
          %v5601 = vadd.f32 %v5599, %v5600
          %v5602 = vrot.slane %v5601, 1
          %v5603 = vadd.f32 %v5601, %v5602
          %v5604 = vrot.slane %v5586, 4
          %v5605 = vadd.f32 %v5586, %v5604
          %v5606 = vrot.slane %v5605, 2
          %v5607 = vadd.f32 %v5605, %v5606
          %v5608 = vrot.slane %v5607, 1
          %v5609 = vadd.f32 %v5607, %v5608
          %v5610 = vrot.slane %v5587, 4
          %v5611 = vadd.f32 %v5587, %v5610
          %v5612 = vrot.slane %v5611, 2
          %v5613 = vadd.f32 %v5611, %v5612
          %v5614 = vrot.slane %v5613, 1
          %v5615 = vadd.f32 %v5613, %v5614
          %v5616 = vrot.slane %v5588, 4
          %v5617 = vadd.f32 %v5588, %v5616
          %v5618 = vrot.slane %v5617, 2
          %v5619 = vadd.f32 %v5617, %v5618
          %v5620 = vrot.slane %v5619, 1
          %v5621 = vadd.f32 %v5619, %v5620
          %v5622 = vrot.slane %v5589, 4
          %v5623 = vadd.f32 %v5589, %v5622
          %v5624 = vrot.slane %v5623, 2
          %v5625 = vadd.f32 %v5623, %v5624
          %v5626 = vrot.slane %v5625, 1
          %v5627 = vadd.f32 %v5625, %v5626
          %v5628 = vrot.slane %v5590, 4
          %v5629 = vadd.f32 %v5590, %v5628
          %v5630 = vrot.slane %v5629, 2
          %v5631 = vadd.f32 %v5629, %v5630
          %v5632 = vrot.slane %v5631, 1
          %v5633 = vadd.f32 %v5631, %v5632
          %v5634 = vrot.slane %v5591, 4
          %v5635 = vadd.f32 %v5591, %v5634
          %v5636 = vrot.slane %v5635, 2
          %v5637 = vadd.f32 %v5635, %v5636
          %v5638 = vrot.slane %v5637, 1
          %v5639 = vadd.f32 %v5637, %v5638
          %vm5648 = vcmask 1041409
          %v5649 = vsel %vm5648, %v5603, %v5597
          %vm5650 = vcmask 1042434
          %v5651 = vsel %vm5650, %v5609, %v5649
          %vm5652 = vcmask 1043459
          %v5653 = vsel %vm5652, %v5615, %v5651
          %vm5654 = vcmask 1044484
          %v5655 = vsel %vm5654, %v5621, %v5653
          %vm5656 = vcmask 1045509
          %v5657 = vsel %vm5656, %v5627, %v5655
          %vm5658 = vcmask 1046534
          %v5659 = vsel %vm5658, %v5633, %v5657
          %vm5660 = vcmask 1047559
          %v5661 = vsel %vm5660, %v5639, %v5659
          %5663 = vrot.lane.b32.xlu0 %v5661, 64
          %v5664 = vpop.permute.xlu0 %5663
          %v5666 = vrot.slane %v5664, 1
          %v5667 = vrot.slane %v5664, 2
          %v5668 = vrot.slane %v5664, 3
          %v5669 = vrot.slane %v5664, 4
          %v5670 = vrot.slane %v5664, 5
          %v5671 = vrot.slane %v5664, 6
          %v5672 = vrot.slane %v5664, 7
          %v5681 = vadd.f32 %v5597, %v5664
          %v5682 = vadd.f32 %v5603, %v5666
          %v5683 = vadd.f32 %v5609, %v5667
          %v5684 = vadd.f32 %v5615, %v5668
          %v5685 = vadd.f32 %v5621, %v5669
          %v5686 = vadd.f32 %v5627, %v5670
          %v5687 = vadd.f32 %v5633, %v5671
          %v5688 = vadd.f32 %v5639, %v5672
          %v5697 = vrot.slane %v5682, 7
          %v5698 = vsel %vm5648, %v5697, %v5681
          %v5699 = vrot.slane %v5683, 6
          %v5700 = vsel %vm5650, %v5699, %v5698
          %v5701 = vrot.slane %v5684, 5
          %v5702 = vsel %vm5652, %v5701, %v5700
          %v5703 = vrot.slane %v5685, 4
          %v5704 = vsel %vm5654, %v5703, %v5702
          %v5705 = vrot.slane %v5686, 3
          %v5706 = vsel %vm5656, %v5705, %v5704
          %v5707 = vrot.slane %v5687, 2
          %v5708 = vsel %vm5658, %v5707, %v5706
          %v5709 = vrot.slane %v5688, 1
          %v5710 = vsel %vm5660, %v5709, %v5708
          %s5712 = scalar_lea.vmem [#allocation6], %s5514
          %5713 = vst.msk [vmem:[%s5712] sm:$0xff] %vm696, %v5710
        $region89: #{tpu_custom_call.1} parent=59 // loop_footer
          %s5505 = sadd.s32 1, %s5501
        $region90: #{tpu_custom_call.1} parent=59 // loop_footer_branch
          %5500 = sbr.rel target = $region86
        $region91: #{tpu_custom_call.1} parent=59 // loop_exit
          _
        %v5714 = vld [vmem:[#allocation6] sm:$0xff]
        %v5715 = vld [vmem:[#allocation6 + $0x8] sm:$0xff]
        %v5716 = vld [vmem:[#allocation6 + $0x10] sm:$0xff]
        %v5717 = vld [vmem:[#allocation6 + $0x18] sm:$0xff]
        %v5718 = vld [vmem:[#allocation6 + $0x20] sm:$0xff]
        %v5719 = vld [vmem:[#allocation6 + $0x28] sm:$0xff]
        %v5720 = vld [vmem:[#allocation6 + $0x30] sm:$0xff]
        %v5721 = vld [vmem:[#allocation6 + $0x38] sm:$0xff]
        %v5722 = vld [vmem:[%s7] sm:$0x1]
        %v5724 = vlaneseq
        %v5725 = vshrl.u32 %v5724, 7
        %v5726 = vsub.s32 0, %v5725
        %v5727 = vrot.slane %v5722, %v5726
        %v5729 = vmul.f32 %v660, %v5727
        %v5730 = vmul.f32 %v661, %v5727
        %v5731 = vmul.f32 %v662, %v5727
        %v5732 = vmul.f32 %v663, %v5727
        %v5733 = vmul.f32 %v664, %v5727
        %v5734 = vmul.f32 %v665, %v5727
        %v5735 = vmul.f32 %v666, %v5727
        %v5736 = vmul.f32 %v667, %v5727
        %v5737 = vadd.f32 %v5714, %v5729
        %v5738 = vadd.f32 %v5715, %v5730
        %v5739 = vadd.f32 %v5716, %v5731
        %v5740 = vadd.f32 %v5717, %v5732
        %v5741 = vadd.f32 %v5718, %v5733
        %v5742 = vadd.f32 %v5719, %v5734
        %v5743 = vadd.f32 %v5720, %v5735
        %v5744 = vadd.f32 %v5721, %v5736
        %v5745 = vmul.f32 %v5737, 0.5
        %v5746 = vmul.f32 %v5738, 0.5
        %v5747 = vmul.f32 %v5739, 0.5
        %v5748 = vmul.f32 %v5740, 0.5
        %v5749 = vmul.f32 %v5741, 0.5
        %v5750 = vmul.f32 %v5742, 0.5
        %v5751 = vmul.f32 %v5743, 0.5
        %v5752 = vmul.f32 %v5744, 0.5
        %v5753 = vmul.f32 %v5737, 0.044715
        %v5754 = vmul.f32 %v5738, 0.044715
        %v5755 = vmul.f32 %v5739, 0.044715
        %v5756 = vmul.f32 %v5740, 0.044715
        %v5757 = vmul.f32 %v5741, 0.044715
        %v5758 = vmul.f32 %v5742, 0.044715
        %v5759 = vmul.f32 %v5743, 0.044715
        %v5760 = vmul.f32 %v5744, 0.044715
        %v5761 = vmul.f32 %v5753, %v5737
        %v5762 = vmul.f32 %v5754, %v5738
        %v5763 = vmul.f32 %v5755, %v5739
        %v5764 = vmul.f32 %v5756, %v5740
        %v5765 = vmul.f32 %v5757, %v5741
        %v5766 = vmul.f32 %v5758, %v5742
        %v5767 = vmul.f32 %v5759, %v5743
        %v5768 = vmul.f32 %v5760, %v5744
        %v5769 = vmul.f32 %v5761, %v5737
        %v5770 = vmul.f32 %v5762, %v5738
        %v5771 = vmul.f32 %v5763, %v5739
        %v5772 = vmul.f32 %v5764, %v5740
        %v5773 = vmul.f32 %v5765, %v5741
        %v5774 = vmul.f32 %v5766, %v5742
        %v5775 = vmul.f32 %v5767, %v5743
        %v5776 = vmul.f32 %v5768, %v5744
        %v5777 = vadd.f32 %v5737, %v5769
        %v5778 = vadd.f32 %v5738, %v5770
        %v5779 = vadd.f32 %v5739, %v5771
        %v5780 = vadd.f32 %v5740, %v5772
        %v5781 = vadd.f32 %v5741, %v5773
        %v5782 = vadd.f32 %v5742, %v5774
        %v5783 = vadd.f32 %v5743, %v5775
        %v5784 = vadd.f32 %v5744, %v5776
        %v5785 = vmul.f32 %v5777, 0.7978846
        %v5786 = vmul.f32 %v5778, 0.7978846
        %v5787 = vmul.f32 %v5779, 0.7978846
        %v5788 = vmul.f32 %v5780, 0.7978846
        %v5789 = vmul.f32 %v5781, 0.7978846
        %v5790 = vmul.f32 %v5782, 0.7978846
        %v5791 = vmul.f32 %v5783, 0.7978846
        %v5792 = vmul.f32 %v5784, 0.7978846
        %v5793 = vtanh.pop %v5785
        %v5794 = vtanh.pop %v5786
        %v5795 = vtanh.pop %v5787
        %v5796 = vtanh.pop %v5788
        %v5797 = vtanh.pop %v5789
        %v5798 = vtanh.pop %v5790
        %v5799 = vtanh.pop %v5791
        %v5800 = vtanh.pop %v5792
        %v5801 = vadd.f32 %v5793, 1.0
        %v5802 = vadd.f32 %v5794, 1.0
        %v5803 = vadd.f32 %v5795, 1.0
        %v5804 = vadd.f32 %v5796, 1.0
        %v5805 = vadd.f32 %v5797, 1.0
        %v5806 = vadd.f32 %v5798, 1.0
        %v5807 = vadd.f32 %v5799, 1.0
        %v5808 = vadd.f32 %v5800, 1.0
        %v5809 = vmul.f32 %v5745, %v5801
        %v5810 = vmul.f32 %v5746, %v5802
        %v5811 = vmul.f32 %v5747, %v5803
        %v5812 = vmul.f32 %v5748, %v5804
        %v5813 = vmul.f32 %v5749, %v5805
        %v5814 = vmul.f32 %v5750, %v5806
        %v5815 = vmul.f32 %v5751, %v5807
        %v5816 = vmul.f32 %v5752, %v5808
        %v5817 = vld [vmem:[#allocation16] sm:$0xff]
        %v5818 = vld [vmem:[#allocation16 + $0x8] sm:$0xff]
        %v5819 = vld [vmem:[#allocation16 + $0x10] sm:$0xff]
        %v5820 = vld [vmem:[#allocation16 + $0x18] sm:$0xff]
        %v5821 = vld [vmem:[#allocation16 + $0x20] sm:$0xff]
        %v5822 = vld [vmem:[#allocation16 + $0x28] sm:$0xff]
        %v5823 = vld [vmem:[#allocation16 + $0x30] sm:$0xff]
        %v5824 = vld [vmem:[#allocation16 + $0x38] sm:$0xff]
        %v5825 = vld [vmem:[%s9] sm:$0x1]
        %v5827 = vlaneseq
        %v5828 = vshrl.u32 %v5827, 7
        %v5829 = vsub.s32 0, %v5828
        %v5830 = vrot.slane %v5825, %v5829
        %v5833 = vsel %vm696, %v5809, 0
        %v5836 = vsel %vm696, %v5810, 0
        %v5839 = vsel %vm696, %v5811, 0
        %v5842 = vsel %vm696, %v5812, 0
        %v5845 = vsel %vm696, %v5813, 0
        %v5848 = vsel %vm696, %v5814, 0
        %v5851 = vsel %vm696, %v5815, 0
        %v5854 = vsel %vm696, %v5816, 0
        %5856 = vmatprep.subr.mxu0 0.0
        %5857 = vmatpush1.msra.mxu0 0.0
        %5858 = vmatprep.subr.mxu0 0.0
        %5859 = vmatpush1.msra.mxu0 0.0
        %5860 = vmatprep.subr.mxu0 0.0
        %5861 = vmatpush1.msra.mxu0 0.0
        %5862 = vmatprep.subr.mxu0 0.0
        %5863 = vmatpush1.msra.mxu0 0.0
        %5864 = vmatprep.subr.mxu0 0.0
        %5865 = vmatpush1.msra.mxu0 0.0
        %5866 = vmatprep.subr.mxu0 0.0
        %5867 = vmatpush1.msra.mxu0 0.0
        %5868 = vmatprep.subr.mxu0 0.0
        %5869 = vmatpush1.msra.mxu0 0.0
        %5870 = vmatprep.subr.mxu0 0.0
        %5871 = vmatpush1.msra.mxu0 0.0
        %5872 = vmatprep.subr.mxu0 0.0
        %5873 = vmatpush1.msra.mxu0 %v5824
        %5874 = vmatprep.subr.mxu0 0.0
        %5875 = vmatpush1.msra.mxu0 %v5823
        %5876 = vmatprep.subr.mxu0 0.0
        %5877 = vmatpush1.msra.mxu0 %v5822
        %5878 = vmatprep.subr.mxu0 0.0
        %5879 = vmatpush1.msra.mxu0 %v5821
        %5880 = vmatprep.subr.mxu0 0.0
        %5881 = vmatpush1.msra.mxu0 %v5820
        %5882 = vmatprep.subr.mxu0 0.0
        %5883 = vmatpush1.msra.mxu0 %v5819
        %5884 = vmatprep.subr.mxu0 0.0
        %5885 = vmatpush1.msra.mxu0 %v5818
        %5886 = vmatprep.subr.mxu0 0.0
        %5887 = vmatpush1.msra.mxu0 %v5817
        %5888 = vmatprep.subr.mxu0 0.0
        %5889 = vmatpush2.msra.mxu0 0.0
        %5890 = vmatprep.subr.mxu0 0.0
        %5891 = vmatpush2.msra.mxu0 0.0
        %5892 = vmatprep.subr.mxu0 0.0
        %5893 = vmatpush2.msra.mxu0 0.0
        %5894 = vmatprep.subr.mxu0 0.0
        %5895 = vmatpush2.msra.mxu0 0.0
        %5896 = vmatprep.subr.mxu0 0.0
        %5897 = vmatpush2.msra.mxu0 0.0
        %5898 = vmatprep.subr.mxu0 0.0
        %5899 = vmatpush2.msra.mxu0 0.0
        %5900 = vmatprep.subr.mxu0 0.0
        %5901 = vmatpush2.msra.mxu0 0.0
        %5902 = vmatprep.subr.mxu0 0.0
        %5903 = vmatpush2.msra.mxu0 0.0
        %5904 = vmatprep.subr.mxu0 0.0
        %5905 = vmatpush2.msra.mxu0 0.0
        %5906 = vmatprep.subr.mxu0 0.0
        %5907 = vmatpush2.msra.mxu0 0.0
        %5908 = vmatprep.subr.mxu0 0.0
        %5909 = vmatpush2.msra.mxu0 0.0
        %5910 = vmatprep.subr.mxu0 0.0
        %5911 = vmatpush2.msra.mxu0 0.0
        %5912 = vmatprep.subr.mxu0 0.0
        %5913 = vmatpush2.msra.mxu0 0.0
        %5914 = vmatprep.subr.mxu0 0.0
        %5915 = vmatpush2.msra.mxu0 0.0
        %5916 = vmatprep.subr.mxu0 0.0
        %5917 = vmatpush2.msra.mxu0 0.0
        %5918 = vmatprep.subr.mxu0 0.0
        %5919 = vmatpush2.msra.mxu0 0.0
        %5920 = vmatprep.mubr.f32.mxu0 0.0
        %5921 = vmatmul.mubr.f32.gmra.mxu0 %v5833
        %v5922 = vpop.f32.mrf.mxu0
        %v5923 = vadd.f32 %v5830, %v5922
        %v5924 = vpop.f32.mrf.mxu0
        %5925 = vmatprep.mubr.f32.mxu0 0.0
        %5926 = vmatmul.mubr.f32.gmra.mxu0 %v5836
        %v5927 = vpop.f32.mrf.mxu0
        %v5928 = vadd.f32 %v5830, %v5927
        %v5929 = vpop.f32.mrf.mxu0
        %5930 = vmatprep.mubr.f32.mxu0 0.0
        %5931 = vmatmul.mubr.f32.gmra.mxu0 %v5839
        %v5932 = vpop.f32.mrf.mxu0
        %v5933 = vadd.f32 %v5830, %v5932
        %v5934 = vpop.f32.mrf.mxu0
        %5935 = vmatprep.mubr.f32.mxu0 0.0
        %5936 = vmatmul.mubr.f32.gmra.mxu0 %v5842
        %v5937 = vpop.f32.mrf.mxu0
        %v5938 = vadd.f32 %v5830, %v5937
        %v5939 = vpop.f32.mrf.mxu0
        %5940 = vmatprep.mubr.f32.mxu0 0.0
        %5941 = vmatmul.mubr.f32.gmra.mxu0 %v5845
        %v5942 = vpop.f32.mrf.mxu0
        %v5943 = vadd.f32 %v5830, %v5942
        %v5944 = vpop.f32.mrf.mxu0
        %5945 = vmatprep.mubr.f32.mxu0 0.0
        %5946 = vmatmul.mubr.f32.gmra.mxu0 %v5848
        %v5947 = vpop.f32.mrf.mxu0
        %v5948 = vadd.f32 %v5830, %v5947
        %v5949 = vpop.f32.mrf.mxu0
        %5950 = vmatprep.mubr.f32.mxu0 0.0
        %5951 = vmatmul.mubr.f32.gmra.mxu0 %v5851
        %v5952 = vpop.f32.mrf.mxu0
        %v5953 = vadd.f32 %v5830, %v5952
        %v5954 = vpop.f32.mrf.mxu0
        %5955 = vmatprep.mubr.f32.mxu0 0.0
        %5956 = vmatmul.mubr.f32.gmra.mxu0 %v5854
        %v5957 = vpop.f32.mrf.mxu0
        %v5958 = vadd.f32 %v5830, %v5957
        %v5959 = vpop.f32.mrf.mxu0
        %5960 = vdwg.mxu0
        %5961 = vst [vmem:[%s446] sm:$0xff] %v5923
        %5962 = vst [vmem:[%s446 + $0x8] sm:$0xff] %v5928
        %5963 = vst [vmem:[%s446 + $0x10] sm:$0xff] %v5933
        %5964 = vst [vmem:[%s446 + $0x18] sm:$0xff] %v5938
        %5965 = vst [vmem:[%s446 + $0x20] sm:$0xff] %v5943
        %5966 = vst [vmem:[%s446 + $0x28] sm:$0xff] %v5948
        %5967 = vst [vmem:[%s446 + $0x30] sm:$0xff] %v5953
        %5968 = vst [vmem:[%s446 + $0x38] sm:$0xff] %v5958
        %s5969 = sand.u32 %s253, 1
        %s5970 = scalar_lea.sflag [#allocation9], %s5969
        %s5971 = sand.u32 %s253, 1
        %s5972 = smul.addr %s5971, 64
        %s5973 = scalar_lea.vmem [#allocation18], %s5972
        // Predicated region
        $region92: #{tpu_custom_call.1} parent=59 // pred_check
          %p5974 = pneg %p263
        $region93: #{tpu_custom_call.1} parent=59 // pred_check_branch
          %5976 = sbr.rel (%p5974) target = $region95
        $region94: #{tpu_custom_call.1} parent=59 // pred_region
          %s5978 = ssub.s32 1024, 1024
          %5979 = vsyncadd %s5970, %s5978
          %s5980 = smul.addr %s30, 8
          %s5981 = smul.addr %s5980, 128
          %s5982 = scalar_lea.hbm %s10, %s5981
          %s5983 = sshll.u32 %s5973, 4
          %s5984 = int_to_ptr.vmem [resolvable:$true] %s5983
          %5989 = dma.vmem_to_hbm [thread:$0]  %s5984, 1024, %s5982, %s5970, 128, 128, 8
        $region95: #{tpu_custom_call.1} parent=59 // pred_fallthru
          _
      $region60: #{tpu_custom_call.1} parent=5 // pred_fallthru
        _
      %p5990 = scmp.le.s32.totalorder 2, %s25
      // Predicated region
      $region96: #{tpu_custom_call.1} parent=5 // pred_check
        %p5991 = pneg %p5990
      $region97: #{tpu_custom_call.1} parent=5 // pred_check_branch
        %5993 = sbr.rel (%p5991) target = $region99
      $region98: #{tpu_custom_call.1} parent=5 // pred_region
        %s5994 = ssub.s32 %s25, 2
        // Predicated region
        $region100: #{tpu_custom_call.1} parent=98 // pred_check
          %p5995 = pneg %p269
        $region101: #{tpu_custom_call.1} parent=98 // pred_check_branch
          %5997 = sbr.rel (%p5995) target = $region103
        $region102: #{tpu_custom_call.1} parent=98 // pred_region
          %s5998 = sand.u32 %s254, 1
          %s5999 = scalar_lea.sflag [#allocation9], %s5998
          %s6000 = sand.u32 %s254, 1
          %s6001 = smul.addr %s6000, 64
          %s6002 = scalar_lea.vmem [#allocation18], %s6001
          %6003 = dma.done %s5999, 1024
        $region103: #{tpu_custom_call.1} parent=98 // pred_fallthru
          _
      $region99: #{tpu_custom_call.1} parent=5 // pred_fallthru
        _
    $region6: #{tpu_custom_call.1} parent=1 // loop_footer
      %s29 = sadd.s32 1, %s25
    $region7: #{tpu_custom_call.1} parent=1 // loop_footer_branch
      %24 = sbr.rel target = $region3
    $region8: #{tpu_custom_call.1} parent=1 // loop_exit
      _
    %6004 = vsyncpa [#allocation8], 1
    %s6005 = scalar_lea.sflag [#allocation8], 1
    %6006 = vsyncpa %s6005, 1
    %6007 = vsyncpa [#allocation11], 1
    %6008 = vsyncpa [#allocation14], 1
    %6009 = vsyncpa [#allocation17], 1
    %6010 = vsyncpa [#allocation9], 1
    %s6011 = scalar_lea.sflag [#allocation9], 1
    %6012 = vsyncpa %s6011, 1

</llo_original>
